<compile_context>
chip_gen: v6e
topology: v6e:2x2x1
jax: 0.10.0
libtpu: 0.0.40
codegen_flags: <defaults>
</compile_context>

<pallas_src>
import functools

import jax
import jax.numpy as jnp
import numpy as np
from jax.experimental import pallas as pl
from jax.experimental.pallas import tpu as pltpu


# ----------------------------- Pallas kernel ---------------------------------

def _apply_gates(gates, c, H):
    """LSTM cell elementwise update. Gate column order: [i, f, o, g]."""
    # sigmoid(x) == 0.5*tanh(0.5*x) + 0.5  (exact identity; single EUP op per vreg).
    sg = 0.5 * jnp.tanh(0.5 * gates[:, : 3 * H]) + 0.5   # contiguous (B, 3H) slab
    i = sg[:, 0 * H:1 * H]
    f = sg[:, 1 * H:2 * H]
    o = sg[:, 2 * H:3 * H]
    g = jnp.tanh(gates[:, 3 * H:4 * H])                  # contiguous (B, H) slab
    c_new = f * c + i * g
    h_new = o * jnp.tanh(c_new)
    return h_new, c_new


def feat_aggregate_kernel(x_ref,      # (T*B, I)     time-major flattened feats
                          w1ih_ref,   # (I, 4H)      W1_ih^T, gate order [i,f,o,g]
                          wstk_ref,   # (H, 4H+4O)   [W1_hh^T | W2_ih^T] stacked
                          w2hh_ref,   # (O, 4O)      W2_hh^T
                          b1_ref,     # (1, 4H)      b1_ih + b1_hh
                          b2_ref,     # (1, 4O)      b2_ih + b2_hh
                          out_ref,    # (B, O)
                          z1_ref,     # VMEM scratch (T*B, 4H)
                          *, T, B, H, O):
    # Hoisted layer-1 input projection (one big MXU launch), parked in VMEM scratch
    # so the unrolled recurrence only keeps one (B, 4H) slice live per step.
    z1_ref[...] = jnp.dot(x_ref[...], w1ih_ref[...],
                          preferred_element_type=jnp.float32) + b1_ref[...]

    w_stk = wstk_ref[...]
    w2hh = w2hh_ref[...]
    b2b = jnp.broadcast_to(b2_ref[...], (B, 4 * O))   # hoisted: broadcast once, reuse

    c1 = jnp.zeros((B, H), jnp.float32)
    h2 = jnp.zeros((B, O), jnp.float32)
    c2 = jnp.zeros((B, O), jnp.float32)
    r1 = jnp.zeros((B, 4 * H), jnp.float32)           # h1(-1) @ W1_hh^T == 0
    p2 = b2b                                          # h2(-1) @ W2_hh^T + b2 == b2

    # T is small & static -> fully unrolled recurrence with static, tile-aligned slices.
    for t in range(T):
        # Layer 1: only the (already fused-in) recurrent term r1 is on the serial path.
        g1 = z1_ref[pl.ds(t * B, B), :] + r1                            # (B, 4H)
        h1, c1 = _apply_gates(g1, c1, H)

        # Single fused matmul consuming h1: produces BOTH next step's layer-1
        # recurrent term and this step's layer-2 input term.
        fused = jnp.dot(h1, w_stk, preferred_element_type=jnp.float32)  # (B, 4H+4O)
        r1 = fused[:, : 4 * H]

        # Layer 2: recurrent partial p2 was computed from h2(t-1) (off critical path).
        g2 = fused[:, 4 * H:] + p2                                      # (B, 4O)
        h2, c2 = _apply_gates(g2, c2, O)

        # Issue the h2-recurrent matmul for the NEXT step immediately; it does not
        # depend on h1(t+1), so it overlaps with the next layer-1 gate block.
        if t + 1 < T:
            p2 = jnp.dot(h2, w2hh, preferred_element_type=jnp.float32) + b2b

    out_ref[...] = h2.astype(out_ref.dtype)


# --------------------------- parameter preparation ----------------------------

def _reorder_ifog(w):
    """Reorder PyTorch gate blocks [i, f, g, o] -> [i, f, o, g] along axis 0."""
    H = w.shape[0] // 4
    return jnp.concatenate([w[:2 * H], w[3 * H:], w[2 * H:3 * H]], axis=0)


def prepare_kernel_params(params):
    """PyTorch-layout params -> kernel layout (pre-transposed, gates reordered,
    biases folded, h1-consuming weights stacked into one fused RHS)."""
    w1_ih = _reorder_ifog(params["w1_ih"])                  # (4H, I)
    w1_hh = _reorder_ifog(params["w1_hh"])                  # (4H, H)
    b1 = _reorder_ifog(params["b1_ih"] + params["b1_hh"])   # (4H,)
    w2_ih = _reorder_ifog(params["w2_ih"])                  # (4O, H)
    w2_hh = _reorder_ifog(params["w2_hh"])                  # (4O, O)
    b2 = _reorder_ifog(params["b2_ih"] + params["b2_hh"])   # (4O,)
    return {
        "w1_ih_t": w1_ih.T,                                     # (I, 4H)
        "w_stk": jnp.concatenate([w1_hh.T, w2_ih.T], axis=1),   # (H, 4H+4O)
        "w2_hh_t": w2_hh.T,                                     # (O, 4O)
        "b1": b1[None, :],                                      # (1, 4H)
        "b2": b2[None, :],                                      # (1, 4O)
    }


# --------------------------------- wrapper ------------------------------------

def feat_aggregate(feats, params):
    """feats: (B, T, input_size) float32 -> (B, out_size) float32."""
    B, T, I = feats.shape
    H = params["w1_hh"].shape[1]
    O = params["w2_hh"].shape[1]

    kp = prepare_kernel_params(params)
    # Time-major flattened so per-timestep rows of the hoisted projection are
    # contiguous, (8,128)-tile-aligned sublane blocks: rows [t*B, (t+1)*B).
    x2d = jnp.transpose(feats, (1, 0, 2)).reshape(T * B, I)

    kernel = functools.partial(feat_aggregate_kernel, T=T, B=B, H=H, O=O)
    vmem_spec = lambda: pl.BlockSpec(memory_space=pltpu.MemorySpace.VMEM)
    return pl.pallas_call(
        kernel,
        out_shape=jax.ShapeDtypeStruct((B, O), jnp.float32),
        in_specs=[vmem_spec() for _ in range(6)],
        out_specs=vmem_spec(),
        scratch_shapes=[pltpu.VMEM((T * B, 4 * H), jnp.float32)],
    )(x2d, kp["w1_ih_t"], kp["w_stk"], kp["w2_hh_t"], kp["b1"], kp["b2"])


# --------------------------- pure-JAX reference --------------------------------

def _lstm_cell_ref(x, h, c, w_ih, w_hh, b_ih, b_hh):
    """PyTorch nn.LSTMCell semantics, gate order [i, f, g, o]."""
    gates = x @ w_ih.T + h @ w_hh.T + b_ih + b_hh
    i, f, g, o = jnp.split(gates, 4, axis=-1)
    c_new = jax.nn.sigmoid(f) * c + jax.nn.sigmoid(i) * jnp.tanh(g)
    h_new = jax.nn.sigmoid(o) * jnp.tanh(c_new)
    return h_new, c_new


def feat_aggregate_ref(feats, params):
    B, T, _ = feats.shape
    H = params["w1_hh"].shape[1]
    O = params["w2_hh"].shape[1]
    h1 = jnp.zeros((B, H), jnp.float32)
    c1 = jnp.zeros((B, H), jnp.float32)
    h2 = jnp.zeros((B, O), jnp.float32)
    c2 = jnp.zeros((B, O), jnp.float32)
    for t in range(T):
        x_t = feats[:, t, :]
        h1, c1 = _lstm_cell_ref(x_t, h1, c1, params["w1_ih"], params["w1_hh"],
                                params["b1_ih"], params["b1_hh"])
        h2, c2 = _lstm_cell_ref(h1, h2, c2, params["w2_ih"], params["w2_hh"],
                                params["b2_ih"], params["b2_hh"])
    return h2


# ------------------------------- parameters ------------------------------------

def init_params(key, input_size, hidden_size, out_size):
    """PyTorch-layout LSTMCell params, uniform(-1/sqrt(H), 1/sqrt(H))."""
    ks = jax.random.split(key, 8)
    k1 = 1.0 / np.sqrt(hidden_size)
    k2 = 1.0 / np.sqrt(out_size)
    u = lambda k, shape, s: jax.random.uniform(k, shape, jnp.float32, -s, s)
    return {
        "w1_ih": u(ks[0], (4 * hidden_size, input_size), k1),
        "w1_hh": u(ks[1], (4 * hidden_size, hidden_size), k1),
        "b1_ih": u(ks[2], (4 * hidden_size,), k1),
        "b1_hh": u(ks[3], (4 * hidden_size,), k1),
        "w2_ih": u(ks[4], (4 * out_size, hidden_size), k2),
        "w2_hh": u(ks[5], (4 * out_size, out_size), k2),
        "b2_ih": u(ks[6], (4 * out_size,), k2),
        "b2_hh": u(ks[7], (4 * out_size,), k2),
    }


# ---------------------------------- main ----------------------------------------

if __name__ == "__main__":
    B, T, I, H, O = 8, 8, 64, 128, 128  # (batch, seq, input, hidden, out) — small shapes

    key = jax.random.PRNGKey(0)
    k_feats, k_params = jax.random.split(key)
    feats = jax.random.normal(k_feats, (B, T, I), jnp.float32)
    params = init_params(k_params, I, H, O)

    out = feat_aggregate(feats, params)
    out = jax.block_until_ready(out)

    ref = feat_aggregate_ref(feats, params)
    np.testing.assert_allclose(np.asarray(out), np.asarray(ref), rtol=1e-5, atol=1e-5)

    print("KERNEL_OK")
</pallas_src>

<mosaic_0001>
module attributes {stable_mosaic.version = 11 : i64} {
  func.func @feat_aggregate_kernel(%arg0: memref<64x64xf32, #tpu.memory_space<vmem>>, %arg1: memref<64x512xf32, #tpu.memory_space<vmem>>, %arg2: memref<128x1024xf32, #tpu.memory_space<vmem>>, %arg3: memref<128x512xf32, #tpu.memory_space<vmem>>, %arg4: memref<1x512xf32, #tpu.memory_space<vmem>>, %arg5: memref<1x512xf32, #tpu.memory_space<vmem>>, %arg6: memref<8x128xf32, #tpu.memory_space<vmem>>, %arg7: memref<64x512xf32, #tpu.memory_space<vmem>>) attributes {dimension_semantics = [], scalar_prefetch = 0 : i64, scratch_operands = 1 : i64, tpu.core_type = #tpu.core_type<tc>} {
    %c0 = arith.constant 0 : index
    %c0_0 = arith.constant 0 : index
    %0 = vector.load %arg0[%c0, %c0_0] : memref<64x64xf32, #tpu.memory_space<vmem>>, vector<64x64xf32>
    %c0_1 = arith.constant 0 : index
    %c0_2 = arith.constant 0 : index
    %1 = vector.load %arg1[%c0_1, %c0_2] : memref<64x512xf32, #tpu.memory_space<vmem>>, vector<64x512xf32>
    %cst = arith.constant dense<0.000000e+00> : vector<64x512xf32>
    %2 = tpu.matmul %0, %1, %cst {dimension_numbers = #tpu.dot_dimension_numbers<[1], [0], [0], [1], [0, 0, 1, 1], [], []>} : vector<64x64xf32>, vector<64x512xf32>, vector<64x512xf32> -> vector<64x512xf32>
    %c0_3 = arith.constant 0 : index
    %c0_4 = arith.constant 0 : index
    %3 = vector.load %arg4[%c0_3, %c0_4] : memref<1x512xf32, #tpu.memory_space<vmem>>, vector<1x512xf32>
    %4 = vector.broadcast %3 : vector<1x512xf32> to vector<64x512xf32>
    %5 = arith.addf %2, %4 : vector<64x512xf32>
    %c0_5 = arith.constant 0 : index
    %c0_6 = arith.constant 0 : index
    %6 = vector.load %arg7[%c0_5, %c0_6] : memref<64x512xf32, #tpu.memory_space<vmem>>, vector<64x512xf32>
    tpu.vector_store %arg7[%c0_5, %c0_6], %5 {strides = array<i32>} : memref<64x512xf32, #tpu.memory_space<vmem>>, vector<64x512xf32>,
    %c0_7 = arith.constant 0 : index
    %c0_8 = arith.constant 0 : index
    %7 = vector.load %arg2[%c0_7, %c0_8] : memref<128x1024xf32, #tpu.memory_space<vmem>>, vector<128x1024xf32>
    %c0_9 = arith.constant 0 : index
    %c0_10 = arith.constant 0 : index
    %8 = vector.load %arg3[%c0_9, %c0_10] : memref<128x512xf32, #tpu.memory_space<vmem>>, vector<128x512xf32>
    %c0_11 = arith.constant 0 : index
    %c0_12 = arith.constant 0 : index
    %9 = vector.load %arg5[%c0_11, %c0_12] : memref<1x512xf32, #tpu.memory_space<vmem>>, vector<1x512xf32>
    %10 = vector.shape_cast %9 : vector<1x512xf32> to vector<1x512xf32>
    %11 = vector.broadcast %10 : vector<1x512xf32> to vector<8x512xf32>
    %cst_13 = arith.constant 0.000000e+00 : f32
    %12 = vector.broadcast %cst_13 : f32 to vector<8x128xf32>
    %cst_14 = arith.constant 0.000000e+00 : f32
    %13 = vector.broadcast %cst_14 : f32 to vector<8x128xf32>
    %cst_15 = arith.constant 0.000000e+00 : f32
    %14 = vector.broadcast %cst_15 : f32 to vector<8x512xf32>
    %c0_16 = arith.constant 0 : index
    %c0_17 = arith.constant 0 : index
    %15 = vector.load %arg7[%c0_16, %c0_17] : memref<64x512xf32, #tpu.memory_space<vmem>>, vector<8x512xf32>
    %16 = arith.addf %15, %14 : vector<8x512xf32>
    %17 = vector.extract_strided_slice %16 {offsets = [0, 0], sizes = [8, 384], strides = [1, 1]} : vector<8x512xf32> to vector<8x384xf32>
    %cst_18 = arith.constant 5.000000e-01 : f32
    %18 = vector.broadcast %cst_18 : f32 to vector<8x384xf32>
    %19 = arith.mulf %18, %17 : vector<8x384xf32>
    %20 = math.tanh %19 : vector<8x384xf32>
    %cst_19 = arith.constant 5.000000e-01 : f32
    %21 = vector.broadcast %cst_19 : f32 to vector<8x384xf32>
    %22 = arith.mulf %21, %20 : vector<8x384xf32>
    %cst_20 = arith.constant 5.000000e-01 : f32
    %23 = vector.broadcast %cst_20 : f32 to vector<8x384xf32>
    %24 = arith.addf %22, %23 : vector<8x384xf32>
    %25 = vector.extract_strided_slice %24 {offsets = [0, 0], sizes = [8, 128], strides = [1, 1]} : vector<8x384xf32> to vector<8x128xf32>
    %26 = vector.extract_strided_slice %24 {offsets = [0, 128], sizes = [8, 128], strides = [1, 1]} : vector<8x384xf32> to vector<8x128xf32>
    %27 = vector.extract_strided_slice %24 {offsets = [0, 256], sizes = [8, 128], strides = [1, 1]} : vector<8x384xf32> to vector<8x128xf32>
    %28 = vector.extract_strided_slice %16 {offsets = [0, 384], sizes = [8, 128], strides = [1, 1]} : vector<8x512xf32> to vector<8x128xf32>
    %29 = math.tanh %28 : vector<8x128xf32>
    %30 = arith.mulf %26, %12 : vector<8x128xf32>
    %31 = arith.mulf %25, %29 : vector<8x128xf32>
    %32 = arith.addf %30, %31 : vector<8x128xf32>
    %33 = math.tanh %32 : vector<8x128xf32>
    %34 = arith.mulf %27, %33 : vector<8x128xf32>
    %cst_21 = arith.constant dense<0.000000e+00> : vector<8x1024xf32>
    %35 = tpu.matmul %34, %7, %cst_21 {dimension_numbers = #tpu.dot_dimension_numbers<[1], [0], [0], [1], [0, 0, 1, 1], [], []>} : vector<8x128xf32>, vector<128x1024xf32>, vector<8x1024xf32> -> vector<8x1024xf32>
    %36 = vector.extract_strided_slice %35 {offsets = [0, 0], sizes = [8, 512], strides = [1, 1]} : vector<8x1024xf32> to vector<8x512xf32>
    %37 = vector.extract_strided_slice %35 {offsets = [0, 512], sizes = [8, 512], strides = [1, 1]} : vector<8x1024xf32> to vector<8x512xf32>
    %38 = arith.addf %37, %11 : vector<8x512xf32>
    %39 = vector.extract_strided_slice %38 {offsets = [0, 0], sizes = [8, 384], strides = [1, 1]} : vector<8x512xf32> to vector<8x384xf32>
    %cst_22 = arith.constant 5.000000e-01 : f32
    %40 = vector.broadcast %cst_22 : f32 to vector<8x384xf32>
    %41 = arith.mulf %40, %39 : vector<8x384xf32>
    %42 = math.tanh %41 : vector<8x384xf32>
    %cst_23 = arith.constant 5.000000e-01 : f32
    %43 = vector.broadcast %cst_23 : f32 to vector<8x384xf32>
    %44 = arith.mulf %43, %42 : vector<8x384xf32>
    %cst_24 = arith.constant 5.000000e-01 : f32
    %45 = vector.broadcast %cst_24 : f32 to vector<8x384xf32>
    %46 = arith.addf %44, %45 : vector<8x384xf32>
    %47 = vector.extract_strided_slice %46 {offsets = [0, 0], sizes = [8, 128], strides = [1, 1]} : vector<8x384xf32> to vector<8x128xf32>
    %48 = vector.extract_strided_slice %46 {offsets = [0, 128], sizes = [8, 128], strides = [1, 1]} : vector<8x384xf32> to vector<8x128xf32>
    %49 = vector.extract_strided_slice %46 {offsets = [0, 256], sizes = [8, 128], strides = [1, 1]} : vector<8x384xf32> to vector<8x128xf32>
    %50 = vector.extract_strided_slice %38 {offsets = [0, 384], sizes = [8, 128], strides = [1, 1]} : vector<8x512xf32> to vector<8x128xf32>
    %51 = math.tanh %50 : vector<8x128xf32>
    %52 = arith.mulf %48, %13 : vector<8x128xf32>
    %53 = arith.mulf %47, %51 : vector<8x128xf32>
    %54 = arith.addf %52, %53 : vector<8x128xf32>
    %55 = math.tanh %54 : vector<8x128xf32>
    %56 = arith.mulf %49, %55 : vector<8x128xf32>
    %cst_25 = arith.constant dense<0.000000e+00> : vector<8x512xf32>
    %57 = tpu.matmul %56, %8, %cst_25 {dimension_numbers = #tpu.dot_dimension_numbers<[1], [0], [0], [1], [0, 0, 1, 1], [], []>} : vector<8x128xf32>, vector<128x512xf32>, vector<8x512xf32> -> vector<8x512xf32>
    %58 = arith.addf %57, %11 : vector<8x512xf32>
    %c8 = arith.constant 8 : index
    %c0_26 = arith.constant 0 : index
    %59 = vector.load %arg7[%c8, %c0_26] : memref<64x512xf32, #tpu.memory_space<vmem>>, vector<8x512xf32>
    %60 = arith.addf %59, %36 : vector<8x512xf32>
    %61 = vector.extract_strided_slice %60 {offsets = [0, 0], sizes = [8, 384], strides = [1, 1]} : vector<8x512xf32> to vector<8x384xf32>
    %cst_27 = arith.constant 5.000000e-01 : f32
    %62 = vector.broadcast %cst_27 : f32 to vector<8x384xf32>
    %63 = arith.mulf %62, %61 : vector<8x384xf32>
    %64 = math.tanh %63 : vector<8x384xf32>
    %cst_28 = arith.constant 5.000000e-01 : f32
    %65 = vector.broadcast %cst_28 : f32 to vector<8x384xf32>
    %66 = arith.mulf %65, %64 : vector<8x384xf32>
    %cst_29 = arith.constant 5.000000e-01 : f32
    %67 = vector.broadcast %cst_29 : f32 to vector<8x384xf32>
    %68 = arith.addf %66, %67 : vector<8x384xf32>
    %69 = vector.extract_strided_slice %68 {offsets = [0, 0], sizes = [8, 128], strides = [1, 1]} : vector<8x384xf32> to vector<8x128xf32>
    %70 = vector.extract_strided_slice %68 {offsets = [0, 128], sizes = [8, 128], strides = [1, 1]} : vector<8x384xf32> to vector<8x128xf32>
    %71 = vector.extract_strided_slice %68 {offsets = [0, 256], sizes = [8, 128], strides = [1, 1]} : vector<8x384xf32> to vector<8x128xf32>
    %72 = vector.extract_strided_slice %60 {offsets = [0, 384], sizes = [8, 128], strides = [1, 1]} : vector<8x512xf32> to vector<8x128xf32>
    %73 = math.tanh %72 : vector<8x128xf32>
    %74 = arith.mulf %70, %32 : vector<8x128xf32>
    %75 = arith.mulf %69, %73 : vector<8x128xf32>
    %76 = arith.addf %74, %75 : vector<8x128xf32>
    %77 = math.tanh %76 : vector<8x128xf32>
    %78 = arith.mulf %71, %77 : vector<8x128xf32>
    %cst_30 = arith.constant dense<0.000000e+00> : vector<8x1024xf32>
    %79 = tpu.matmul %78, %7, %cst_30 {dimension_numbers = #tpu.dot_dimension_numbers<[1], [0], [0], [1], [0, 0, 1, 1], [], []>} : vector<8x128xf32>, vector<128x1024xf32>, vector<8x1024xf32> -> vector<8x1024xf32>
    %80 = vector.extract_strided_slice %79 {offsets = [0, 0], sizes = [8, 512], strides = [1, 1]} : vector<8x1024xf32> to vector<8x512xf32>
    %81 = vector.extract_strided_slice %79 {offsets = [0, 512], sizes = [8, 512], strides = [1, 1]} : vector<8x1024xf32> to vector<8x512xf32>
    %82 = arith.addf %81, %58 : vector<8x512xf32>
    %83 = vector.extract_strided_slice %82 {offsets = [0, 0], sizes = [8, 384], strides = [1, 1]} : vector<8x512xf32> to vector<8x384xf32>
    %cst_31 = arith.constant 5.000000e-01 : f32
    %84 = vector.broadcast %cst_31 : f32 to vector<8x384xf32>
    %85 = arith.mulf %84, %83 : vector<8x384xf32>
    %86 = math.tanh %85 : vector<8x384xf32>
    %cst_32 = arith.constant 5.000000e-01 : f32
    %87 = vector.broadcast %cst_32 : f32 to vector<8x384xf32>
    %88 = arith.mulf %87, %86 : vector<8x384xf32>
    %cst_33 = arith.constant 5.000000e-01 : f32
    %89 = vector.broadcast %cst_33 : f32 to vector<8x384xf32>
    %90 = arith.addf %88, %89 : vector<8x384xf32>
    %91 = vector.extract_strided_slice %90 {offsets = [0, 0], sizes = [8, 128], strides = [1, 1]} : vector<8x384xf32> to vector<8x128xf32>
    %92 = vector.extract_strided_slice %90 {offsets = [0, 128], sizes = [8, 128], strides = [1, 1]} : vector<8x384xf32> to vector<8x128xf32>
    %93 = vector.extract_strided_slice %90 {offsets = [0, 256], sizes = [8, 128], strides = [1, 1]} : vector<8x384xf32> to vector<8x128xf32>
    %94 = vector.extract_strided_slice %82 {offsets = [0, 384], sizes = [8, 128], strides = [1, 1]} : vector<8x512xf32> to vector<8x128xf32>
    %95 = math.tanh %94 : vector<8x128xf32>
    %96 = arith.mulf %92, %54 : vector<8x128xf32>
    %97 = arith.mulf %91, %95 : vector<8x128xf32>
    %98 = arith.addf %96, %97 : vector<8x128xf32>
    %99 = math.tanh %98 : vector<8x128xf32>
    %100 = arith.mulf %93, %99 : vector<8x128xf32>
    %cst_34 = arith.constant dense<0.000000e+00> : vector<8x512xf32>
    %101 = tpu.matmul %100, %8, %cst_34 {dimension_numbers = #tpu.dot_dimension_numbers<[1], [0], [0], [1], [0, 0, 1, 1], [], []>} : vector<8x128xf32>, vector<128x512xf32>, vector<8x512xf32> -> vector<8x512xf32>
    %102 = arith.addf %101, %11 : vector<8x512xf32>
    %c16 = arith.constant 16 : index
    %c0_35 = arith.constant 0 : index
    %103 = vector.load %arg7[%c16, %c0_35] : memref<64x512xf32, #tpu.memory_space<vmem>>, vector<8x512xf32>
    %104 = arith.addf %103, %80 : vector<8x512xf32>
    %105 = vector.extract_strided_slice %104 {offsets = [0, 0], sizes = [8, 384], strides = [1, 1]} : vector<8x512xf32> to vector<8x384xf32>
    %cst_36 = arith.constant 5.000000e-01 : f32
    %106 = vector.broadcast %cst_36 : f32 to vector<8x384xf32>
    %107 = arith.mulf %106, %105 : vector<8x384xf32>
    %108 = math.tanh %107 : vector<8x384xf32>
    %cst_37 = arith.constant 5.000000e-01 : f32
    %109 = vector.broadcast %cst_37 : f32 to vector<8x384xf32>
    %110 = arith.mulf %109, %108 : vector<8x384xf32>
    %cst_38 = arith.constant 5.000000e-01 : f32
    %111 = vector.broadcast %cst_38 : f32 to vector<8x384xf32>
    %112 = arith.addf %110, %111 : vector<8x384xf32>
    %113 = vector.extract_strided_slice %112 {offsets = [0, 0], sizes = [8, 128], strides = [1, 1]} : vector<8x384xf32> to vector<8x128xf32>
    %114 = vector.extract_strided_slice %112 {offsets = [0, 128], sizes = [8, 128], strides = [1, 1]} : vector<8x384xf32> to vector<8x128xf32>
    %115 = vector.extract_strided_slice %112 {offsets = [0, 256], sizes = [8, 128], strides = [1, 1]} : vector<8x384xf32> to vector<8x128xf32>
    %116 = vector.extract_strided_slice %104 {offsets = [0, 384], sizes = [8, 128], strides = [1, 1]} : vector<8x512xf32> to vector<8x128xf32>
    %117 = math.tanh %116 : vector<8x128xf32>
    %118 = arith.mulf %114, %76 : vector<8x128xf32>
    %119 = arith.mulf %113, %117 : vector<8x128xf32>
    %120 = arith.addf %118, %119 : vector<8x128xf32>
    %121 = math.tanh %120 : vector<8x128xf32>
    %122 = arith.mulf %115, %121 : vector<8x128xf32>
    %cst_39 = arith.constant dense<0.000000e+00> : vector<8x1024xf32>
    %123 = tpu.matmul %122, %7, %cst_39 {dimension_numbers = #tpu.dot_dimension_numbers<[1], [0], [0], [1], [0, 0, 1, 1], [], []>} : vector<8x128xf32>, vector<128x1024xf32>, vector<8x1024xf32> -> vector<8x1024xf32>
    %124 = vector.extract_strided_slice %123 {offsets = [0, 0], sizes = [8, 512], strides = [1, 1]} : vector<8x1024xf32> to vector<8x512xf32>
    %125 = vector.extract_strided_slice %123 {offsets = [0, 512], sizes = [8, 512], strides = [1, 1]} : vector<8x1024xf32> to vector<8x512xf32>
    %126 = arith.addf %125, %102 : vector<8x512xf32>
    %127 = vector.extract_strided_slice %126 {offsets = [0, 0], sizes = [8, 384], strides = [1, 1]} : vector<8x512xf32> to vector<8x384xf32>
    %cst_40 = arith.constant 5.000000e-01 : f32
    %128 = vector.broadcast %cst_40 : f32 to vector<8x384xf32>
    %129 = arith.mulf %128, %127 : vector<8x384xf32>
    %130 = math.tanh %129 : vector<8x384xf32>
    %cst_41 = arith.constant 5.000000e-01 : f32
    %131 = vector.broadcast %cst_41 : f32 to vector<8x384xf32>
    %132 = arith.mulf %131, %130 : vector<8x384xf32>
    %cst_42 = arith.constant 5.000000e-01 : f32
    %133 = vector.broadcast %cst_42 : f32 to vector<8x384xf32>
    %134 = arith.addf %132, %133 : vector<8x384xf32>
    %135 = vector.extract_strided_slice %134 {offsets = [0, 0], sizes = [8, 128], strides = [1, 1]} : vector<8x384xf32> to vector<8x128xf32>
    %136 = vector.extract_strided_slice %134 {offsets = [0, 128], sizes = [8, 128], strides = [1, 1]} : vector<8x384xf32> to vector<8x128xf32>
    %137 = vector.extract_strided_slice %134 {offsets = [0, 256], sizes = [8, 128], strides = [1, 1]} : vector<8x384xf32> to vector<8x128xf32>
    %138 = vector.extract_strided_slice %126 {offsets = [0, 384], sizes = [8, 128], strides = [1, 1]} : vector<8x512xf32> to vector<8x128xf32>
    %139 = math.tanh %138 : vector<8x128xf32>
    %140 = arith.mulf %136, %98 : vector<8x128xf32>
    %141 = arith.mulf %135, %139 : vector<8x128xf32>
    %142 = arith.addf %140, %141 : vector<8x128xf32>
    %143 = math.tanh %142 : vector<8x128xf32>
    %144 = arith.mulf %137, %143 : vector<8x128xf32>
    %cst_43 = arith.constant dense<0.000000e+00> : vector<8x512xf32>
    %145 = tpu.matmul %144, %8, %cst_43 {dimension_numbers = #tpu.dot_dimension_numbers<[1], [0], [0], [1], [0, 0, 1, 1], [], []>} : vector<8x128xf32>, vector<128x512xf32>, vector<8x512xf32> -> vector<8x512xf32>
    %146 = arith.addf %145, %11 : vector<8x512xf32>
    %c24 = arith.constant 24 : index
    %c0_44 = arith.constant 0 : index
    %147 = vector.load %arg7[%c24, %c0_44] : memref<64x512xf32, #tpu.memory_space<vmem>>, vector<8x512xf32>
    %148 = arith.addf %147, %124 : vector<8x512xf32>
    %149 = vector.extract_strided_slice %148 {offsets = [0, 0], sizes = [8, 384], strides = [1, 1]} : vector<8x512xf32> to vector<8x384xf32>
    %cst_45 = arith.constant 5.000000e-01 : f32
    %150 = vector.broadcast %cst_45 : f32 to vector<8x384xf32>
    %151 = arith.mulf %150, %149 : vector<8x384xf32>
    %152 = math.tanh %151 : vector<8x384xf32>
    %cst_46 = arith.constant 5.000000e-01 : f32
    %153 = vector.broadcast %cst_46 : f32 to vector<8x384xf32>
    %154 = arith.mulf %153, %152 : vector<8x384xf32>
    %cst_47 = arith.constant 5.000000e-01 : f32
    %155 = vector.broadcast %cst_47 : f32 to vector<8x384xf32>
    %156 = arith.addf %154, %155 : vector<8x384xf32>
    %157 = vector.extract_strided_slice %156 {offsets = [0, 0], sizes = [8, 128], strides = [1, 1]} : vector<8x384xf32> to vector<8x128xf32>
    %158 = vector.extract_strided_slice %156 {offsets = [0, 128], sizes = [8, 128], strides = [1, 1]} : vector<8x384xf32> to vector<8x128xf32>
    %159 = vector.extract_strided_slice %156 {offsets = [0, 256], sizes = [8, 128], strides = [1, 1]} : vector<8x384xf32> to vector<8x128xf32>
    %160 = vector.extract_strided_slice %148 {offsets = [0, 384], sizes = [8, 128], strides = [1, 1]} : vector<8x512xf32> to vector<8x128xf32>
    %161 = math.tanh %160 : vector<8x128xf32>
    %162 = arith.mulf %158, %120 : vector<8x128xf32>
    %163 = arith.mulf %157, %161 : vector<8x128xf32>
    %164 = arith.addf %162, %163 : vector<8x128xf32>
    %165 = math.tanh %164 : vector<8x128xf32>
    %166 = arith.mulf %159, %165 : vector<8x128xf32>
    %cst_48 = arith.constant dense<0.000000e+00> : vector<8x1024xf32>
    %167 = tpu.matmul %166, %7, %cst_48 {dimension_numbers = #tpu.dot_dimension_numbers<[1], [0], [0], [1], [0, 0, 1, 1], [], []>} : vector<8x128xf32>, vector<128x1024xf32>, vector<8x1024xf32> -> vector<8x1024xf32>
    %168 = vector.extract_strided_slice %167 {offsets = [0, 0], sizes = [8, 512], strides = [1, 1]} : vector<8x1024xf32> to vector<8x512xf32>
    %169 = vector.extract_strided_slice %167 {offsets = [0, 512], sizes = [8, 512], strides = [1, 1]} : vector<8x1024xf32> to vector<8x512xf32>
    %170 = arith.addf %169, %146 : vector<8x512xf32>
    %171 = vector.extract_strided_slice %170 {offsets = [0, 0], sizes = [8, 384], strides = [1, 1]} : vector<8x512xf32> to vector<8x384xf32>
    %cst_49 = arith.constant 5.000000e-01 : f32
    %172 = vector.broadcast %cst_49 : f32 to vector<8x384xf32>
    %173 = arith.mulf %172, %171 : vector<8x384xf32>
    %174 = math.tanh %173 : vector<8x384xf32>
    %cst_50 = arith.constant 5.000000e-01 : f32
    %175 = vector.broadcast %cst_50 : f32 to vector<8x384xf32>
    %176 = arith.mulf %175, %174 : vector<8x384xf32>
    %cst_51 = arith.constant 5.000000e-01 : f32
    %177 = vector.broadcast %cst_51 : f32 to vector<8x384xf32>
    %178 = arith.addf %176, %177 : vector<8x384xf32>
    %179 = vector.extract_strided_slice %178 {offsets = [0, 0], sizes = [8, 128], strides = [1, 1]} : vector<8x384xf32> to vector<8x128xf32>
    %180 = vector.extract_strided_slice %178 {offsets = [0, 128], sizes = [8, 128], strides = [1, 1]} : vector<8x384xf32> to vector<8x128xf32>
    %181 = vector.extract_strided_slice %178 {offsets = [0, 256], sizes = [8, 128], strides = [1, 1]} : vector<8x384xf32> to vector<8x128xf32>
    %182 = vector.extract_strided_slice %170 {offsets = [0, 384], sizes = [8, 128], strides = [1, 1]} : vector<8x512xf32> to vector<8x128xf32>
    %183 = math.tanh %182 : vector<8x128xf32>
    %184 = arith.mulf %180, %142 : vector<8x128xf32>
    %185 = arith.mulf %179, %183 : vector<8x128xf32>
    %186 = arith.addf %184, %185 : vector<8x128xf32>
    %187 = math.tanh %186 : vector<8x128xf32>
    %188 = arith.mulf %181, %187 : vector<8x128xf32>
    %cst_52 = arith.constant dense<0.000000e+00> : vector<8x512xf32>
    %189 = tpu.matmul %188, %8, %cst_52 {dimension_numbers = #tpu.dot_dimension_numbers<[1], [0], [0], [1], [0, 0, 1, 1], [], []>} : vector<8x128xf32>, vector<128x512xf32>, vector<8x512xf32> -> vector<8x512xf32>
    %190 = arith.addf %189, %11 : vector<8x512xf32>
    %c32 = arith.constant 32 : index
    %c0_53 = arith.constant 0 : index
    %191 = vector.load %arg7[%c32, %c0_53] : memref<64x512xf32, #tpu.memory_space<vmem>>, vector<8x512xf32>
    %192 = arith.addf %191, %168 : vector<8x512xf32>
    %193 = vector.extract_strided_slice %192 {offsets = [0, 0], sizes = [8, 384], strides = [1, 1]} : vector<8x512xf32> to vector<8x384xf32>
    %cst_54 = arith.constant 5.000000e-01 : f32
    %194 = vector.broadcast %cst_54 : f32 to vector<8x384xf32>
    %195 = arith.mulf %194, %193 : vector<8x384xf32>
    %196 = math.tanh %195 : vector<8x384xf32>
    %cst_55 = arith.constant 5.000000e-01 : f32
    %197 = vector.broadcast %cst_55 : f32 to vector<8x384xf32>
    %198 = arith.mulf %197, %196 : vector<8x384xf32>
    %cst_56 = arith.constant 5.000000e-01 : f32
    %199 = vector.broadcast %cst_56 : f32 to vector<8x384xf32>
    %200 = arith.addf %198, %199 : vector<8x384xf32>
    %201 = vector.extract_strided_slice %200 {offsets = [0, 0], sizes = [8, 128], strides = [1, 1]} : vector<8x384xf32> to vector<8x128xf32>
    %202 = vector.extract_strided_slice %200 {offsets = [0, 128], sizes = [8, 128], strides = [1, 1]} : vector<8x384xf32> to vector<8x128xf32>
    %203 = vector.extract_strided_slice %200 {offsets = [0, 256], sizes = [8, 128], strides = [1, 1]} : vector<8x384xf32> to vector<8x128xf32>
    %204 = vector.extract_strided_slice %192 {offsets = [0, 384], sizes = [8, 128], strides = [1, 1]} : vector<8x512xf32> to vector<8x128xf32>
    %205 = math.tanh %204 : vector<8x128xf32>
    %206 = arith.mulf %202, %164 : vector<8x128xf32>
    %207 = arith.mulf %201, %205 : vector<8x128xf32>
    %208 = arith.addf %206, %207 : vector<8x128xf32>
    %209 = math.tanh %208 : vector<8x128xf32>
    %210 = arith.mulf %203, %209 : vector<8x128xf32>
    %cst_57 = arith.constant dense<0.000000e+00> : vector<8x1024xf32>
    %211 = tpu.matmul %210, %7, %cst_57 {dimension_numbers = #tpu.dot_dimension_numbers<[1], [0], [0], [1], [0, 0, 1, 1], [], []>} : vector<8x128xf32>, vector<128x1024xf32>, vector<8x1024xf32> -> vector<8x1024xf32>
    %212 = vector.extract_strided_slice %211 {offsets = [0, 0], sizes = [8, 512], strides = [1, 1]} : vector<8x1024xf32> to vector<8x512xf32>
    %213 = vector.extract_strided_slice %211 {offsets = [0, 512], sizes = [8, 512], strides = [1, 1]} : vector<8x1024xf32> to vector<8x512xf32>
    %214 = arith.addf %213, %190 : vector<8x512xf32>
    %215 = vector.extract_strided_slice %214 {offsets = [0, 0], sizes = [8, 384], strides = [1, 1]} : vector<8x512xf32> to vector<8x384xf32>
    %cst_58 = arith.constant 5.000000e-01 : f32
    %216 = vector.broadcast %cst_58 : f32 to vector<8x384xf32>
    %217 = arith.mulf %216, %215 : vector<8x384xf32>
    %218 = math.tanh %217 : vector<8x384xf32>
    %cst_59 = arith.constant 5.000000e-01 : f32
    %219 = vector.broadcast %cst_59 : f32 to vector<8x384xf32>
    %220 = arith.mulf %219, %218 : vector<8x384xf32>
    %cst_60 = arith.constant 5.000000e-01 : f32
    %221 = vector.broadcast %cst_60 : f32 to vector<8x384xf32>
    %222 = arith.addf %220, %221 : vector<8x384xf32>
    %223 = vector.extract_strided_slice %222 {offsets = [0, 0], sizes = [8, 128], strides = [1, 1]} : vector<8x384xf32> to vector<8x128xf32>
    %224 = vector.extract_strided_slice %222 {offsets = [0, 128], sizes = [8, 128], strides = [1, 1]} : vector<8x384xf32> to vector<8x128xf32>
    %225 = vector.extract_strided_slice %222 {offsets = [0, 256], sizes = [8, 128], strides = [1, 1]} : vector<8x384xf32> to vector<8x128xf32>
    %226 = vector.extract_strided_slice %214 {offsets = [0, 384], sizes = [8, 128], strides = [1, 1]} : vector<8x512xf32> to vector<8x128xf32>
    %227 = math.tanh %226 : vector<8x128xf32>
    %228 = arith.mulf %224, %186 : vector<8x128xf32>
    %229 = arith.mulf %223, %227 : vector<8x128xf32>
    %230 = arith.addf %228, %229 : vector<8x128xf32>
    %231 = math.tanh %230 : vector<8x128xf32>
    %232 = arith.mulf %225, %231 : vector<8x128xf32>
    %cst_61 = arith.constant dense<0.000000e+00> : vector<8x512xf32>
    %233 = tpu.matmul %232, %8, %cst_61 {dimension_numbers = #tpu.dot_dimension_numbers<[1], [0], [0], [1], [0, 0, 1, 1], [], []>} : vector<8x128xf32>, vector<128x512xf32>, vector<8x512xf32> -> vector<8x512xf32>
    %234 = arith.addf %233, %11 : vector<8x512xf32>
    %c40 = arith.constant 40 : index
    %c0_62 = arith.constant 0 : index
    %235 = vector.load %arg7[%c40, %c0_62] : memref<64x512xf32, #tpu.memory_space<vmem>>, vector<8x512xf32>
    %236 = arith.addf %235, %212 : vector<8x512xf32>
    %237 = vector.extract_strided_slice %236 {offsets = [0, 0], sizes = [8, 384], strides = [1, 1]} : vector<8x512xf32> to vector<8x384xf32>
    %cst_63 = arith.constant 5.000000e-01 : f32
    %238 = vector.broadcast %cst_63 : f32 to vector<8x384xf32>
    %239 = arith.mulf %238, %237 : vector<8x384xf32>
    %240 = math.tanh %239 : vector<8x384xf32>
    %cst_64 = arith.constant 5.000000e-01 : f32
    %241 = vector.broadcast %cst_64 : f32 to vector<8x384xf32>
    %242 = arith.mulf %241, %240 : vector<8x384xf32>
    %cst_65 = arith.constant 5.000000e-01 : f32
    %243 = vector.broadcast %cst_65 : f32 to vector<8x384xf32>
    %244 = arith.addf %242, %243 : vector<8x384xf32>
    %245 = vector.extract_strided_slice %244 {offsets = [0, 0], sizes = [8, 128], strides = [1, 1]} : vector<8x384xf32> to vector<8x128xf32>
    %246 = vector.extract_strided_slice %244 {offsets = [0, 128], sizes = [8, 128], strides = [1, 1]} : vector<8x384xf32> to vector<8x128xf32>
    %247 = vector.extract_strided_slice %244 {offsets = [0, 256], sizes = [8, 128], strides = [1, 1]} : vector<8x384xf32> to vector<8x128xf32>
    %248 = vector.extract_strided_slice %236 {offsets = [0, 384], sizes = [8, 128], strides = [1, 1]} : vector<8x512xf32> to vector<8x128xf32>
    %249 = math.tanh %248 : vector<8x128xf32>
    %250 = arith.mulf %246, %208 : vector<8x128xf32>
    %251 = arith.mulf %245, %249 : vector<8x128xf32>
    %252 = arith.addf %250, %251 : vector<8x128xf32>
    %253 = math.tanh %252 : vector<8x128xf32>
    %254 = arith.mulf %247, %253 : vector<8x128xf32>
    %cst_66 = arith.constant dense<0.000000e+00> : vector<8x1024xf32>
    %255 = tpu.matmul %254, %7, %cst_66 {dimension_numbers = #tpu.dot_dimension_numbers<[1], [0], [0], [1], [0, 0, 1, 1], [], []>} : vector<8x128xf32>, vector<128x1024xf32>, vector<8x1024xf32> -> vector<8x1024xf32>
    %256 = vector.extract_strided_slice %255 {offsets = [0, 0], sizes = [8, 512], strides = [1, 1]} : vector<8x1024xf32> to vector<8x512xf32>
    %257 = vector.extract_strided_slice %255 {offsets = [0, 512], sizes = [8, 512], strides = [1, 1]} : vector<8x1024xf32> to vector<8x512xf32>
    %258 = arith.addf %257, %234 : vector<8x512xf32>
    %259 = vector.extract_strided_slice %258 {offsets = [0, 0], sizes = [8, 384], strides = [1, 1]} : vector<8x512xf32> to vector<8x384xf32>
    %cst_67 = arith.constant 5.000000e-01 : f32
    %260 = vector.broadcast %cst_67 : f32 to vector<8x384xf32>
    %261 = arith.mulf %260, %259 : vector<8x384xf32>
    %262 = math.tanh %261 : vector<8x384xf32>
    %cst_68 = arith.constant 5.000000e-01 : f32
    %263 = vector.broadcast %cst_68 : f32 to vector<8x384xf32>
    %264 = arith.mulf %263, %262 : vector<8x384xf32>
    %cst_69 = arith.constant 5.000000e-01 : f32
    %265 = vector.broadcast %cst_69 : f32 to vector<8x384xf32>
    %266 = arith.addf %264, %265 : vector<8x384xf32>
    %267 = vector.extract_strided_slice %266 {offsets = [0, 0], sizes = [8, 128], strides = [1, 1]} : vector<8x384xf32> to vector<8x128xf32>
    %268 = vector.extract_strided_slice %266 {offsets = [0, 128], sizes = [8, 128], strides = [1, 1]} : vector<8x384xf32> to vector<8x128xf32>
    %269 = vector.extract_strided_slice %266 {offsets = [0, 256], sizes = [8, 128], strides = [1, 1]} : vector<8x384xf32> to vector<8x128xf32>
    %270 = vector.extract_strided_slice %258 {offsets = [0, 384], sizes = [8, 128], strides = [1, 1]} : vector<8x512xf32> to vector<8x128xf32>
    %271 = math.tanh %270 : vector<8x128xf32>
    %272 = arith.mulf %268, %230 : vector<8x128xf32>
    %273 = arith.mulf %267, %271 : vector<8x128xf32>
    %274 = arith.addf %272, %273 : vector<8x128xf32>
    %275 = math.tanh %274 : vector<8x128xf32>
    %276 = arith.mulf %269, %275 : vector<8x128xf32>
    %cst_70 = arith.constant dense<0.000000e+00> : vector<8x512xf32>
    %277 = tpu.matmul %276, %8, %cst_70 {dimension_numbers = #tpu.dot_dimension_numbers<[1], [0], [0], [1], [0, 0, 1, 1], [], []>} : vector<8x128xf32>, vector<128x512xf32>, vector<8x512xf32> -> vector<8x512xf32>
    %278 = arith.addf %277, %11 : vector<8x512xf32>
    %c48 = arith.constant 48 : index
    %c0_71 = arith.constant 0 : index
    %279 = vector.load %arg7[%c48, %c0_71] : memref<64x512xf32, #tpu.memory_space<vmem>>, vector<8x512xf32>
    %280 = arith.addf %279, %256 : vector<8x512xf32>
    %281 = vector.extract_strided_slice %280 {offsets = [0, 0], sizes = [8, 384], strides = [1, 1]} : vector<8x512xf32> to vector<8x384xf32>
    %cst_72 = arith.constant 5.000000e-01 : f32
    %282 = vector.broadcast %cst_72 : f32 to vector<8x384xf32>
    %283 = arith.mulf %282, %281 : vector<8x384xf32>
    %284 = math.tanh %283 : vector<8x384xf32>
    %cst_73 = arith.constant 5.000000e-01 : f32
    %285 = vector.broadcast %cst_73 : f32 to vector<8x384xf32>
    %286 = arith.mulf %285, %284 : vector<8x384xf32>
    %cst_74 = arith.constant 5.000000e-01 : f32
    %287 = vector.broadcast %cst_74 : f32 to vector<8x384xf32>
    %288 = arith.addf %286, %287 : vector<8x384xf32>
    %289 = vector.extract_strided_slice %288 {offsets = [0, 0], sizes = [8, 128], strides = [1, 1]} : vector<8x384xf32> to vector<8x128xf32>
    %290 = vector.extract_strided_slice %288 {offsets = [0, 128], sizes = [8, 128], strides = [1, 1]} : vector<8x384xf32> to vector<8x128xf32>
    %291 = vector.extract_strided_slice %288 {offsets = [0, 256], sizes = [8, 128], strides = [1, 1]} : vector<8x384xf32> to vector<8x128xf32>
    %292 = vector.extract_strided_slice %280 {offsets = [0, 384], sizes = [8, 128], strides = [1, 1]} : vector<8x512xf32> to vector<8x128xf32>
    %293 = math.tanh %292 : vector<8x128xf32>
    %294 = arith.mulf %290, %252 : vector<8x128xf32>
    %295 = arith.mulf %289, %293 : vector<8x128xf32>
    %296 = arith.addf %294, %295 : vector<8x128xf32>
    %297 = math.tanh %296 : vector<8x128xf32>
    %298 = arith.mulf %291, %297 : vector<8x128xf32>
    %cst_75 = arith.constant dense<0.000000e+00> : vector<8x1024xf32>
    %299 = tpu.matmul %298, %7, %cst_75 {dimension_numbers = #tpu.dot_dimension_numbers<[1], [0], [0], [1], [0, 0, 1, 1], [], []>} : vector<8x128xf32>, vector<128x1024xf32>, vector<8x1024xf32> -> vector<8x1024xf32>
    %300 = vector.extract_strided_slice %299 {offsets = [0, 0], sizes = [8, 512], strides = [1, 1]} : vector<8x1024xf32> to vector<8x512xf32>
    %301 = vector.extract_strided_slice %299 {offsets = [0, 512], sizes = [8, 512], strides = [1, 1]} : vector<8x1024xf32> to vector<8x512xf32>
    %302 = arith.addf %301, %278 : vector<8x512xf32>
    %303 = vector.extract_strided_slice %302 {offsets = [0, 0], sizes = [8, 384], strides = [1, 1]} : vector<8x512xf32> to vector<8x384xf32>
    %cst_76 = arith.constant 5.000000e-01 : f32
    %304 = vector.broadcast %cst_76 : f32 to vector<8x384xf32>
    %305 = arith.mulf %304, %303 : vector<8x384xf32>
    %306 = math.tanh %305 : vector<8x384xf32>
    %cst_77 = arith.constant 5.000000e-01 : f32
    %307 = vector.broadcast %cst_77 : f32 to vector<8x384xf32>
    %308 = arith.mulf %307, %306 : vector<8x384xf32>
    %cst_78 = arith.constant 5.000000e-01 : f32
    %309 = vector.broadcast %cst_78 : f32 to vector<8x384xf32>
    %310 = arith.addf %308, %309 : vector<8x384xf32>
    %311 = vector.extract_strided_slice %310 {offsets = [0, 0], sizes = [8, 128], strides = [1, 1]} : vector<8x384xf32> to vector<8x128xf32>
    %312 = vector.extract_strided_slice %310 {offsets = [0, 128], sizes = [8, 128], strides = [1, 1]} : vector<8x384xf32> to vector<8x128xf32>
    %313 = vector.extract_strided_slice %310 {offsets = [0, 256], sizes = [8, 128], strides = [1, 1]} : vector<8x384xf32> to vector<8x128xf32>
    %314 = vector.extract_strided_slice %302 {offsets = [0, 384], sizes = [8, 128], strides = [1, 1]} : vector<8x512xf32> to vector<8x128xf32>
    %315 = math.tanh %314 : vector<8x128xf32>
    %316 = arith.mulf %312, %274 : vector<8x128xf32>
    %317 = arith.mulf %311, %315 : vector<8x128xf32>
    %318 = arith.addf %316, %317 : vector<8x128xf32>
    %319 = math.tanh %318 : vector<8x128xf32>
    %320 = arith.mulf %313, %319 : vector<8x128xf32>
    %cst_79 = arith.constant dense<0.000000e+00> : vector<8x512xf32>
    %321 = tpu.matmul %320, %8, %cst_79 {dimension_numbers = #tpu.dot_dimension_numbers<[1], [0], [0], [1], [0, 0, 1, 1], [], []>} : vector<8x128xf32>, vector<128x512xf32>, vector<8x512xf32> -> vector<8x512xf32>
    %322 = arith.addf %321, %11 : vector<8x512xf32>
    %c56 = arith.constant 56 : index
    %c0_80 = arith.constant 0 : index
    %323 = vector.load %arg7[%c56, %c0_80] : memref<64x512xf32, #tpu.memory_space<vmem>>, vector<8x512xf32>
    %324 = arith.addf %323, %300 : vector<8x512xf32>
    %325 = vector.extract_strided_slice %324 {offsets = [0, 0], sizes = [8, 384], strides = [1, 1]} : vector<8x512xf32> to vector<8x384xf32>
    %cst_81 = arith.constant 5.000000e-01 : f32
    %326 = vector.broadcast %cst_81 : f32 to vector<8x384xf32>
    %327 = arith.mulf %326, %325 : vector<8x384xf32>
    %328 = math.tanh %327 : vector<8x384xf32>
    %cst_82 = arith.constant 5.000000e-01 : f32
    %329 = vector.broadcast %cst_82 : f32 to vector<8x384xf32>
    %330 = arith.mulf %329, %328 : vector<8x384xf32>
    %cst_83 = arith.constant 5.000000e-01 : f32
    %331 = vector.broadcast %cst_83 : f32 to vector<8x384xf32>
    %332 = arith.addf %330, %331 : vector<8x384xf32>
    %333 = vector.extract_strided_slice %332 {offsets = [0, 0], sizes = [8, 128], strides = [1, 1]} : vector<8x384xf32> to vector<8x128xf32>
    %334 = vector.extract_strided_slice %332 {offsets = [0, 128], sizes = [8, 128], strides = [1, 1]} : vector<8x384xf32> to vector<8x128xf32>
    %335 = vector.extract_strided_slice %332 {offsets = [0, 256], sizes = [8, 128], strides = [1, 1]} : vector<8x384xf32> to vector<8x128xf32>
    %336 = vector.extract_strided_slice %324 {offsets = [0, 384], sizes = [8, 128], strides = [1, 1]} : vector<8x512xf32> to vector<8x128xf32>
    %337 = math.tanh %336 : vector<8x128xf32>
    %338 = arith.mulf %334, %296 : vector<8x128xf32>
    %339 = arith.mulf %333, %337 : vector<8x128xf32>
    %340 = arith.addf %338, %339 : vector<8x128xf32>
    %341 = math.tanh %340 : vector<8x128xf32>
    %342 = arith.mulf %335, %341 : vector<8x128xf32>
    %cst_84 = arith.constant dense<0.000000e+00> : vector<8x1024xf32>
    %343 = tpu.matmul %342, %7, %cst_84 {dimension_numbers = #tpu.dot_dimension_numbers<[1], [0], [0], [1], [0, 0, 1, 1], [], []>} : vector<8x128xf32>, vector<128x1024xf32>, vector<8x1024xf32> -> vector<8x1024xf32>
    %344 = vector.extract_strided_slice %343 {offsets = [0, 512], sizes = [8, 512], strides = [1, 1]} : vector<8x1024xf32> to vector<8x512xf32>
    %345 = arith.addf %344, %322 : vector<8x512xf32>
    %346 = vector.extract_strided_slice %345 {offsets = [0, 0], sizes = [8, 384], strides = [1, 1]} : vector<8x512xf32> to vector<8x384xf32>
    %cst_85 = arith.constant 5.000000e-01 : f32
    %347 = vector.broadcast %cst_85 : f32 to vector<8x384xf32>
    %348 = arith.mulf %347, %346 : vector<8x384xf32>
    %349 = math.tanh %348 : vector<8x384xf32>
    %cst_86 = arith.constant 5.000000e-01 : f32
    %350 = vector.broadcast %cst_86 : f32 to vector<8x384xf32>
    %351 = arith.mulf %350, %349 : vector<8x384xf32>
    %cst_87 = arith.constant 5.000000e-01 : f32
    %352 = vector.broadcast %cst_87 : f32 to vector<8x384xf32>
    %353 = arith.addf %351, %352 : vector<8x384xf32>
    %354 = vector.extract_strided_slice %353 {offsets = [0, 0], sizes = [8, 128], strides = [1, 1]} : vector<8x384xf32> to vector<8x128xf32>
    %355 = vector.extract_strided_slice %353 {offsets = [0, 128], sizes = [8, 128], strides = [1, 1]} : vector<8x384xf32> to vector<8x128xf32>
    %356 = vector.extract_strided_slice %353 {offsets = [0, 256], sizes = [8, 128], strides = [1, 1]} : vector<8x384xf32> to vector<8x128xf32>
    %357 = vector.extract_strided_slice %345 {offsets = [0, 384], sizes = [8, 128], strides = [1, 1]} : vector<8x512xf32> to vector<8x128xf32>
    %358 = math.tanh %357 : vector<8x128xf32>
    %359 = arith.mulf %355, %318 : vector<8x128xf32>
    %360 = arith.mulf %354, %358 : vector<8x128xf32>
    %361 = arith.addf %359, %360 : vector<8x128xf32>
    %362 = math.tanh %361 : vector<8x128xf32>
    %363 = arith.mulf %356, %362 : vector<8x128xf32>
    %c0_88 = arith.constant 0 : index
    %c0_89 = arith.constant 0 : index
    %364 = vector.load %arg6[%c0_88, %c0_89] : memref<8x128xf32, #tpu.memory_space<vmem>>, vector<8x128xf32>
    tpu.vector_store %arg6[%c0_88, %c0_89], %363 {strides = array<i32>} : memref<8x128xf32, #tpu.memory_space<vmem>>, vector<8x128xf32>,
    return
  }
}

</mosaic_0001>

<llo_original>
// kernel: tpu_custom_call.1
$region0: #{tpu_custom_call.1}
  #allocation0 [shape = 'u32[]', space=smem, size = 0x4, offset = 0x4, fixed_abs, tag = 'smem constant byte address 0x4 - core index']
  #allocation1 [shape = 'u32[144,128]{1,0:T(1,128)}', space=vmem, size = 0x12000, scoped, tag = 'internal scratch']
  #allocation2 [shape = 'f32[64,512]{1,0:T(8,128)}', space=vmem, size = 0x20000, scoped, tag = 'scratch operand']
  %s0 = inlined_call_operand.hbm [shape: f32[64,64], index: 0, kind: input, shape index: {}]
  %s1 = inlined_call_operand.hbm [shape: f32[64,512], index: 1, kind: input, shape index: {}]
  %s2 = inlined_call_operand.hbm [shape: f32[128,1024], index: 2, kind: input, shape index: {}]
  %s3 = inlined_call_operand.hbm [shape: f32[128,512], index: 3, kind: input, shape index: {}]
  %s4 = inlined_call_operand.vmem [shape: f32[1,512], index: 4, kind: input, shape index: {}]
  %s5 = inlined_call_operand.vmem [shape: f32[1,512], index: 5, kind: input, shape index: {}]
  %s6 = inlined_call_operand.hbm [shape: f32[8,128], index: 6, kind: output, shape index: {}]
  %s7 = sld [smem:[#allocation0]]
  $region50: #{tpu_custom_call.1} parent=0
    _
  %s9 = ssub.s32 1, %s7
  %s10 = scalar_select 0, %s9, %s7
  $region1: #{tpu_custom_call.1} parent=0
    #allocation3 [shape = 'u8[32768]{0}', space=vmem, size = 0x8000, scoped, tag = 'input window, operand 0, single buffered']
    #allocation4 [shape = 's32[1]{0}', space=sflag, size = 0x4, scoped, tag = 'scoped memory for tpu_custom_call.1']
    #allocation5 [shape = 's32[1]{0}', space=sflag, size = 0x4, scoped, tag = 'scoped memory for tpu_custom_call.1']
    #allocation6 [shape = 'u8[131072]{0}', space=vmem, size = 0x20000, scoped, tag = 'input window, operand 1, single buffered']
    #allocation7 [shape = 's32[1]{0}', space=sflag, size = 0x4, scoped, tag = 'scoped memory for tpu_custom_call.1']
    #allocation8 [shape = 'u8[524288]{0}', space=vmem, size = 0x80000, scoped, tag = 'input window, operand 2, single buffered']
    #allocation9 [shape = 'u8[262144]{0}', space=vmem, size = 0x40000, scoped, tag = 'input window, operand 3, single buffered']
    #allocation10 [shape = 's32[1]{0}', space=sflag, size = 0x4, scoped, tag = 'scoped memory for tpu_custom_call.1']
    #allocation11 [shape = 'u8[4096]{0}', space=vmem, size = 0x1000, scoped, tag = 'output window, operand 0, single buffered']
    %11 = vsyncpa [#allocation4], 0
    %12 = vsyncpa [#allocation7], 0
    %13 = vsyncpa [#allocation10], 0
    %14 = vsyncpa [#allocation5], 0
    // Predicated region
    $region2: #{tpu_custom_call.1} parent=1 // pred_check
      _
    $region3: #{tpu_custom_call.1} parent=1 // pred_check_branch
      %16 = sbr.rel (0) target = $region5
    $region4: #{tpu_custom_call.1} parent=1 // pred_region
      %s18 = ssub.s32 1024, 1024
      %19 = vsyncadd [#allocation4], %s18
      %s20 = sshll.u32 [#allocation3], 4
      %s21 = int_to_ptr.vmem [resolvable:$true] %s20
      %26 = dma.hbm_to_vmem [thread:$0]  %s0, 1024, %s21, [#allocation4], 128, 128, 8
    $region5: #{tpu_custom_call.1} parent=1 // pred_fallthru
      _
    // Predicated region
    $region6: #{tpu_custom_call.1} parent=1 // pred_check
      _
    $region7: #{tpu_custom_call.1} parent=1 // pred_check_branch
      %28 = sbr.rel (0) target = $region9
    $region8: #{tpu_custom_call.1} parent=1 // pred_region
      %s30 = ssub.s32 4096, 4096
      %31 = vsyncadd [#allocation7], %s30
      %s32 = sshll.u32 [#allocation6], 4
      %s33 = int_to_ptr.vmem [resolvable:$true] %s32
      %38 = dma.hbm_to_vmem [thread:$0]  %s1, 4096, %s33, [#allocation7], 512, 512, 32
    $region9: #{tpu_custom_call.1} parent=1 // pred_fallthru
      _
    // Predicated region
    $region10: #{tpu_custom_call.1} parent=1 // pred_check
      _
    $region11: #{tpu_custom_call.1} parent=1 // pred_check_branch
      %40 = sbr.rel (0) target = $region13
    $region12: #{tpu_custom_call.1} parent=1 // pred_region
      %s42 = ssub.s32 16384, 16384
      %43 = vsyncadd [#allocation7], %s42
      %s44 = sshll.u32 [#allocation8], 4
      %s45 = int_to_ptr.vmem [resolvable:$true] %s44
      %50 = dma.hbm_to_vmem [thread:$0]  %s2, 16384, %s45, [#allocation7], 1024, 1024, 64
    $region13: #{tpu_custom_call.1} parent=1 // pred_fallthru
      _
    // Predicated region
    $region14: #{tpu_custom_call.1} parent=1 // pred_check
      _
    $region15: #{tpu_custom_call.1} parent=1 // pred_check_branch
      %52 = sbr.rel (0) target = $region17
    $region16: #{tpu_custom_call.1} parent=1 // pred_region
      %s54 = ssub.s32 8192, 8192
      %55 = vsyncadd [#allocation10], %s54
      %s56 = sshll.u32 [#allocation9], 4
      %s57 = int_to_ptr.vmem [resolvable:$true] %s56
      %62 = dma.hbm_to_vmem [thread:$0]  %s3, 8192, %s57, [#allocation10], 512, 512, 32
    $region17: #{tpu_custom_call.1} parent=1 // pred_fallthru
      _
    // Predicated region
    $region18: #{tpu_custom_call.1} parent=1 // pred_check
      _
    $region19: #{tpu_custom_call.1} parent=1 // pred_check_branch
      %64 = sbr.rel (0) target = $region21
    $region20: #{tpu_custom_call.1} parent=1 // pred_region
      _
    $region21: #{tpu_custom_call.1} parent=1 // pred_fallthru
      _
    // Predicated region
    $region22: #{tpu_custom_call.1} parent=1 // pred_check
      _
    $region23: #{tpu_custom_call.1} parent=1 // pred_check_branch
      %66 = sbr.rel (0) target = $region25
    $region24: #{tpu_custom_call.1} parent=1 // pred_region
      _
    $region25: #{tpu_custom_call.1} parent=1 // pred_fallthru
      _
    // Predicated region
    $region26: #{tpu_custom_call.1} parent=1 // pred_check
      _
    $region27: #{tpu_custom_call.1} parent=1 // pred_check_branch
      %68 = sbr.rel (0) target = $region29
    $region28: #{tpu_custom_call.1} parent=1 // pred_region
      %69 = dma.done [#allocation4], 1024
    $region29: #{tpu_custom_call.1} parent=1 // pred_fallthru
      _
    // Predicated region
    $region30: #{tpu_custom_call.1} parent=1 // pred_check
      _
    $region31: #{tpu_custom_call.1} parent=1 // pred_check_branch
      %71 = sbr.rel (0) target = $region33
    $region32: #{tpu_custom_call.1} parent=1 // pred_region
      %72 = dma.done [#allocation7], 4096
    $region33: #{tpu_custom_call.1} parent=1 // pred_fallthru
      _
    // Predicated region
    $region34: #{tpu_custom_call.1} parent=1 // pred_check
      _
    $region35: #{tpu_custom_call.1} parent=1 // pred_check_branch
      %74 = sbr.rel (0) target = $region37
    $region36: #{tpu_custom_call.1} parent=1 // pred_region
      %75 = dma.done [#allocation7], 16384
    $region37: #{tpu_custom_call.1} parent=1 // pred_fallthru
      _
    // Predicated region
    $region38: #{tpu_custom_call.1} parent=1 // pred_check
      _
    $region39: #{tpu_custom_call.1} parent=1 // pred_check_branch
      %77 = sbr.rel (0) target = $region41
    $region40: #{tpu_custom_call.1} parent=1 // pred_region
      %78 = dma.done [#allocation10], 8192
    $region41: #{tpu_custom_call.1} parent=1 // pred_fallthru
      _
    %v79 = vld [vmem:[#allocation3] sm:$0xff]
    %v80 = vld [vmem:[#allocation3 + $0x8] sm:$0xff]
    %v81 = vld [vmem:[#allocation3 + $0x10] sm:$0xff]
    %v82 = vld [vmem:[#allocation3 + $0x18] sm:$0xff]
    %v83 = vld [vmem:[#allocation3 + $0x20] sm:$0xff]
    %v84 = vld [vmem:[#allocation3 + $0x28] sm:$0xff]
    %v85 = vld [vmem:[#allocation3 + $0x30] sm:$0xff]
    %v86 = vld [vmem:[#allocation3 + $0x38] sm:$0xff]
    %v87 = vld [vmem:[#allocation6] sm:$0xff]
    %v88 = vld [vmem:[#allocation6 + $0x8] sm:$0xff]
    %v89 = vld [vmem:[#allocation6 + $0x10] sm:$0xff]
    %v90 = vld [vmem:[#allocation6 + $0x18] sm:$0xff]
    %v91 = vld [vmem:[#allocation6 + $0x20] sm:$0xff]
    %v92 = vld [vmem:[#allocation6 + $0x28] sm:$0xff]
    %v93 = vld [vmem:[#allocation6 + $0x30] sm:$0xff]
    %v94 = vld [vmem:[#allocation6 + $0x38] sm:$0xff]
    %v95 = vld [vmem:[#allocation6 + $0x40] sm:$0xff]
    %v96 = vld [vmem:[#allocation6 + $0x48] sm:$0xff]
    %v97 = vld [vmem:[#allocation6 + $0x50] sm:$0xff]
    %v98 = vld [vmem:[#allocation6 + $0x58] sm:$0xff]
    %v99 = vld [vmem:[#allocation6 + $0x60] sm:$0xff]
    %v100 = vld [vmem:[#allocation6 + $0x68] sm:$0xff]
    %v101 = vld [vmem:[#allocation6 + $0x70] sm:$0xff]
    %v102 = vld [vmem:[#allocation6 + $0x78] sm:$0xff]
    %v103 = vld [vmem:[#allocation6 + $0x80] sm:$0xff]
    %v104 = vld [vmem:[#allocation6 + $0x88] sm:$0xff]
    %v105 = vld [vmem:[#allocation6 + $0x90] sm:$0xff]
    %v106 = vld [vmem:[#allocation6 + $0x98] sm:$0xff]
    %v107 = vld [vmem:[#allocation6 + $0xa0] sm:$0xff]
    %v108 = vld [vmem:[#allocation6 + $0xa8] sm:$0xff]
    %v109 = vld [vmem:[#allocation6 + $0xb0] sm:$0xff]
    %v110 = vld [vmem:[#allocation6 + $0xb8] sm:$0xff]
    %v111 = vld [vmem:[#allocation6 + $0xc0] sm:$0xff]
    %v112 = vld [vmem:[#allocation6 + $0xc8] sm:$0xff]
    %v113 = vld [vmem:[#allocation6 + $0xd0] sm:$0xff]
    %v114 = vld [vmem:[#allocation6 + $0xd8] sm:$0xff]
    %v115 = vld [vmem:[#allocation6 + $0xe0] sm:$0xff]
    %v116 = vld [vmem:[#allocation6 + $0xe8] sm:$0xff]
    %v117 = vld [vmem:[#allocation6 + $0xf0] sm:$0xff]
    %v118 = vld [vmem:[#allocation6 + $0xf8] sm:$0xff]
    %v119 = vld [vmem:[%s4] sm:$0xf]
    %v121 = vlaneseq
    %v122 = vshrl.u32 %v121, 7
    %v123 = vsub.s32 0, %v122
    %v124 = vrot.slane %v119, %v123
    %v125 = vlaneseq
    %v126 = vshrl.u32 %v125, 7
    %v127 = vsub.s32 1, %v126
    %v128 = vrot.slane %v119, %v127
    %v129 = vlaneseq
    %v130 = vshrl.u32 %v129, 7
    %v131 = vsub.s32 2, %v130
    %v132 = vrot.slane %v119, %v131
    %v133 = vlaneseq
    %v134 = vshrl.u32 %v133, 7
    %v135 = vsub.s32 3, %v134
    %v136 = vrot.slane %v119, %v135
    %vm141 = vcmask 523264
    %v143 = vsel %vm141, %v79, 0
    %v146 = vsel %vm141, %v80, 0
    %v149 = vsel %vm141, %v81, 0
    %v152 = vsel %vm141, %v82, 0
    %v155 = vsel %vm141, %v83, 0
    %v158 = vsel %vm141, %v84, 0
    %v161 = vsel %vm141, %v85, 0
    %v164 = vsel %vm141, %v86, 0
    %166 = vmatprep.subr.mxu0 0.0
    %167 = vmatpush1.msra.mxu0 0.0
    %168 = vmatprep.subr.mxu0 0.0
    %169 = vmatpush1.msra.mxu0 0.0
    %170 = vmatprep.subr.mxu0 0.0
    %171 = vmatpush1.msra.mxu0 0.0
    %172 = vmatprep.subr.mxu0 0.0
    %173 = vmatpush1.msra.mxu0 0.0
    %174 = vmatprep.subr.mxu0 0.0
    %175 = vmatpush1.msra.mxu0 0.0
    %176 = vmatprep.subr.mxu0 0.0
    %177 = vmatpush1.msra.mxu0 0.0
    %178 = vmatprep.subr.mxu0 0.0
    %179 = vmatpush1.msra.mxu0 0.0
    %180 = vmatprep.subr.mxu0 0.0
    %181 = vmatpush1.msra.mxu0 0.0
    %182 = vmatprep.subr.mxu0 %v116
    %183 = vmatpush1.msra.mxu0 %v115
    %184 = vmatprep.subr.mxu0 %v112
    %185 = vmatpush1.msra.mxu0 %v111
    %186 = vmatprep.subr.mxu0 %v108
    %187 = vmatpush1.msra.mxu0 %v107
    %188 = vmatprep.subr.mxu0 %v104
    %189 = vmatpush1.msra.mxu0 %v103
    %190 = vmatprep.subr.mxu0 %v100
    %191 = vmatpush1.msra.mxu0 %v99
    %192 = vmatprep.subr.mxu0 %v96
    %193 = vmatpush1.msra.mxu0 %v95
    %194 = vmatprep.subr.mxu0 %v92
    %195 = vmatpush1.msra.mxu0 %v91
    %196 = vmatprep.subr.mxu0 %v88
    %197 = vmatpush1.msra.mxu0 %v87
    %198 = vmatprep.subr.mxu0 0.0
    %199 = vmatpush2.msra.mxu0 0.0
    %200 = vmatprep.subr.mxu0 0.0
    %201 = vmatpush2.msra.mxu0 0.0
    %202 = vmatprep.subr.mxu0 0.0
    %203 = vmatpush2.msra.mxu0 0.0
    %204 = vmatprep.subr.mxu0 0.0
    %205 = vmatpush2.msra.mxu0 0.0
    %206 = vmatprep.subr.mxu0 0.0
    %207 = vmatpush2.msra.mxu0 0.0
    %208 = vmatprep.subr.mxu0 0.0
    %209 = vmatpush2.msra.mxu0 0.0
    %210 = vmatprep.subr.mxu0 0.0
    %211 = vmatpush2.msra.mxu0 0.0
    %212 = vmatprep.subr.mxu0 0.0
    %213 = vmatpush2.msra.mxu0 0.0
    %214 = vmatprep.subr.mxu0 0.0
    %215 = vmatpush2.msra.mxu0 0.0
    %216 = vmatprep.subr.mxu0 0.0
    %217 = vmatpush2.msra.mxu0 0.0
    %218 = vmatprep.subr.mxu0 0.0
    %219 = vmatpush2.msra.mxu0 0.0
    %220 = vmatprep.subr.mxu0 0.0
    %221 = vmatpush2.msra.mxu0 0.0
    %222 = vmatprep.subr.mxu0 0.0
    %223 = vmatpush2.msra.mxu0 0.0
    %224 = vmatprep.subr.mxu0 0.0
    %225 = vmatpush2.msra.mxu0 0.0
    %226 = vmatprep.subr.mxu0 0.0
    %227 = vmatpush2.msra.mxu0 0.0
    %228 = vmatprep.subr.mxu0 0.0
    %229 = vmatpush2.msra.mxu0 0.0
    %230 = vmatprep.mubr.f32.mxu0 0.0
    %231 = vmatmul.mubr.f32.gmra.mxu0 %v143
    %v232 = vpop.f32.mrf.mxu0
    %v233 = vadd.f32 %v124, %v232
    %v234 = vpop.f32.mrf.mxu0
    %v235 = vadd.f32 %v128, %v234
    %236 = vmatprep.mubr.f32.mxu0 0.0
    %237 = vmatmul.mubr.f32.gmra.mxu0 %v146
    %v238 = vpop.f32.mrf.mxu0
    %v239 = vadd.f32 %v124, %v238
    %v240 = vpop.f32.mrf.mxu0
    %v241 = vadd.f32 %v128, %v240
    %242 = vmatprep.mubr.f32.mxu0 0.0
    %243 = vmatmul.mubr.f32.gmra.mxu0 %v149
    %v244 = vpop.f32.mrf.mxu0
    %v245 = vadd.f32 %v124, %v244
    %v246 = vpop.f32.mrf.mxu0
    %v247 = vadd.f32 %v128, %v246
    %248 = vmatprep.mubr.f32.mxu0 0.0
    %249 = vmatmul.mubr.f32.gmra.mxu0 %v152
    %v250 = vpop.f32.mrf.mxu0
    %v251 = vadd.f32 %v124, %v250
    %v252 = vpop.f32.mrf.mxu0
    %v253 = vadd.f32 %v128, %v252
    %254 = vmatprep.mubr.f32.mxu0 0.0
    %255 = vmatmul.mubr.f32.gmra.mxu0 %v155
    %v256 = vpop.f32.mrf.mxu0
    %v257 = vadd.f32 %v124, %v256
    %v258 = vpop.f32.mrf.mxu0
    %v259 = vadd.f32 %v128, %v258
    %260 = vmatprep.mubr.f32.mxu0 0.0
    %261 = vmatmul.mubr.f32.gmra.mxu0 %v158
    %v262 = vpop.f32.mrf.mxu0
    %v263 = vadd.f32 %v124, %v262
    %v264 = vpop.f32.mrf.mxu0
    %v265 = vadd.f32 %v128, %v264
    %266 = vmatprep.mubr.f32.mxu0 0.0
    %267 = vmatmul.mubr.f32.gmra.mxu0 %v161
    %v268 = vpop.f32.mrf.mxu0
    %v269 = vadd.f32 %v124, %v268
    %v270 = vpop.f32.mrf.mxu0
    %v271 = vadd.f32 %v128, %v270
    %272 = vmatprep.mubr.f32.mxu0 0.0
    %273 = vmatmul.mubr.f32.gmra.mxu0 %v164
    %v274 = vpop.f32.mrf.mxu0
    %v275 = vadd.f32 %v124, %v274
    %v276 = vpop.f32.mrf.mxu0
    %v277 = vadd.f32 %v128, %v276
    %278 = vdwg.mxu0
    %279 = vmatprep.subr.mxu0 0.0
    %280 = vmatpush1.msra.mxu0 0.0
    %281 = vmatprep.subr.mxu0 0.0
    %282 = vmatpush1.msra.mxu0 0.0
    %283 = vmatprep.subr.mxu0 0.0
    %284 = vmatpush1.msra.mxu0 0.0
    %285 = vmatprep.subr.mxu0 0.0
    %286 = vmatpush1.msra.mxu0 0.0
    %287 = vmatprep.subr.mxu0 0.0
    %288 = vmatpush1.msra.mxu0 0.0
    %289 = vmatprep.subr.mxu0 0.0
    %290 = vmatpush1.msra.mxu0 0.0
    %291 = vmatprep.subr.mxu0 0.0
    %292 = vmatpush1.msra.mxu0 0.0
    %293 = vmatprep.subr.mxu0 0.0
    %294 = vmatpush1.msra.mxu0 0.0
    %295 = vmatprep.subr.mxu0 %v118
    %296 = vmatpush1.msra.mxu0 %v117
    %297 = vmatprep.subr.mxu0 %v114
    %298 = vmatpush1.msra.mxu0 %v113
    %299 = vmatprep.subr.mxu0 %v110
    %300 = vmatpush1.msra.mxu0 %v109
    %301 = vmatprep.subr.mxu0 %v106
    %302 = vmatpush1.msra.mxu0 %v105
    %303 = vmatprep.subr.mxu0 %v102
    %304 = vmatpush1.msra.mxu0 %v101
    %305 = vmatprep.subr.mxu0 %v98
    %306 = vmatpush1.msra.mxu0 %v97
    %307 = vmatprep.subr.mxu0 %v94
    %308 = vmatpush1.msra.mxu0 %v93
    %309 = vmatprep.subr.mxu0 %v90
    %310 = vmatpush1.msra.mxu0 %v89
    %311 = vmatprep.subr.mxu0 0.0
    %312 = vmatpush2.msra.mxu0 0.0
    %313 = vmatprep.subr.mxu0 0.0
    %314 = vmatpush2.msra.mxu0 0.0
    %315 = vmatprep.subr.mxu0 0.0
    %316 = vmatpush2.msra.mxu0 0.0
    %317 = vmatprep.subr.mxu0 0.0
    %318 = vmatpush2.msra.mxu0 0.0
    %319 = vmatprep.subr.mxu0 0.0
    %320 = vmatpush2.msra.mxu0 0.0
    %321 = vmatprep.subr.mxu0 0.0
    %322 = vmatpush2.msra.mxu0 0.0
    %323 = vmatprep.subr.mxu0 0.0
    %324 = vmatpush2.msra.mxu0 0.0
    %325 = vmatprep.subr.mxu0 0.0
    %326 = vmatpush2.msra.mxu0 0.0
    %327 = vmatprep.subr.mxu0 0.0
    %328 = vmatpush2.msra.mxu0 0.0
    %329 = vmatprep.subr.mxu0 0.0
    %330 = vmatpush2.msra.mxu0 0.0
    %331 = vmatprep.subr.mxu0 0.0
    %332 = vmatpush2.msra.mxu0 0.0
    %333 = vmatprep.subr.mxu0 0.0
    %334 = vmatpush2.msra.mxu0 0.0
    %335 = vmatprep.subr.mxu0 0.0
    %336 = vmatpush2.msra.mxu0 0.0
    %337 = vmatprep.subr.mxu0 0.0
    %338 = vmatpush2.msra.mxu0 0.0
    %339 = vmatprep.subr.mxu0 0.0
    %340 = vmatpush2.msra.mxu0 0.0
    %341 = vmatprep.subr.mxu0 0.0
    %342 = vmatpush2.msra.mxu0 0.0
    %343 = vmatprep.mubr.f32.mxu0 0.0
    %344 = vmatmul.mubr.f32.gmra.mxu0 %v143
    %v345 = vpop.f32.mrf.mxu0
    %v346 = vadd.f32 %v132, %v345
    %v347 = vpop.f32.mrf.mxu0
    %v348 = vadd.f32 %v136, %v347
    %349 = vmatprep.mubr.f32.mxu0 0.0
    %350 = vmatmul.mubr.f32.gmra.mxu0 %v146
    %v351 = vpop.f32.mrf.mxu0
    %v352 = vadd.f32 %v132, %v351
    %v353 = vpop.f32.mrf.mxu0
    %v354 = vadd.f32 %v136, %v353
    %355 = vmatprep.mubr.f32.mxu0 0.0
    %356 = vmatmul.mubr.f32.gmra.mxu0 %v149
    %v357 = vpop.f32.mrf.mxu0
    %v358 = vadd.f32 %v132, %v357
    %v359 = vpop.f32.mrf.mxu0
    %v360 = vadd.f32 %v136, %v359
    %361 = vmatprep.mubr.f32.mxu0 0.0
    %362 = vmatmul.mubr.f32.gmra.mxu0 %v152
    %v363 = vpop.f32.mrf.mxu0
    %v364 = vadd.f32 %v132, %v363
    %v365 = vpop.f32.mrf.mxu0
    %v366 = vadd.f32 %v136, %v365
    %367 = vmatprep.mubr.f32.mxu0 0.0
    %368 = vmatmul.mubr.f32.gmra.mxu0 %v155
    %v369 = vpop.f32.mrf.mxu0
    %v370 = vadd.f32 %v132, %v369
    %v371 = vpop.f32.mrf.mxu0
    %v372 = vadd.f32 %v136, %v371
    %373 = vmatprep.mubr.f32.mxu0 0.0
    %374 = vmatmul.mubr.f32.gmra.mxu0 %v158
    %v375 = vpop.f32.mrf.mxu0
    %v376 = vadd.f32 %v132, %v375
    %v377 = vpop.f32.mrf.mxu0
    %v378 = vadd.f32 %v136, %v377
    %379 = vmatprep.mubr.f32.mxu0 0.0
    %380 = vmatmul.mubr.f32.gmra.mxu0 %v161
    %v381 = vpop.f32.mrf.mxu0
    %v382 = vadd.f32 %v132, %v381
    %v383 = vpop.f32.mrf.mxu0
    %v384 = vadd.f32 %v136, %v383
    %385 = vmatprep.mubr.f32.mxu0 0.0
    %386 = vmatmul.mubr.f32.gmra.mxu0 %v164
    %v387 = vpop.f32.mrf.mxu0
    %v388 = vadd.f32 %v132, %v387
    %v389 = vpop.f32.mrf.mxu0
    %v390 = vadd.f32 %v136, %v389
    %391 = vdwg.mxu0
    %392 = vst [vmem:[#allocation2] sm:$0xff] %v233
    %393 = vst [vmem:[#allocation2 + $0x8] sm:$0xff] %v235
    %394 = vst [vmem:[#allocation2 + $0x10] sm:$0xff] %v346
    %395 = vst [vmem:[#allocation2 + $0x18] sm:$0xff] %v348
    %396 = vst [vmem:[#allocation2 + $0x20] sm:$0xff] %v239
    %397 = vst [vmem:[#allocation2 + $0x28] sm:$0xff] %v241
    %398 = vst [vmem:[#allocation2 + $0x30] sm:$0xff] %v352
    %399 = vst [vmem:[#allocation2 + $0x38] sm:$0xff] %v354
    %400 = vst [vmem:[#allocation2 + $0x40] sm:$0xff] %v245
    %401 = vst [vmem:[#allocation2 + $0x48] sm:$0xff] %v247
    %402 = vst [vmem:[#allocation2 + $0x50] sm:$0xff] %v358
    %403 = vst [vmem:[#allocation2 + $0x58] sm:$0xff] %v360
    %404 = vst [vmem:[#allocation2 + $0x60] sm:$0xff] %v251
    %405 = vst [vmem:[#allocation2 + $0x68] sm:$0xff] %v253
    %406 = vst [vmem:[#allocation2 + $0x70] sm:$0xff] %v364
    %407 = vst [vmem:[#allocation2 + $0x78] sm:$0xff] %v366
    %408 = vst [vmem:[#allocation2 + $0x80] sm:$0xff] %v257
    %409 = vst [vmem:[#allocation2 + $0x88] sm:$0xff] %v259
    %410 = vst [vmem:[#allocation2 + $0x90] sm:$0xff] %v370
    %411 = vst [vmem:[#allocation2 + $0x98] sm:$0xff] %v372
    %412 = vst [vmem:[#allocation2 + $0xa0] sm:$0xff] %v263
    %413 = vst [vmem:[#allocation2 + $0xa8] sm:$0xff] %v265
    %414 = vst [vmem:[#allocation2 + $0xb0] sm:$0xff] %v376
    %415 = vst [vmem:[#allocation2 + $0xb8] sm:$0xff] %v378
    %416 = vst [vmem:[#allocation2 + $0xc0] sm:$0xff] %v269
    %417 = vst [vmem:[#allocation2 + $0xc8] sm:$0xff] %v271
    %418 = vst [vmem:[#allocation2 + $0xd0] sm:$0xff] %v382
    %419 = vst [vmem:[#allocation2 + $0xd8] sm:$0xff] %v384
    %420 = vst [vmem:[#allocation2 + $0xe0] sm:$0xff] %v275
    %421 = vst [vmem:[#allocation2 + $0xe8] sm:$0xff] %v277
    %422 = vst [vmem:[#allocation2 + $0xf0] sm:$0xff] %v388
    %423 = vst [vmem:[#allocation2 + $0xf8] sm:$0xff] %v390
    %v424 = vld [vmem:[#allocation8] sm:$0xff]
    %v425 = vld [vmem:[#allocation8 + $0x8] sm:$0xff]
    %v426 = vld [vmem:[#allocation8 + $0x10] sm:$0xff]
    %v427 = vld [vmem:[#allocation8 + $0x18] sm:$0xff]
    %v428 = vld [vmem:[#allocation8 + $0x20] sm:$0xff]
    %v429 = vld [vmem:[#allocation8 + $0x28] sm:$0xff]
    %v430 = vld [vmem:[#allocation8 + $0x30] sm:$0xff]
    %v431 = vld [vmem:[#allocation8 + $0x38] sm:$0xff]
    %v432 = vld [vmem:[#allocation8 + $0x40] sm:$0xff]
    %v433 = vld [vmem:[#allocation8 + $0x48] sm:$0xff]
    %v434 = vld [vmem:[#allocation8 + $0x50] sm:$0xff]
    %v435 = vld [vmem:[#allocation8 + $0x58] sm:$0xff]
    %v436 = vld [vmem:[#allocation8 + $0x60] sm:$0xff]
    %v437 = vld [vmem:[#allocation8 + $0x68] sm:$0xff]
    %v438 = vld [vmem:[#allocation8 + $0x70] sm:$0xff]
    %v439 = vld [vmem:[#allocation8 + $0x78] sm:$0xff]
    %v440 = vld [vmem:[#allocation8 + $0x80] sm:$0xff]
    %v441 = vld [vmem:[#allocation8 + $0x88] sm:$0xff]
    %v442 = vld [vmem:[#allocation8 + $0x90] sm:$0xff]
    %v443 = vld [vmem:[#allocation8 + $0x98] sm:$0xff]
    %v444 = vld [vmem:[#allocation8 + $0xa0] sm:$0xff]
    %v445 = vld [vmem:[#allocation8 + $0xa8] sm:$0xff]
    %v446 = vld [vmem:[#allocation8 + $0xb0] sm:$0xff]
    %v447 = vld [vmem:[#allocation8 + $0xb8] sm:$0xff]
    %v448 = vld [vmem:[#allocation8 + $0xc0] sm:$0xff]
    %v449 = vld [vmem:[#allocation8 + $0xc8] sm:$0xff]
    %v450 = vld [vmem:[#allocation8 + $0xd0] sm:$0xff]
    %v451 = vld [vmem:[#allocation8 + $0xd8] sm:$0xff]
    %v452 = vld [vmem:[#allocation8 + $0xe0] sm:$0xff]
    %v453 = vld [vmem:[#allocation8 + $0xe8] sm:$0xff]
    %v454 = vld [vmem:[#allocation8 + $0xf0] sm:$0xff]
    %v455 = vld [vmem:[#allocation8 + $0xf8] sm:$0xff]
    %v456 = vld [vmem:[#allocation8 + $0x100] sm:$0xff]
    %v457 = vld [vmem:[#allocation8 + $0x108] sm:$0xff]
    %v458 = vld [vmem:[#allocation8 + $0x110] sm:$0xff]
    %v459 = vld [vmem:[#allocation8 + $0x118] sm:$0xff]
    %v460 = vld [vmem:[#allocation8 + $0x120] sm:$0xff]
    %v461 = vld [vmem:[#allocation8 + $0x128] sm:$0xff]
    %v462 = vld [vmem:[#allocation8 + $0x130] sm:$0xff]
    %v463 = vld [vmem:[#allocation8 + $0x138] sm:$0xff]
    %v464 = vld [vmem:[#allocation8 + $0x140] sm:$0xff]
    %v465 = vld [vmem:[#allocation8 + $0x148] sm:$0xff]
    %v466 = vld [vmem:[#allocation8 + $0x150] sm:$0xff]
    %v467 = vld [vmem:[#allocation8 + $0x158] sm:$0xff]
    %v468 = vld [vmem:[#allocation8 + $0x160] sm:$0xff]
    %v469 = vld [vmem:[#allocation8 + $0x168] sm:$0xff]
    %v470 = vld [vmem:[#allocation8 + $0x170] sm:$0xff]
    %v471 = vld [vmem:[#allocation8 + $0x178] sm:$0xff]
    %v472 = vld [vmem:[#allocation8 + $0x180] sm:$0xff]
    %v473 = vld [vmem:[#allocation8 + $0x188] sm:$0xff]
    %v474 = vld [vmem:[#allocation8 + $0x190] sm:$0xff]
    %v475 = vld [vmem:[#allocation8 + $0x198] sm:$0xff]
    %v476 = vld [vmem:[#allocation8 + $0x1a0] sm:$0xff]
    %v477 = vld [vmem:[#allocation8 + $0x1a8] sm:$0xff]
    %v478 = vld [vmem:[#allocation8 + $0x1b0] sm:$0xff]
    %v479 = vld [vmem:[#allocation8 + $0x1b8] sm:$0xff]
    %v480 = vld [vmem:[#allocation8 + $0x1c0] sm:$0xff]
    %v481 = vld [vmem:[#allocation8 + $0x1c8] sm:$0xff]
    %v482 = vld [vmem:[#allocation8 + $0x1d0] sm:$0xff]
    %v483 = vld [vmem:[#allocation8 + $0x1d8] sm:$0xff]
    %v484 = vld [vmem:[#allocation8 + $0x1e0] sm:$0xff]
    %v485 = vld [vmem:[#allocation8 + $0x1e8] sm:$0xff]
    %v486 = vld [vmem:[#allocation8 + $0x1f0] sm:$0xff]
    %v487 = vld [vmem:[#allocation8 + $0x1f8] sm:$0xff]
    %v488 = vld [vmem:[#allocation8 + $0x200] sm:$0xff]
    %v489 = vld [vmem:[#allocation8 + $0x208] sm:$0xff]
    %v490 = vld [vmem:[#allocation8 + $0x210] sm:$0xff]
    %v491 = vld [vmem:[#allocation8 + $0x218] sm:$0xff]
    %v492 = vld [vmem:[#allocation8 + $0x220] sm:$0xff]
    %v493 = vld [vmem:[#allocation8 + $0x228] sm:$0xff]
    %v494 = vld [vmem:[#allocation8 + $0x230] sm:$0xff]
    %v495 = vld [vmem:[#allocation8 + $0x238] sm:$0xff]
    %v496 = vld [vmem:[#allocation8 + $0x240] sm:$0xff]
    %v497 = vld [vmem:[#allocation8 + $0x248] sm:$0xff]
    %v498 = vld [vmem:[#allocation8 + $0x250] sm:$0xff]
    %v499 = vld [vmem:[#allocation8 + $0x258] sm:$0xff]
    %v500 = vld [vmem:[#allocation8 + $0x260] sm:$0xff]
    %v501 = vld [vmem:[#allocation8 + $0x268] sm:$0xff]
    %v502 = vld [vmem:[#allocation8 + $0x270] sm:$0xff]
    %v503 = vld [vmem:[#allocation8 + $0x278] sm:$0xff]
    %v504 = vld [vmem:[#allocation8 + $0x280] sm:$0xff]
    %v505 = vld [vmem:[#allocation8 + $0x288] sm:$0xff]
    %v506 = vld [vmem:[#allocation8 + $0x290] sm:$0xff]
    %v507 = vld [vmem:[#allocation8 + $0x298] sm:$0xff]
    %v508 = vld [vmem:[#allocation8 + $0x2a0] sm:$0xff]
    %v509 = vld [vmem:[#allocation8 + $0x2a8] sm:$0xff]
    %v510 = vld [vmem:[#allocation8 + $0x2b0] sm:$0xff]
    %v511 = vld [vmem:[#allocation8 + $0x2b8] sm:$0xff]
    %v512 = vld [vmem:[#allocation8 + $0x2c0] sm:$0xff]
    %v513 = vld [vmem:[#allocation8 + $0x2c8] sm:$0xff]
    %v514 = vld [vmem:[#allocation8 + $0x2d0] sm:$0xff]
    %v515 = vld [vmem:[#allocation8 + $0x2d8] sm:$0xff]
    %v516 = vld [vmem:[#allocation8 + $0x2e0] sm:$0xff]
    %v517 = vld [vmem:[#allocation8 + $0x2e8] sm:$0xff]
    %v518 = vld [vmem:[#allocation8 + $0x2f0] sm:$0xff]
    %v519 = vld [vmem:[#allocation8 + $0x2f8] sm:$0xff]
    %v520 = vld [vmem:[#allocation8 + $0x300] sm:$0xff]
    %v521 = vld [vmem:[#allocation8 + $0x308] sm:$0xff]
    %v522 = vld [vmem:[#allocation8 + $0x310] sm:$0xff]
    %v523 = vld [vmem:[#allocation8 + $0x318] sm:$0xff]
    %v524 = vld [vmem:[#allocation8 + $0x320] sm:$0xff]
    %v525 = vld [vmem:[#allocation8 + $0x328] sm:$0xff]
    %v526 = vld [vmem:[#allocation8 + $0x330] sm:$0xff]
    %v527 = vld [vmem:[#allocation8 + $0x338] sm:$0xff]
    %v528 = vld [vmem:[#allocation8 + $0x340] sm:$0xff]
    %v529 = vld [vmem:[#allocation8 + $0x348] sm:$0xff]
    %v530 = vld [vmem:[#allocation8 + $0x350] sm:$0xff]
    %v531 = vld [vmem:[#allocation8 + $0x358] sm:$0xff]
    %v532 = vld [vmem:[#allocation8 + $0x360] sm:$0xff]
    %v533 = vld [vmem:[#allocation8 + $0x368] sm:$0xff]
    %v534 = vld [vmem:[#allocation8 + $0x370] sm:$0xff]
    %v535 = vld [vmem:[#allocation8 + $0x378] sm:$0xff]
    %v536 = vld [vmem:[#allocation8 + $0x380] sm:$0xff]
    %v537 = vld [vmem:[#allocation8 + $0x388] sm:$0xff]
    %v538 = vld [vmem:[#allocation8 + $0x390] sm:$0xff]
    %v539 = vld [vmem:[#allocation8 + $0x398] sm:$0xff]
    %v540 = vld [vmem:[#allocation8 + $0x3a0] sm:$0xff]
    %v541 = vld [vmem:[#allocation8 + $0x3a8] sm:$0xff]
    %v542 = vld [vmem:[#allocation8 + $0x3b0] sm:$0xff]
    %v543 = vld [vmem:[#allocation8 + $0x3b8] sm:$0xff]
    %v544 = vld [vmem:[#allocation8 + $0x3c0] sm:$0xff]
    %v545 = vld [vmem:[#allocation8 + $0x3c8] sm:$0xff]
    %v546 = vld [vmem:[#allocation8 + $0x3d0] sm:$0xff]
    %v547 = vld [vmem:[#allocation8 + $0x3d8] sm:$0xff]
    %v548 = vld [vmem:[#allocation8 + $0x3e0] sm:$0xff]
    %v549 = vld [vmem:[#allocation8 + $0x3e8] sm:$0xff]
    %v550 = vld [vmem:[#allocation8 + $0x3f0] sm:$0xff]
    %v551 = vld [vmem:[#allocation8 + $0x3f8] sm:$0xff]
    %v552 = vld [vmem:[#allocation9] sm:$0xff]
    %v553 = vld [vmem:[#allocation9 + $0x8] sm:$0xff]
    %v554 = vld [vmem:[#allocation9 + $0x10] sm:$0xff]
    %v555 = vld [vmem:[#allocation9 + $0x18] sm:$0xff]
    %v556 = vld [vmem:[#allocation9 + $0x20] sm:$0xff]
    %v557 = vld [vmem:[#allocation9 + $0x28] sm:$0xff]
    %v558 = vld [vmem:[#allocation9 + $0x30] sm:$0xff]
    %v559 = vld [vmem:[#allocation9 + $0x38] sm:$0xff]
    %v560 = vld [vmem:[#allocation9 + $0x40] sm:$0xff]
    %v561 = vld [vmem:[#allocation9 + $0x48] sm:$0xff]
    %v562 = vld [vmem:[#allocation9 + $0x50] sm:$0xff]
    %v563 = vld [vmem:[#allocation9 + $0x58] sm:$0xff]
    %v564 = vld [vmem:[#allocation9 + $0x60] sm:$0xff]
    %v565 = vld [vmem:[#allocation9 + $0x68] sm:$0xff]
    %v566 = vld [vmem:[#allocation9 + $0x70] sm:$0xff]
    %v567 = vld [vmem:[#allocation9 + $0x78] sm:$0xff]
    %v568 = vld [vmem:[#allocation9 + $0x80] sm:$0xff]
    %v569 = vld [vmem:[#allocation9 + $0x88] sm:$0xff]
    %v570 = vld [vmem:[#allocation9 + $0x90] sm:$0xff]
    %v571 = vld [vmem:[#allocation9 + $0x98] sm:$0xff]
    %v572 = vld [vmem:[#allocation9 + $0xa0] sm:$0xff]
    %v573 = vld [vmem:[#allocation9 + $0xa8] sm:$0xff]
    %v574 = vld [vmem:[#allocation9 + $0xb0] sm:$0xff]
    %v575 = vld [vmem:[#allocation9 + $0xb8] sm:$0xff]
    %v576 = vld [vmem:[#allocation9 + $0xc0] sm:$0xff]
    %v577 = vld [vmem:[#allocation9 + $0xc8] sm:$0xff]
    %v578 = vld [vmem:[#allocation9 + $0xd0] sm:$0xff]
    %v579 = vld [vmem:[#allocation9 + $0xd8] sm:$0xff]
    %v580 = vld [vmem:[#allocation9 + $0xe0] sm:$0xff]
    %v581 = vld [vmem:[#allocation9 + $0xe8] sm:$0xff]
    %v582 = vld [vmem:[#allocation9 + $0xf0] sm:$0xff]
    %v583 = vld [vmem:[#allocation9 + $0xf8] sm:$0xff]
    %v584 = vld [vmem:[#allocation9 + $0x100] sm:$0xff]
    %v585 = vld [vmem:[#allocation9 + $0x108] sm:$0xff]
    %v586 = vld [vmem:[#allocation9 + $0x110] sm:$0xff]
    %v587 = vld [vmem:[#allocation9 + $0x118] sm:$0xff]
    %v588 = vld [vmem:[#allocation9 + $0x120] sm:$0xff]
    %v589 = vld [vmem:[#allocation9 + $0x128] sm:$0xff]
    %v590 = vld [vmem:[#allocation9 + $0x130] sm:$0xff]
    %v591 = vld [vmem:[#allocation9 + $0x138] sm:$0xff]
    %v592 = vld [vmem:[#allocation9 + $0x140] sm:$0xff]
    %v593 = vld [vmem:[#allocation9 + $0x148] sm:$0xff]
    %v594 = vld [vmem:[#allocation9 + $0x150] sm:$0xff]
    %v595 = vld [vmem:[#allocation9 + $0x158] sm:$0xff]
    %v596 = vld [vmem:[#allocation9 + $0x160] sm:$0xff]
    %v597 = vld [vmem:[#allocation9 + $0x168] sm:$0xff]
    %v598 = vld [vmem:[#allocation9 + $0x170] sm:$0xff]
    %v599 = vld [vmem:[#allocation9 + $0x178] sm:$0xff]
    %v600 = vld [vmem:[#allocation9 + $0x180] sm:$0xff]
    %v601 = vld [vmem:[#allocation9 + $0x188] sm:$0xff]
    %v602 = vld [vmem:[#allocation9 + $0x190] sm:$0xff]
    %v603 = vld [vmem:[#allocation9 + $0x198] sm:$0xff]
    %v604 = vld [vmem:[#allocation9 + $0x1a0] sm:$0xff]
    %v605 = vld [vmem:[#allocation9 + $0x1a8] sm:$0xff]
    %v606 = vld [vmem:[#allocation9 + $0x1b0] sm:$0xff]
    %v607 = vld [vmem:[#allocation9 + $0x1b8] sm:$0xff]
    %v608 = vld [vmem:[#allocation9 + $0x1c0] sm:$0xff]
    %v609 = vld [vmem:[#allocation9 + $0x1c8] sm:$0xff]
    %v610 = vld [vmem:[#allocation9 + $0x1d0] sm:$0xff]
    %v611 = vld [vmem:[#allocation9 + $0x1d8] sm:$0xff]
    %v612 = vld [vmem:[#allocation9 + $0x1e0] sm:$0xff]
    %v613 = vld [vmem:[#allocation9 + $0x1e8] sm:$0xff]
    %v614 = vld [vmem:[#allocation9 + $0x1f0] sm:$0xff]
    %v615 = vld [vmem:[#allocation9 + $0x1f8] sm:$0xff]
    %v616 = vld [vmem:[%s5] sm:$0xf]
    %v618 = vlaneseq
    %v619 = vshrl.u32 %v618, 7
    %v620 = vsub.s32 0, %v619
    %v621 = vrot.slane %v616, %v620
    %v622 = vlaneseq
    %v623 = vshrl.u32 %v622, 7
    %v624 = vsub.s32 1, %v623
    %v625 = vrot.slane %v616, %v624
    %v626 = vlaneseq
    %v627 = vshrl.u32 %v626, 7
    %v628 = vsub.s32 2, %v627
    %v629 = vrot.slane %v616, %v628
    %v630 = vlaneseq
    %v631 = vshrl.u32 %v630, 7
    %v632 = vsub.s32 3, %v631
    %v633 = vrot.slane %v616, %v632
    %v638 = vld [vmem:[#allocation2] sm:$0xff]
    %v639 = vld [vmem:[#allocation2 + $0x8] sm:$0xff]
    %v640 = vld [vmem:[#allocation2 + $0x10] sm:$0xff]
    %v641 = vld [vmem:[#allocation2 + $0x18] sm:$0xff]
    %v642 = vadd.f32 %v638, 0.0
    %v643 = vadd.f32 %v639, 0.0
    %v644 = vadd.f32 %v640, 0.0
    %v645 = vadd.f32 %v641, 0.0
    %v646 = vmul.f32 %v642, 0.5
    %v647 = vmul.f32 %v643, 0.5
    %v648 = vmul.f32 %v644, 0.5
    %v649 = vtanh.pop %v646
    %v650 = vtanh.pop %v647
    %v651 = vtanh.pop %v648
    %v652 = vmul.f32 %v649, 0.5
    %v653 = vmul.f32 %v650, 0.5
    %v654 = vmul.f32 %v651, 0.5
    %v655 = vadd.f32 %v652, 0.5
    %v656 = vadd.f32 %v653, 0.5
    %v657 = vadd.f32 %v654, 0.5
    %v658 = vtanh.pop %v645
    %v659 = vmul.f32 %v656, 0.0
    %v660 = vmul.f32 %v655, %v658
    %v661 = vadd.f32 %v659, %v660
    %v662 = vtanh.pop %v661
    %v663 = vmul.f32 %v657, %v662
    %664 = vmatprep.subr.mxu0 %v545
    %665 = vmatpush1.msra.mxu0 %v544
    %666 = vmatprep.subr.mxu0 %v537
    %667 = vmatpush1.msra.mxu0 %v536
    %668 = vmatprep.subr.mxu0 %v529
    %669 = vmatpush1.msra.mxu0 %v528
    %670 = vmatprep.subr.mxu0 %v521
    %671 = vmatpush1.msra.mxu0 %v520
    %672 = vmatprep.subr.mxu0 %v513
    %673 = vmatpush1.msra.mxu0 %v512
    %674 = vmatprep.subr.mxu0 %v505
    %675 = vmatpush1.msra.mxu0 %v504
    %676 = vmatprep.subr.mxu0 %v497
    %677 = vmatpush1.msra.mxu0 %v496
    %678 = vmatprep.subr.mxu0 %v489
    %679 = vmatpush1.msra.mxu0 %v488
    %680 = vmatprep.subr.mxu0 %v481
    %681 = vmatpush1.msra.mxu0 %v480
    %682 = vmatprep.subr.mxu0 %v473
    %683 = vmatpush1.msra.mxu0 %v472
    %684 = vmatprep.subr.mxu0 %v465
    %685 = vmatpush1.msra.mxu0 %v464
    %686 = vmatprep.subr.mxu0 %v457
    %687 = vmatpush1.msra.mxu0 %v456
    %688 = vmatprep.subr.mxu0 %v449
    %689 = vmatpush1.msra.mxu0 %v448
    %690 = vmatprep.subr.mxu0 %v441
    %691 = vmatpush1.msra.mxu0 %v440
    %692 = vmatprep.subr.mxu0 %v433
    %693 = vmatpush1.msra.mxu0 %v432
    %694 = vmatprep.subr.mxu0 %v425
    %695 = vmatpush1.msra.mxu0 %v424
    %696 = vmatprep.subr.mxu0 0.0
    %697 = vmatpush2.msra.mxu0 0.0
    %698 = vmatprep.subr.mxu0 0.0
    %699 = vmatpush2.msra.mxu0 0.0
    %700 = vmatprep.subr.mxu0 0.0
    %701 = vmatpush2.msra.mxu0 0.0
    %702 = vmatprep.subr.mxu0 0.0
    %703 = vmatpush2.msra.mxu0 0.0
    %704 = vmatprep.subr.mxu0 0.0
    %705 = vmatpush2.msra.mxu0 0.0
    %706 = vmatprep.subr.mxu0 0.0
    %707 = vmatpush2.msra.mxu0 0.0
    %708 = vmatprep.subr.mxu0 0.0
    %709 = vmatpush2.msra.mxu0 0.0
    %710 = vmatprep.subr.mxu0 0.0
    %711 = vmatpush2.msra.mxu0 0.0
    %712 = vmatprep.subr.mxu0 0.0
    %713 = vmatpush2.msra.mxu0 0.0
    %714 = vmatprep.subr.mxu0 0.0
    %715 = vmatpush2.msra.mxu0 0.0
    %716 = vmatprep.subr.mxu0 0.0
    %717 = vmatpush2.msra.mxu0 0.0
    %718 = vmatprep.subr.mxu0 0.0
    %719 = vmatpush2.msra.mxu0 0.0
    %720 = vmatprep.subr.mxu0 0.0
    %721 = vmatpush2.msra.mxu0 0.0
    %722 = vmatprep.subr.mxu0 0.0
    %723 = vmatpush2.msra.mxu0 0.0
    %724 = vmatprep.subr.mxu0 0.0
    %725 = vmatpush2.msra.mxu0 0.0
    %726 = vmatprep.subr.mxu0 0.0
    %727 = vmatpush2.msra.mxu0 0.0
    %728 = vmatprep.mubr.f32.mxu0 0.0
    %729 = vmatmul.mubr.f32.gmra.mxu0 %v663
    %v730 = vpop.f32.mrf.mxu0
    %v731 = vadd.f32 0.0, %v730
    %v732 = vpop.f32.mrf.mxu0
    %v733 = vadd.f32 0.0, %v732
    %734 = vdwg.mxu0
    %735 = vmatprep.subr.mxu0 %v547
    %736 = vmatpush1.msra.mxu0 %v546
    %737 = vmatprep.subr.mxu0 %v539
    %738 = vmatpush1.msra.mxu0 %v538
    %739 = vmatprep.subr.mxu0 %v531
    %740 = vmatpush1.msra.mxu0 %v530
    %741 = vmatprep.subr.mxu0 %v523
    %742 = vmatpush1.msra.mxu0 %v522
    %743 = vmatprep.subr.mxu0 %v515
    %744 = vmatpush1.msra.mxu0 %v514
    %745 = vmatprep.subr.mxu0 %v507
    %746 = vmatpush1.msra.mxu0 %v506
    %747 = vmatprep.subr.mxu0 %v499
    %748 = vmatpush1.msra.mxu0 %v498
    %749 = vmatprep.subr.mxu0 %v491
    %750 = vmatpush1.msra.mxu0 %v490
    %751 = vmatprep.subr.mxu0 %v483
    %752 = vmatpush1.msra.mxu0 %v482
    %753 = vmatprep.subr.mxu0 %v475
    %754 = vmatpush1.msra.mxu0 %v474
    %755 = vmatprep.subr.mxu0 %v467
    %756 = vmatpush1.msra.mxu0 %v466
    %757 = vmatprep.subr.mxu0 %v459
    %758 = vmatpush1.msra.mxu0 %v458
    %759 = vmatprep.subr.mxu0 %v451
    %760 = vmatpush1.msra.mxu0 %v450
    %761 = vmatprep.subr.mxu0 %v443
    %762 = vmatpush1.msra.mxu0 %v442
    %763 = vmatprep.subr.mxu0 %v435
    %764 = vmatpush1.msra.mxu0 %v434
    %765 = vmatprep.subr.mxu0 %v427
    %766 = vmatpush1.msra.mxu0 %v426
    %767 = vmatprep.subr.mxu0 0.0
    %768 = vmatpush2.msra.mxu0 0.0
    %769 = vmatprep.subr.mxu0 0.0
    %770 = vmatpush2.msra.mxu0 0.0
    %771 = vmatprep.subr.mxu0 0.0
    %772 = vmatpush2.msra.mxu0 0.0
    %773 = vmatprep.subr.mxu0 0.0
    %774 = vmatpush2.msra.mxu0 0.0
    %775 = vmatprep.subr.mxu0 0.0
    %776 = vmatpush2.msra.mxu0 0.0
    %777 = vmatprep.subr.mxu0 0.0
    %778 = vmatpush2.msra.mxu0 0.0
    %779 = vmatprep.subr.mxu0 0.0
    %780 = vmatpush2.msra.mxu0 0.0
    %781 = vmatprep.subr.mxu0 0.0
    %782 = vmatpush2.msra.mxu0 0.0
    %783 = vmatprep.subr.mxu0 0.0
    %784 = vmatpush2.msra.mxu0 0.0
    %785 = vmatprep.subr.mxu0 0.0
    %786 = vmatpush2.msra.mxu0 0.0
    %787 = vmatprep.subr.mxu0 0.0
    %788 = vmatpush2.msra.mxu0 0.0
    %789 = vmatprep.subr.mxu0 0.0
    %790 = vmatpush2.msra.mxu0 0.0
    %791 = vmatprep.subr.mxu0 0.0
    %792 = vmatpush2.msra.mxu0 0.0
    %793 = vmatprep.subr.mxu0 0.0
    %794 = vmatpush2.msra.mxu0 0.0
    %795 = vmatprep.subr.mxu0 0.0
    %796 = vmatpush2.msra.mxu0 0.0
    %797 = vmatprep.subr.mxu0 0.0
    %798 = vmatpush2.msra.mxu0 0.0
    %799 = vmatprep.mubr.f32.mxu0 0.0
    %800 = vmatmul.mubr.f32.gmra.mxu0 %v663
    %v801 = vpop.f32.mrf.mxu0
    %v802 = vadd.f32 0.0, %v801
    %v803 = vpop.f32.mrf.mxu0
    %v804 = vadd.f32 0.0, %v803
    %805 = vdwg.mxu0
    %806 = vmatprep.subr.mxu0 %v549
    %807 = vmatpush1.msra.mxu0 %v548
    %808 = vmatprep.subr.mxu0 %v541
    %809 = vmatpush1.msra.mxu0 %v540
    %810 = vmatprep.subr.mxu0 %v533
    %811 = vmatpush1.msra.mxu0 %v532
    %812 = vmatprep.subr.mxu0 %v525
    %813 = vmatpush1.msra.mxu0 %v524
    %814 = vmatprep.subr.mxu0 %v517
    %815 = vmatpush1.msra.mxu0 %v516
    %816 = vmatprep.subr.mxu0 %v509
    %817 = vmatpush1.msra.mxu0 %v508
    %818 = vmatprep.subr.mxu0 %v501
    %819 = vmatpush1.msra.mxu0 %v500
    %820 = vmatprep.subr.mxu0 %v493
    %821 = vmatpush1.msra.mxu0 %v492
    %822 = vmatprep.subr.mxu0 %v485
    %823 = vmatpush1.msra.mxu0 %v484
    %824 = vmatprep.subr.mxu0 %v477
    %825 = vmatpush1.msra.mxu0 %v476
    %826 = vmatprep.subr.mxu0 %v469
    %827 = vmatpush1.msra.mxu0 %v468
    %828 = vmatprep.subr.mxu0 %v461
    %829 = vmatpush1.msra.mxu0 %v460
    %830 = vmatprep.subr.mxu0 %v453
    %831 = vmatpush1.msra.mxu0 %v452
    %832 = vmatprep.subr.mxu0 %v445
    %833 = vmatpush1.msra.mxu0 %v444
    %834 = vmatprep.subr.mxu0 %v437
    %835 = vmatpush1.msra.mxu0 %v436
    %836 = vmatprep.subr.mxu0 %v429
    %837 = vmatpush1.msra.mxu0 %v428
    %838 = vmatprep.subr.mxu0 0.0
    %839 = vmatpush2.msra.mxu0 0.0
    %840 = vmatprep.subr.mxu0 0.0
    %841 = vmatpush2.msra.mxu0 0.0
    %842 = vmatprep.subr.mxu0 0.0
    %843 = vmatpush2.msra.mxu0 0.0
    %844 = vmatprep.subr.mxu0 0.0
    %845 = vmatpush2.msra.mxu0 0.0
    %846 = vmatprep.subr.mxu0 0.0
    %847 = vmatpush2.msra.mxu0 0.0
    %848 = vmatprep.subr.mxu0 0.0
    %849 = vmatpush2.msra.mxu0 0.0
    %850 = vmatprep.subr.mxu0 0.0
    %851 = vmatpush2.msra.mxu0 0.0
    %852 = vmatprep.subr.mxu0 0.0
    %853 = vmatpush2.msra.mxu0 0.0
    %854 = vmatprep.subr.mxu0 0.0
    %855 = vmatpush2.msra.mxu0 0.0
    %856 = vmatprep.subr.mxu0 0.0
    %857 = vmatpush2.msra.mxu0 0.0
    %858 = vmatprep.subr.mxu0 0.0
    %859 = vmatpush2.msra.mxu0 0.0
    %860 = vmatprep.subr.mxu0 0.0
    %861 = vmatpush2.msra.mxu0 0.0
    %862 = vmatprep.subr.mxu0 0.0
    %863 = vmatpush2.msra.mxu0 0.0
    %864 = vmatprep.subr.mxu0 0.0
    %865 = vmatpush2.msra.mxu0 0.0
    %866 = vmatprep.subr.mxu0 0.0
    %867 = vmatpush2.msra.mxu0 0.0
    %868 = vmatprep.subr.mxu0 0.0
    %869 = vmatpush2.msra.mxu0 0.0
    %870 = vmatprep.mubr.f32.mxu0 0.0
    %871 = vmatmul.mubr.f32.gmra.mxu0 %v663
    %v872 = vpop.f32.mrf.mxu0
    %v873 = vadd.f32 0.0, %v872
    %v874 = vpop.f32.mrf.mxu0
    %v875 = vadd.f32 0.0, %v874
    %876 = vdwg.mxu0
    %877 = vmatprep.subr.mxu0 %v551
    %878 = vmatpush1.msra.mxu0 %v550
    %879 = vmatprep.subr.mxu0 %v543
    %880 = vmatpush1.msra.mxu0 %v542
    %881 = vmatprep.subr.mxu0 %v535
    %882 = vmatpush1.msra.mxu0 %v534
    %883 = vmatprep.subr.mxu0 %v527
    %884 = vmatpush1.msra.mxu0 %v526
    %885 = vmatprep.subr.mxu0 %v519
    %886 = vmatpush1.msra.mxu0 %v518
    %887 = vmatprep.subr.mxu0 %v511
    %888 = vmatpush1.msra.mxu0 %v510
    %889 = vmatprep.subr.mxu0 %v503
    %890 = vmatpush1.msra.mxu0 %v502
    %891 = vmatprep.subr.mxu0 %v495
    %892 = vmatpush1.msra.mxu0 %v494
    %893 = vmatprep.subr.mxu0 %v487
    %894 = vmatpush1.msra.mxu0 %v486
    %895 = vmatprep.subr.mxu0 %v479
    %896 = vmatpush1.msra.mxu0 %v478
    %897 = vmatprep.subr.mxu0 %v471
    %898 = vmatpush1.msra.mxu0 %v470
    %899 = vmatprep.subr.mxu0 %v463
    %900 = vmatpush1.msra.mxu0 %v462
    %901 = vmatprep.subr.mxu0 %v455
    %902 = vmatpush1.msra.mxu0 %v454
    %903 = vmatprep.subr.mxu0 %v447
    %904 = vmatpush1.msra.mxu0 %v446
    %905 = vmatprep.subr.mxu0 %v439
    %906 = vmatpush1.msra.mxu0 %v438
    %907 = vmatprep.subr.mxu0 %v431
    %908 = vmatpush1.msra.mxu0 %v430
    %909 = vmatprep.subr.mxu0 0.0
    %910 = vmatpush2.msra.mxu0 0.0
    %911 = vmatprep.subr.mxu0 0.0
    %912 = vmatpush2.msra.mxu0 0.0
    %913 = vmatprep.subr.mxu0 0.0
    %914 = vmatpush2.msra.mxu0 0.0
    %915 = vmatprep.subr.mxu0 0.0
    %916 = vmatpush2.msra.mxu0 0.0
    %917 = vmatprep.subr.mxu0 0.0
    %918 = vmatpush2.msra.mxu0 0.0
    %919 = vmatprep.subr.mxu0 0.0
    %920 = vmatpush2.msra.mxu0 0.0
    %921 = vmatprep.subr.mxu0 0.0
    %922 = vmatpush2.msra.mxu0 0.0
    %923 = vmatprep.subr.mxu0 0.0
    %924 = vmatpush2.msra.mxu0 0.0
    %925 = vmatprep.subr.mxu0 0.0
    %926 = vmatpush2.msra.mxu0 0.0
    %927 = vmatprep.subr.mxu0 0.0
    %928 = vmatpush2.msra.mxu0 0.0
    %929 = vmatprep.subr.mxu0 0.0
    %930 = vmatpush2.msra.mxu0 0.0
    %931 = vmatprep.subr.mxu0 0.0
    %932 = vmatpush2.msra.mxu0 0.0
    %933 = vmatprep.subr.mxu0 0.0
    %934 = vmatpush2.msra.mxu0 0.0
    %935 = vmatprep.subr.mxu0 0.0
    %936 = vmatpush2.msra.mxu0 0.0
    %937 = vmatprep.subr.mxu0 0.0
    %938 = vmatpush2.msra.mxu0 0.0
    %939 = vmatprep.subr.mxu0 0.0
    %940 = vmatpush2.msra.mxu0 0.0
    %941 = vmatprep.mubr.f32.mxu0 0.0
    %942 = vmatmul.mubr.f32.gmra.mxu0 %v663
    %v943 = vpop.f32.mrf.mxu0
    %v944 = vadd.f32 0.0, %v943
    %v945 = vpop.f32.mrf.mxu0
    %v946 = vadd.f32 0.0, %v945
    %947 = vdwg.mxu0
    %v948 = vadd.f32 %v873, %v621
    %v949 = vadd.f32 %v875, %v625
    %v950 = vadd.f32 %v944, %v629
    %v951 = vadd.f32 %v946, %v633
    %v952 = vmul.f32 %v948, 0.5
    %v953 = vmul.f32 %v949, 0.5
    %v954 = vmul.f32 %v950, 0.5
    %v955 = vtanh.pop %v952
    %v956 = vtanh.pop %v953
    %v957 = vtanh.pop %v954
    %v958 = vmul.f32 %v955, 0.5
    %v959 = vmul.f32 %v956, 0.5
    %v960 = vmul.f32 %v957, 0.5
    %v961 = vadd.f32 %v958, 0.5
    %v962 = vadd.f32 %v959, 0.5
    %v963 = vadd.f32 %v960, 0.5
    %v964 = vtanh.pop %v951
    %v965 = vmul.f32 %v962, 0.0
    %v966 = vmul.f32 %v961, %v964
    %v967 = vadd.f32 %v965, %v966
    %v968 = vtanh.pop %v967
    %v969 = vmul.f32 %v963, %v968
    %970 = vmatprep.subr.mxu0 %v613
    %971 = vmatpush1.msra.mxu0 %v612
    %972 = vmatprep.subr.mxu0 %v609
    %973 = vmatpush1.msra.mxu0 %v608
    %974 = vmatprep.subr.mxu0 %v605
    %975 = vmatpush1.msra.mxu0 %v604
    %976 = vmatprep.subr.mxu0 %v601
    %977 = vmatpush1.msra.mxu0 %v600
    %978 = vmatprep.subr.mxu0 %v597
    %979 = vmatpush1.msra.mxu0 %v596
    %980 = vmatprep.subr.mxu0 %v593
    %981 = vmatpush1.msra.mxu0 %v592
    %982 = vmatprep.subr.mxu0 %v589
    %983 = vmatpush1.msra.mxu0 %v588
    %984 = vmatprep.subr.mxu0 %v585
    %985 = vmatpush1.msra.mxu0 %v584
    %986 = vmatprep.subr.mxu0 %v581
    %987 = vmatpush1.msra.mxu0 %v580
    %988 = vmatprep.subr.mxu0 %v577
    %989 = vmatpush1.msra.mxu0 %v576
    %990 = vmatprep.subr.mxu0 %v573
    %991 = vmatpush1.msra.mxu0 %v572
    %992 = vmatprep.subr.mxu0 %v569
    %993 = vmatpush1.msra.mxu0 %v568
    %994 = vmatprep.subr.mxu0 %v565
    %995 = vmatpush1.msra.mxu0 %v564
    %996 = vmatprep.subr.mxu0 %v561
    %997 = vmatpush1.msra.mxu0 %v560
    %998 = vmatprep.subr.mxu0 %v557
    %999 = vmatpush1.msra.mxu0 %v556
    %1000 = vmatprep.subr.mxu0 %v553
    %1001 = vmatpush1.msra.mxu0 %v552
    %1002 = vmatprep.subr.mxu0 0.0
    %1003 = vmatpush2.msra.mxu0 0.0
    %1004 = vmatprep.subr.mxu0 0.0
    %1005 = vmatpush2.msra.mxu0 0.0
    %1006 = vmatprep.subr.mxu0 0.0
    %1007 = vmatpush2.msra.mxu0 0.0
    %1008 = vmatprep.subr.mxu0 0.0
    %1009 = vmatpush2.msra.mxu0 0.0
    %1010 = vmatprep.subr.mxu0 0.0
    %1011 = vmatpush2.msra.mxu0 0.0
    %1012 = vmatprep.subr.mxu0 0.0
    %1013 = vmatpush2.msra.mxu0 0.0
    %1014 = vmatprep.subr.mxu0 0.0
    %1015 = vmatpush2.msra.mxu0 0.0
    %1016 = vmatprep.subr.mxu0 0.0
    %1017 = vmatpush2.msra.mxu0 0.0
    %1018 = vmatprep.subr.mxu0 0.0
    %1019 = vmatpush2.msra.mxu0 0.0
    %1020 = vmatprep.subr.mxu0 0.0
    %1021 = vmatpush2.msra.mxu0 0.0
    %1022 = vmatprep.subr.mxu0 0.0
    %1023 = vmatpush2.msra.mxu0 0.0
    %1024 = vmatprep.subr.mxu0 0.0
    %1025 = vmatpush2.msra.mxu0 0.0
    %1026 = vmatprep.subr.mxu0 0.0
    %1027 = vmatpush2.msra.mxu0 0.0
    %1028 = vmatprep.subr.mxu0 0.0
    %1029 = vmatpush2.msra.mxu0 0.0
    %1030 = vmatprep.subr.mxu0 0.0
    %1031 = vmatpush2.msra.mxu0 0.0
    %1032 = vmatprep.subr.mxu0 0.0
    %1033 = vmatpush2.msra.mxu0 0.0
    %1034 = vmatprep.mubr.f32.mxu0 0.0
    %1035 = vmatmul.mubr.f32.gmra.mxu0 %v969
    %v1036 = vpop.f32.mrf.mxu0
    %v1037 = vadd.f32 %v621, %v1036
    %v1038 = vpop.f32.mrf.mxu0
    %v1039 = vadd.f32 %v625, %v1038
    %1040 = vdwg.mxu0
    %1041 = vmatprep.subr.mxu0 %v615
    %1042 = vmatpush1.msra.mxu0 %v614
    %1043 = vmatprep.subr.mxu0 %v611
    %1044 = vmatpush1.msra.mxu0 %v610
    %1045 = vmatprep.subr.mxu0 %v607
    %1046 = vmatpush1.msra.mxu0 %v606
    %1047 = vmatprep.subr.mxu0 %v603
    %1048 = vmatpush1.msra.mxu0 %v602
    %1049 = vmatprep.subr.mxu0 %v599
    %1050 = vmatpush1.msra.mxu0 %v598
    %1051 = vmatprep.subr.mxu0 %v595
    %1052 = vmatpush1.msra.mxu0 %v594
    %1053 = vmatprep.subr.mxu0 %v591
    %1054 = vmatpush1.msra.mxu0 %v590
    %1055 = vmatprep.subr.mxu0 %v587
    %1056 = vmatpush1.msra.mxu0 %v586
    %1057 = vmatprep.subr.mxu0 %v583
    %1058 = vmatpush1.msra.mxu0 %v582
    %1059 = vmatprep.subr.mxu0 %v579
    %1060 = vmatpush1.msra.mxu0 %v578
    %1061 = vmatprep.subr.mxu0 %v575
    %1062 = vmatpush1.msra.mxu0 %v574
    %1063 = vmatprep.subr.mxu0 %v571
    %1064 = vmatpush1.msra.mxu0 %v570
    %1065 = vmatprep.subr.mxu0 %v567
    %1066 = vmatpush1.msra.mxu0 %v566
    %1067 = vmatprep.subr.mxu0 %v563
    %1068 = vmatpush1.msra.mxu0 %v562
    %1069 = vmatprep.subr.mxu0 %v559
    %1070 = vmatpush1.msra.mxu0 %v558
    %1071 = vmatprep.subr.mxu0 %v555
    %1072 = vmatpush1.msra.mxu0 %v554
    %1073 = vmatprep.subr.mxu0 0.0
    %1074 = vmatpush2.msra.mxu0 0.0
    %1075 = vmatprep.subr.mxu0 0.0
    %1076 = vmatpush2.msra.mxu0 0.0
    %1077 = vmatprep.subr.mxu0 0.0
    %1078 = vmatpush2.msra.mxu0 0.0
    %1079 = vmatprep.subr.mxu0 0.0
    %1080 = vmatpush2.msra.mxu0 0.0
    %1081 = vmatprep.subr.mxu0 0.0
    %1082 = vmatpush2.msra.mxu0 0.0
    %1083 = vmatprep.subr.mxu0 0.0
    %1084 = vmatpush2.msra.mxu0 0.0
    %1085 = vmatprep.subr.mxu0 0.0
    %1086 = vmatpush2.msra.mxu0 0.0
    %1087 = vmatprep.subr.mxu0 0.0
    %1088 = vmatpush2.msra.mxu0 0.0
    %1089 = vmatprep.subr.mxu0 0.0
    %1090 = vmatpush2.msra.mxu0 0.0
    %1091 = vmatprep.subr.mxu0 0.0
    %1092 = vmatpush2.msra.mxu0 0.0
    %1093 = vmatprep.subr.mxu0 0.0
    %1094 = vmatpush2.msra.mxu0 0.0
    %1095 = vmatprep.subr.mxu0 0.0
    %1096 = vmatpush2.msra.mxu0 0.0
    %1097 = vmatprep.subr.mxu0 0.0
    %1098 = vmatpush2.msra.mxu0 0.0
    %1099 = vmatprep.subr.mxu0 0.0
    %1100 = vmatpush2.msra.mxu0 0.0
    %1101 = vmatprep.subr.mxu0 0.0
    %1102 = vmatpush2.msra.mxu0 0.0
    %1103 = vmatprep.subr.mxu0 0.0
    %1104 = vmatpush2.msra.mxu0 0.0
    %1105 = vmatprep.mubr.f32.mxu0 0.0
    %1106 = vmatmul.mubr.f32.gmra.mxu0 %v969
    %v1107 = vpop.f32.mrf.mxu0
    %v1108 = vadd.f32 %v629, %v1107
    %v1109 = vpop.f32.mrf.mxu0
    %v1110 = vadd.f32 %v633, %v1109
    %1111 = vdwg.mxu0
    %v1112 = vld [vmem:[#allocation2 + $0x20] sm:$0xff]
    %v1113 = vld [vmem:[#allocation2 + $0x28] sm:$0xff]
    %v1114 = vld [vmem:[#allocation2 + $0x30] sm:$0xff]
    %v1115 = vld [vmem:[#allocation2 + $0x38] sm:$0xff]
    %v1116 = vadd.f32 %v1112, %v731
    %v1117 = vadd.f32 %v1113, %v733
    %v1118 = vadd.f32 %v1114, %v802
    %v1119 = vadd.f32 %v1115, %v804
    %v1120 = vmul.f32 %v1116, 0.5
    %v1121 = vmul.f32 %v1117, 0.5
    %v1122 = vmul.f32 %v1118, 0.5
    %v1123 = vtanh.pop %v1120
    %v1124 = vtanh.pop %v1121
    %v1125 = vtanh.pop %v1122
    %v1126 = vmul.f32 %v1123, 0.5
    %v1127 = vmul.f32 %v1124, 0.5
    %v1128 = vmul.f32 %v1125, 0.5
    %v1129 = vadd.f32 %v1126, 0.5
    %v1130 = vadd.f32 %v1127, 0.5
    %v1131 = vadd.f32 %v1128, 0.5
    %v1132 = vtanh.pop %v1119
    %v1133 = vmul.f32 %v1130, %v661
    %v1134 = vmul.f32 %v1129, %v1132
    %v1135 = vadd.f32 %v1133, %v1134
    %v1136 = vtanh.pop %v1135
    %v1137 = vmul.f32 %v1131, %v1136
    %1138 = vmatprep.subr.mxu0 %v545
    %1139 = vmatpush1.msra.mxu0 %v544
    %1140 = vmatprep.subr.mxu0 %v537
    %1141 = vmatpush1.msra.mxu0 %v536
    %1142 = vmatprep.subr.mxu0 %v529
    %1143 = vmatpush1.msra.mxu0 %v528
    %1144 = vmatprep.subr.mxu0 %v521
    %1145 = vmatpush1.msra.mxu0 %v520
    %1146 = vmatprep.subr.mxu0 %v513
    %1147 = vmatpush1.msra.mxu0 %v512
    %1148 = vmatprep.subr.mxu0 %v505
    %1149 = vmatpush1.msra.mxu0 %v504
    %1150 = vmatprep.subr.mxu0 %v497
    %1151 = vmatpush1.msra.mxu0 %v496
    %1152 = vmatprep.subr.mxu0 %v489
    %1153 = vmatpush1.msra.mxu0 %v488
    %1154 = vmatprep.subr.mxu0 %v481
    %1155 = vmatpush1.msra.mxu0 %v480
    %1156 = vmatprep.subr.mxu0 %v473
    %1157 = vmatpush1.msra.mxu0 %v472
    %1158 = vmatprep.subr.mxu0 %v465
    %1159 = vmatpush1.msra.mxu0 %v464
    %1160 = vmatprep.subr.mxu0 %v457
    %1161 = vmatpush1.msra.mxu0 %v456
    %1162 = vmatprep.subr.mxu0 %v449
    %1163 = vmatpush1.msra.mxu0 %v448
    %1164 = vmatprep.subr.mxu0 %v441
    %1165 = vmatpush1.msra.mxu0 %v440
    %1166 = vmatprep.subr.mxu0 %v433
    %1167 = vmatpush1.msra.mxu0 %v432
    %1168 = vmatprep.subr.mxu0 %v425
    %1169 = vmatpush1.msra.mxu0 %v424
    %1170 = vmatprep.subr.mxu0 0.0
    %1171 = vmatpush2.msra.mxu0 0.0
    %1172 = vmatprep.subr.mxu0 0.0
    %1173 = vmatpush2.msra.mxu0 0.0
    %1174 = vmatprep.subr.mxu0 0.0
    %1175 = vmatpush2.msra.mxu0 0.0
    %1176 = vmatprep.subr.mxu0 0.0
    %1177 = vmatpush2.msra.mxu0 0.0
    %1178 = vmatprep.subr.mxu0 0.0
    %1179 = vmatpush2.msra.mxu0 0.0
    %1180 = vmatprep.subr.mxu0 0.0
    %1181 = vmatpush2.msra.mxu0 0.0
    %1182 = vmatprep.subr.mxu0 0.0
    %1183 = vmatpush2.msra.mxu0 0.0
    %1184 = vmatprep.subr.mxu0 0.0
    %1185 = vmatpush2.msra.mxu0 0.0
    %1186 = vmatprep.subr.mxu0 0.0
    %1187 = vmatpush2.msra.mxu0 0.0
    %1188 = vmatprep.subr.mxu0 0.0
    %1189 = vmatpush2.msra.mxu0 0.0
    %1190 = vmatprep.subr.mxu0 0.0
    %1191 = vmatpush2.msra.mxu0 0.0
    %1192 = vmatprep.subr.mxu0 0.0
    %1193 = vmatpush2.msra.mxu0 0.0
    %1194 = vmatprep.subr.mxu0 0.0
    %1195 = vmatpush2.msra.mxu0 0.0
    %1196 = vmatprep.subr.mxu0 0.0
    %1197 = vmatpush2.msra.mxu0 0.0
    %1198 = vmatprep.subr.mxu0 0.0
    %1199 = vmatpush2.msra.mxu0 0.0
    %1200 = vmatprep.subr.mxu0 0.0
    %1201 = vmatpush2.msra.mxu0 0.0
    %1202 = vmatprep.mubr.f32.mxu0 0.0
    %1203 = vmatmul.mubr.f32.gmra.mxu0 %v1137
    %v1204 = vpop.f32.mrf.mxu0
    %v1205 = vadd.f32 0.0, %v1204
    %v1206 = vpop.f32.mrf.mxu0
    %v1207 = vadd.f32 0.0, %v1206
    %1208 = vdwg.mxu0
    %1209 = vmatprep.subr.mxu0 %v547
    %1210 = vmatpush1.msra.mxu0 %v546
    %1211 = vmatprep.subr.mxu0 %v539
    %1212 = vmatpush1.msra.mxu0 %v538
    %1213 = vmatprep.subr.mxu0 %v531
    %1214 = vmatpush1.msra.mxu0 %v530
    %1215 = vmatprep.subr.mxu0 %v523
    %1216 = vmatpush1.msra.mxu0 %v522
    %1217 = vmatprep.subr.mxu0 %v515
    %1218 = vmatpush1.msra.mxu0 %v514
    %1219 = vmatprep.subr.mxu0 %v507
    %1220 = vmatpush1.msra.mxu0 %v506
    %1221 = vmatprep.subr.mxu0 %v499
    %1222 = vmatpush1.msra.mxu0 %v498
    %1223 = vmatprep.subr.mxu0 %v491
    %1224 = vmatpush1.msra.mxu0 %v490
    %1225 = vmatprep.subr.mxu0 %v483
    %1226 = vmatpush1.msra.mxu0 %v482
    %1227 = vmatprep.subr.mxu0 %v475
    %1228 = vmatpush1.msra.mxu0 %v474
    %1229 = vmatprep.subr.mxu0 %v467
    %1230 = vmatpush1.msra.mxu0 %v466
    %1231 = vmatprep.subr.mxu0 %v459
    %1232 = vmatpush1.msra.mxu0 %v458
    %1233 = vmatprep.subr.mxu0 %v451
    %1234 = vmatpush1.msra.mxu0 %v450
    %1235 = vmatprep.subr.mxu0 %v443
    %1236 = vmatpush1.msra.mxu0 %v442
    %1237 = vmatprep.subr.mxu0 %v435
    %1238 = vmatpush1.msra.mxu0 %v434
    %1239 = vmatprep.subr.mxu0 %v427
    %1240 = vmatpush1.msra.mxu0 %v426
    %1241 = vmatprep.subr.mxu0 0.0
    %1242 = vmatpush2.msra.mxu0 0.0
    %1243 = vmatprep.subr.mxu0 0.0
    %1244 = vmatpush2.msra.mxu0 0.0
    %1245 = vmatprep.subr.mxu0 0.0
    %1246 = vmatpush2.msra.mxu0 0.0
    %1247 = vmatprep.subr.mxu0 0.0
    %1248 = vmatpush2.msra.mxu0 0.0
    %1249 = vmatprep.subr.mxu0 0.0
    %1250 = vmatpush2.msra.mxu0 0.0
    %1251 = vmatprep.subr.mxu0 0.0
    %1252 = vmatpush2.msra.mxu0 0.0
    %1253 = vmatprep.subr.mxu0 0.0
    %1254 = vmatpush2.msra.mxu0 0.0
    %1255 = vmatprep.subr.mxu0 0.0
    %1256 = vmatpush2.msra.mxu0 0.0
    %1257 = vmatprep.subr.mxu0 0.0
    %1258 = vmatpush2.msra.mxu0 0.0
    %1259 = vmatprep.subr.mxu0 0.0
    %1260 = vmatpush2.msra.mxu0 0.0
    %1261 = vmatprep.subr.mxu0 0.0
    %1262 = vmatpush2.msra.mxu0 0.0
    %1263 = vmatprep.subr.mxu0 0.0
    %1264 = vmatpush2.msra.mxu0 0.0
    %1265 = vmatprep.subr.mxu0 0.0
    %1266 = vmatpush2.msra.mxu0 0.0
    %1267 = vmatprep.subr.mxu0 0.0
    %1268 = vmatpush2.msra.mxu0 0.0
    %1269 = vmatprep.subr.mxu0 0.0
    %1270 = vmatpush2.msra.mxu0 0.0
    %1271 = vmatprep.subr.mxu0 0.0
    %1272 = vmatpush2.msra.mxu0 0.0
    %1273 = vmatprep.mubr.f32.mxu0 0.0
    %1274 = vmatmul.mubr.f32.gmra.mxu0 %v1137
    %v1275 = vpop.f32.mrf.mxu0
    %v1276 = vadd.f32 0.0, %v1275
    %v1277 = vpop.f32.mrf.mxu0
    %v1278 = vadd.f32 0.0, %v1277
    %1279 = vdwg.mxu0
    %1280 = vmatprep.subr.mxu0 %v549
    %1281 = vmatpush1.msra.mxu0 %v548
    %1282 = vmatprep.subr.mxu0 %v541
    %1283 = vmatpush1.msra.mxu0 %v540
    %1284 = vmatprep.subr.mxu0 %v533
    %1285 = vmatpush1.msra.mxu0 %v532
    %1286 = vmatprep.subr.mxu0 %v525
    %1287 = vmatpush1.msra.mxu0 %v524
    %1288 = vmatprep.subr.mxu0 %v517
    %1289 = vmatpush1.msra.mxu0 %v516
    %1290 = vmatprep.subr.mxu0 %v509
    %1291 = vmatpush1.msra.mxu0 %v508
    %1292 = vmatprep.subr.mxu0 %v501
    %1293 = vmatpush1.msra.mxu0 %v500
    %1294 = vmatprep.subr.mxu0 %v493
    %1295 = vmatpush1.msra.mxu0 %v492
    %1296 = vmatprep.subr.mxu0 %v485
    %1297 = vmatpush1.msra.mxu0 %v484
    %1298 = vmatprep.subr.mxu0 %v477
    %1299 = vmatpush1.msra.mxu0 %v476
    %1300 = vmatprep.subr.mxu0 %v469
    %1301 = vmatpush1.msra.mxu0 %v468
    %1302 = vmatprep.subr.mxu0 %v461
    %1303 = vmatpush1.msra.mxu0 %v460
    %1304 = vmatprep.subr.mxu0 %v453
    %1305 = vmatpush1.msra.mxu0 %v452
    %1306 = vmatprep.subr.mxu0 %v445
    %1307 = vmatpush1.msra.mxu0 %v444
    %1308 = vmatprep.subr.mxu0 %v437
    %1309 = vmatpush1.msra.mxu0 %v436
    %1310 = vmatprep.subr.mxu0 %v429
    %1311 = vmatpush1.msra.mxu0 %v428
    %1312 = vmatprep.subr.mxu0 0.0
    %1313 = vmatpush2.msra.mxu0 0.0
    %1314 = vmatprep.subr.mxu0 0.0
    %1315 = vmatpush2.msra.mxu0 0.0
    %1316 = vmatprep.subr.mxu0 0.0
    %1317 = vmatpush2.msra.mxu0 0.0
    %1318 = vmatprep.subr.mxu0 0.0
    %1319 = vmatpush2.msra.mxu0 0.0
    %1320 = vmatprep.subr.mxu0 0.0
    %1321 = vmatpush2.msra.mxu0 0.0
    %1322 = vmatprep.subr.mxu0 0.0
    %1323 = vmatpush2.msra.mxu0 0.0
    %1324 = vmatprep.subr.mxu0 0.0
    %1325 = vmatpush2.msra.mxu0 0.0
    %1326 = vmatprep.subr.mxu0 0.0
    %1327 = vmatpush2.msra.mxu0 0.0
    %1328 = vmatprep.subr.mxu0 0.0
    %1329 = vmatpush2.msra.mxu0 0.0
    %1330 = vmatprep.subr.mxu0 0.0
    %1331 = vmatpush2.msra.mxu0 0.0
    %1332 = vmatprep.subr.mxu0 0.0
    %1333 = vmatpush2.msra.mxu0 0.0
    %1334 = vmatprep.subr.mxu0 0.0
    %1335 = vmatpush2.msra.mxu0 0.0
    %1336 = vmatprep.subr.mxu0 0.0
    %1337 = vmatpush2.msra.mxu0 0.0
    %1338 = vmatprep.subr.mxu0 0.0
    %1339 = vmatpush2.msra.mxu0 0.0
    %1340 = vmatprep.subr.mxu0 0.0
    %1341 = vmatpush2.msra.mxu0 0.0
    %1342 = vmatprep.subr.mxu0 0.0
    %1343 = vmatpush2.msra.mxu0 0.0
    %1344 = vmatprep.mubr.f32.mxu0 0.0
    %1345 = vmatmul.mubr.f32.gmra.mxu0 %v1137
    %v1346 = vpop.f32.mrf.mxu0
    %v1347 = vadd.f32 0.0, %v1346
    %v1348 = vpop.f32.mrf.mxu0
    %v1349 = vadd.f32 0.0, %v1348
    %1350 = vdwg.mxu0
    %1351 = vmatprep.subr.mxu0 %v551
    %1352 = vmatpush1.msra.mxu0 %v550
    %1353 = vmatprep.subr.mxu0 %v543
    %1354 = vmatpush1.msra.mxu0 %v542
    %1355 = vmatprep.subr.mxu0 %v535
    %1356 = vmatpush1.msra.mxu0 %v534
    %1357 = vmatprep.subr.mxu0 %v527
    %1358 = vmatpush1.msra.mxu0 %v526
    %1359 = vmatprep.subr.mxu0 %v519
    %1360 = vmatpush1.msra.mxu0 %v518
    %1361 = vmatprep.subr.mxu0 %v511
    %1362 = vmatpush1.msra.mxu0 %v510
    %1363 = vmatprep.subr.mxu0 %v503
    %1364 = vmatpush1.msra.mxu0 %v502
    %1365 = vmatprep.subr.mxu0 %v495
    %1366 = vmatpush1.msra.mxu0 %v494
    %1367 = vmatprep.subr.mxu0 %v487
    %1368 = vmatpush1.msra.mxu0 %v486
    %1369 = vmatprep.subr.mxu0 %v479
    %1370 = vmatpush1.msra.mxu0 %v478
    %1371 = vmatprep.subr.mxu0 %v471
    %1372 = vmatpush1.msra.mxu0 %v470
    %1373 = vmatprep.subr.mxu0 %v463
    %1374 = vmatpush1.msra.mxu0 %v462
    %1375 = vmatprep.subr.mxu0 %v455
    %1376 = vmatpush1.msra.mxu0 %v454
    %1377 = vmatprep.subr.mxu0 %v447
    %1378 = vmatpush1.msra.mxu0 %v446
    %1379 = vmatprep.subr.mxu0 %v439
    %1380 = vmatpush1.msra.mxu0 %v438
    %1381 = vmatprep.subr.mxu0 %v431
    %1382 = vmatpush1.msra.mxu0 %v430
    %1383 = vmatprep.subr.mxu0 0.0
    %1384 = vmatpush2.msra.mxu0 0.0
    %1385 = vmatprep.subr.mxu0 0.0
    %1386 = vmatpush2.msra.mxu0 0.0
    %1387 = vmatprep.subr.mxu0 0.0
    %1388 = vmatpush2.msra.mxu0 0.0
    %1389 = vmatprep.subr.mxu0 0.0
    %1390 = vmatpush2.msra.mxu0 0.0
    %1391 = vmatprep.subr.mxu0 0.0
    %1392 = vmatpush2.msra.mxu0 0.0
    %1393 = vmatprep.subr.mxu0 0.0
    %1394 = vmatpush2.msra.mxu0 0.0
    %1395 = vmatprep.subr.mxu0 0.0
    %1396 = vmatpush2.msra.mxu0 0.0
    %1397 = vmatprep.subr.mxu0 0.0
    %1398 = vmatpush2.msra.mxu0 0.0
    %1399 = vmatprep.subr.mxu0 0.0
    %1400 = vmatpush2.msra.mxu0 0.0
    %1401 = vmatprep.subr.mxu0 0.0
    %1402 = vmatpush2.msra.mxu0 0.0
    %1403 = vmatprep.subr.mxu0 0.0
    %1404 = vmatpush2.msra.mxu0 0.0
    %1405 = vmatprep.subr.mxu0 0.0
    %1406 = vmatpush2.msra.mxu0 0.0
    %1407 = vmatprep.subr.mxu0 0.0
    %1408 = vmatpush2.msra.mxu0 0.0
    %1409 = vmatprep.subr.mxu0 0.0
    %1410 = vmatpush2.msra.mxu0 0.0
    %1411 = vmatprep.subr.mxu0 0.0
    %1412 = vmatpush2.msra.mxu0 0.0
    %1413 = vmatprep.subr.mxu0 0.0
    %1414 = vmatpush2.msra.mxu0 0.0
    %1415 = vmatprep.mubr.f32.mxu0 0.0
    %1416 = vmatmul.mubr.f32.gmra.mxu0 %v1137
    %v1417 = vpop.f32.mrf.mxu0
    %v1418 = vadd.f32 0.0, %v1417
    %v1419 = vpop.f32.mrf.mxu0
    %v1420 = vadd.f32 0.0, %v1419
    %1421 = vdwg.mxu0
    %v1422 = vadd.f32 %v1347, %v1037
    %v1423 = vadd.f32 %v1349, %v1039
    %v1424 = vadd.f32 %v1418, %v1108
    %v1425 = vadd.f32 %v1420, %v1110
    %v1426 = vmul.f32 %v1422, 0.5
    %v1427 = vmul.f32 %v1423, 0.5
    %v1428 = vmul.f32 %v1424, 0.5
    %v1429 = vtanh.pop %v1426
    %v1430 = vtanh.pop %v1427
    %v1431 = vtanh.pop %v1428
    %v1432 = vmul.f32 %v1429, 0.5
    %v1433 = vmul.f32 %v1430, 0.5
    %v1434 = vmul.f32 %v1431, 0.5
    %v1435 = vadd.f32 %v1432, 0.5
    %v1436 = vadd.f32 %v1433, 0.5
    %v1437 = vadd.f32 %v1434, 0.5
    %v1438 = vtanh.pop %v1425
    %v1439 = vmul.f32 %v1436, %v967
    %v1440 = vmul.f32 %v1435, %v1438
    %v1441 = vadd.f32 %v1439, %v1440
    %v1442 = vtanh.pop %v1441
    %v1443 = vmul.f32 %v1437, %v1442
    %1444 = vmatprep.subr.mxu0 %v613
    %1445 = vmatpush1.msra.mxu0 %v612
    %1446 = vmatprep.subr.mxu0 %v609
    %1447 = vmatpush1.msra.mxu0 %v608
    %1448 = vmatprep.subr.mxu0 %v605
    %1449 = vmatpush1.msra.mxu0 %v604
    %1450 = vmatprep.subr.mxu0 %v601
    %1451 = vmatpush1.msra.mxu0 %v600
    %1452 = vmatprep.subr.mxu0 %v597
    %1453 = vmatpush1.msra.mxu0 %v596
    %1454 = vmatprep.subr.mxu0 %v593
    %1455 = vmatpush1.msra.mxu0 %v592
    %1456 = vmatprep.subr.mxu0 %v589
    %1457 = vmatpush1.msra.mxu0 %v588
    %1458 = vmatprep.subr.mxu0 %v585
    %1459 = vmatpush1.msra.mxu0 %v584
    %1460 = vmatprep.subr.mxu0 %v581
    %1461 = vmatpush1.msra.mxu0 %v580
    %1462 = vmatprep.subr.mxu0 %v577
    %1463 = vmatpush1.msra.mxu0 %v576
    %1464 = vmatprep.subr.mxu0 %v573
    %1465 = vmatpush1.msra.mxu0 %v572
    %1466 = vmatprep.subr.mxu0 %v569
    %1467 = vmatpush1.msra.mxu0 %v568
    %1468 = vmatprep.subr.mxu0 %v565
    %1469 = vmatpush1.msra.mxu0 %v564
    %1470 = vmatprep.subr.mxu0 %v561
    %1471 = vmatpush1.msra.mxu0 %v560
    %1472 = vmatprep.subr.mxu0 %v557
    %1473 = vmatpush1.msra.mxu0 %v556
    %1474 = vmatprep.subr.mxu0 %v553
    %1475 = vmatpush1.msra.mxu0 %v552
    %1476 = vmatprep.subr.mxu0 0.0
    %1477 = vmatpush2.msra.mxu0 0.0
    %1478 = vmatprep.subr.mxu0 0.0
    %1479 = vmatpush2.msra.mxu0 0.0
    %1480 = vmatprep.subr.mxu0 0.0
    %1481 = vmatpush2.msra.mxu0 0.0
    %1482 = vmatprep.subr.mxu0 0.0
    %1483 = vmatpush2.msra.mxu0 0.0
    %1484 = vmatprep.subr.mxu0 0.0
    %1485 = vmatpush2.msra.mxu0 0.0
    %1486 = vmatprep.subr.mxu0 0.0
    %1487 = vmatpush2.msra.mxu0 0.0
    %1488 = vmatprep.subr.mxu0 0.0
    %1489 = vmatpush2.msra.mxu0 0.0
    %1490 = vmatprep.subr.mxu0 0.0
    %1491 = vmatpush2.msra.mxu0 0.0
    %1492 = vmatprep.subr.mxu0 0.0
    %1493 = vmatpush2.msra.mxu0 0.0
    %1494 = vmatprep.subr.mxu0 0.0
    %1495 = vmatpush2.msra.mxu0 0.0
    %1496 = vmatprep.subr.mxu0 0.0
    %1497 = vmatpush2.msra.mxu0 0.0
    %1498 = vmatprep.subr.mxu0 0.0
    %1499 = vmatpush2.msra.mxu0 0.0
    %1500 = vmatprep.subr.mxu0 0.0
    %1501 = vmatpush2.msra.mxu0 0.0
    %1502 = vmatprep.subr.mxu0 0.0
    %1503 = vmatpush2.msra.mxu0 0.0
    %1504 = vmatprep.subr.mxu0 0.0
    %1505 = vmatpush2.msra.mxu0 0.0
    %1506 = vmatprep.subr.mxu0 0.0
    %1507 = vmatpush2.msra.mxu0 0.0
    %1508 = vmatprep.mubr.f32.mxu0 0.0
    %1509 = vmatmul.mubr.f32.gmra.mxu0 %v1443
    %v1510 = vpop.f32.mrf.mxu0
    %v1511 = vadd.f32 %v621, %v1510
    %v1512 = vpop.f32.mrf.mxu0
    %v1513 = vadd.f32 %v625, %v1512
    %1514 = vdwg.mxu0
    %1515 = vmatprep.subr.mxu0 %v615
    %1516 = vmatpush1.msra.mxu0 %v614
    %1517 = vmatprep.subr.mxu0 %v611
    %1518 = vmatpush1.msra.mxu0 %v610
    %1519 = vmatprep.subr.mxu0 %v607
    %1520 = vmatpush1.msra.mxu0 %v606
    %1521 = vmatprep.subr.mxu0 %v603
    %1522 = vmatpush1.msra.mxu0 %v602
    %1523 = vmatprep.subr.mxu0 %v599
    %1524 = vmatpush1.msra.mxu0 %v598
    %1525 = vmatprep.subr.mxu0 %v595
    %1526 = vmatpush1.msra.mxu0 %v594
    %1527 = vmatprep.subr.mxu0 %v591
    %1528 = vmatpush1.msra.mxu0 %v590
    %1529 = vmatprep.subr.mxu0 %v587
    %1530 = vmatpush1.msra.mxu0 %v586
    %1531 = vmatprep.subr.mxu0 %v583
    %1532 = vmatpush1.msra.mxu0 %v582
    %1533 = vmatprep.subr.mxu0 %v579
    %1534 = vmatpush1.msra.mxu0 %v578
    %1535 = vmatprep.subr.mxu0 %v575
    %1536 = vmatpush1.msra.mxu0 %v574
    %1537 = vmatprep.subr.mxu0 %v571
    %1538 = vmatpush1.msra.mxu0 %v570
    %1539 = vmatprep.subr.mxu0 %v567
    %1540 = vmatpush1.msra.mxu0 %v566
    %1541 = vmatprep.subr.mxu0 %v563
    %1542 = vmatpush1.msra.mxu0 %v562
    %1543 = vmatprep.subr.mxu0 %v559
    %1544 = vmatpush1.msra.mxu0 %v558
    %1545 = vmatprep.subr.mxu0 %v555
    %1546 = vmatpush1.msra.mxu0 %v554
    %1547 = vmatprep.subr.mxu0 0.0
    %1548 = vmatpush2.msra.mxu0 0.0
    %1549 = vmatprep.subr.mxu0 0.0
    %1550 = vmatpush2.msra.mxu0 0.0
    %1551 = vmatprep.subr.mxu0 0.0
    %1552 = vmatpush2.msra.mxu0 0.0
    %1553 = vmatprep.subr.mxu0 0.0
    %1554 = vmatpush2.msra.mxu0 0.0
    %1555 = vmatprep.subr.mxu0 0.0
    %1556 = vmatpush2.msra.mxu0 0.0
    %1557 = vmatprep.subr.mxu0 0.0
    %1558 = vmatpush2.msra.mxu0 0.0
    %1559 = vmatprep.subr.mxu0 0.0
    %1560 = vmatpush2.msra.mxu0 0.0
    %1561 = vmatprep.subr.mxu0 0.0
    %1562 = vmatpush2.msra.mxu0 0.0
    %1563 = vmatprep.subr.mxu0 0.0
    %1564 = vmatpush2.msra.mxu0 0.0
    %1565 = vmatprep.subr.mxu0 0.0
    %1566 = vmatpush2.msra.mxu0 0.0
    %1567 = vmatprep.subr.mxu0 0.0
    %1568 = vmatpush2.msra.mxu0 0.0
    %1569 = vmatprep.subr.mxu0 0.0
    %1570 = vmatpush2.msra.mxu0 0.0
    %1571 = vmatprep.subr.mxu0 0.0
    %1572 = vmatpush2.msra.mxu0 0.0
    %1573 = vmatprep.subr.mxu0 0.0
    %1574 = vmatpush2.msra.mxu0 0.0
    %1575 = vmatprep.subr.mxu0 0.0
    %1576 = vmatpush2.msra.mxu0 0.0
    %1577 = vmatprep.subr.mxu0 0.0
    %1578 = vmatpush2.msra.mxu0 0.0
    %1579 = vmatprep.mubr.f32.mxu0 0.0
    %1580 = vmatmul.mubr.f32.gmra.mxu0 %v1443
    %v1581 = vpop.f32.mrf.mxu0
    %v1582 = vadd.f32 %v629, %v1581
    %v1583 = vpop.f32.mrf.mxu0
    %v1584 = vadd.f32 %v633, %v1583
    %1585 = vdwg.mxu0
    %v1586 = vld [vmem:[#allocation2 + $0x40] sm:$0xff]
    %v1587 = vld [vmem:[#allocation2 + $0x48] sm:$0xff]
    %v1588 = vld [vmem:[#allocation2 + $0x50] sm:$0xff]
    %v1589 = vld [vmem:[#allocation2 + $0x58] sm:$0xff]
    %v1590 = vadd.f32 %v1586, %v1205
    %v1591 = vadd.f32 %v1587, %v1207
    %v1592 = vadd.f32 %v1588, %v1276
    %v1593 = vadd.f32 %v1589, %v1278
    %v1594 = vmul.f32 %v1590, 0.5
    %v1595 = vmul.f32 %v1591, 0.5
    %v1596 = vmul.f32 %v1592, 0.5
    %v1597 = vtanh.pop %v1594
    %v1598 = vtanh.pop %v1595
    %v1599 = vtanh.pop %v1596
    %v1600 = vmul.f32 %v1597, 0.5
    %v1601 = vmul.f32 %v1598, 0.5
    %v1602 = vmul.f32 %v1599, 0.5
    %v1603 = vadd.f32 %v1600, 0.5
    %v1604 = vadd.f32 %v1601, 0.5
    %v1605 = vadd.f32 %v1602, 0.5
    %v1606 = vtanh.pop %v1593
    %v1607 = vmul.f32 %v1604, %v1135
    %v1608 = vmul.f32 %v1603, %v1606
    %v1609 = vadd.f32 %v1607, %v1608
    %v1610 = vtanh.pop %v1609
    %v1611 = vmul.f32 %v1605, %v1610
    %1612 = vmatprep.subr.mxu0 %v545
    %1613 = vmatpush1.msra.mxu0 %v544
    %1614 = vmatprep.subr.mxu0 %v537
    %1615 = vmatpush1.msra.mxu0 %v536
    %1616 = vmatprep.subr.mxu0 %v529
    %1617 = vmatpush1.msra.mxu0 %v528
    %1618 = vmatprep.subr.mxu0 %v521
    %1619 = vmatpush1.msra.mxu0 %v520
    %1620 = vmatprep.subr.mxu0 %v513
    %1621 = vmatpush1.msra.mxu0 %v512
    %1622 = vmatprep.subr.mxu0 %v505
    %1623 = vmatpush1.msra.mxu0 %v504
    %1624 = vmatprep.subr.mxu0 %v497
    %1625 = vmatpush1.msra.mxu0 %v496
    %1626 = vmatprep.subr.mxu0 %v489
    %1627 = vmatpush1.msra.mxu0 %v488
    %1628 = vmatprep.subr.mxu0 %v481
    %1629 = vmatpush1.msra.mxu0 %v480
    %1630 = vmatprep.subr.mxu0 %v473
    %1631 = vmatpush1.msra.mxu0 %v472
    %1632 = vmatprep.subr.mxu0 %v465
    %1633 = vmatpush1.msra.mxu0 %v464
    %1634 = vmatprep.subr.mxu0 %v457
    %1635 = vmatpush1.msra.mxu0 %v456
    %1636 = vmatprep.subr.mxu0 %v449
    %1637 = vmatpush1.msra.mxu0 %v448
    %1638 = vmatprep.subr.mxu0 %v441
    %1639 = vmatpush1.msra.mxu0 %v440
    %1640 = vmatprep.subr.mxu0 %v433
    %1641 = vmatpush1.msra.mxu0 %v432
    %1642 = vmatprep.subr.mxu0 %v425
    %1643 = vmatpush1.msra.mxu0 %v424
    %1644 = vmatprep.subr.mxu0 0.0
    %1645 = vmatpush2.msra.mxu0 0.0
    %1646 = vmatprep.subr.mxu0 0.0
    %1647 = vmatpush2.msra.mxu0 0.0
    %1648 = vmatprep.subr.mxu0 0.0
    %1649 = vmatpush2.msra.mxu0 0.0
    %1650 = vmatprep.subr.mxu0 0.0
    %1651 = vmatpush2.msra.mxu0 0.0
    %1652 = vmatprep.subr.mxu0 0.0
    %1653 = vmatpush2.msra.mxu0 0.0
    %1654 = vmatprep.subr.mxu0 0.0
    %1655 = vmatpush2.msra.mxu0 0.0
    %1656 = vmatprep.subr.mxu0 0.0
    %1657 = vmatpush2.msra.mxu0 0.0
    %1658 = vmatprep.subr.mxu0 0.0
    %1659 = vmatpush2.msra.mxu0 0.0
    %1660 = vmatprep.subr.mxu0 0.0
    %1661 = vmatpush2.msra.mxu0 0.0
    %1662 = vmatprep.subr.mxu0 0.0
    %1663 = vmatpush2.msra.mxu0 0.0
    %1664 = vmatprep.subr.mxu0 0.0
    %1665 = vmatpush2.msra.mxu0 0.0
    %1666 = vmatprep.subr.mxu0 0.0
    %1667 = vmatpush2.msra.mxu0 0.0
    %1668 = vmatprep.subr.mxu0 0.0
    %1669 = vmatpush2.msra.mxu0 0.0
    %1670 = vmatprep.subr.mxu0 0.0
    %1671 = vmatpush2.msra.mxu0 0.0
    %1672 = vmatprep.subr.mxu0 0.0
    %1673 = vmatpush2.msra.mxu0 0.0
    %1674 = vmatprep.subr.mxu0 0.0
    %1675 = vmatpush2.msra.mxu0 0.0
    %1676 = vmatprep.mubr.f32.mxu0 0.0
    %1677 = vmatmul.mubr.f32.gmra.mxu0 %v1611
    %v1678 = vpop.f32.mrf.mxu0
    %v1679 = vadd.f32 0.0, %v1678
    %v1680 = vpop.f32.mrf.mxu0
    %v1681 = vadd.f32 0.0, %v1680
    %1682 = vdwg.mxu0
    %1683 = vmatprep.subr.mxu0 %v547
    %1684 = vmatpush1.msra.mxu0 %v546
    %1685 = vmatprep.subr.mxu0 %v539
    %1686 = vmatpush1.msra.mxu0 %v538
    %1687 = vmatprep.subr.mxu0 %v531
    %1688 = vmatpush1.msra.mxu0 %v530
    %1689 = vmatprep.subr.mxu0 %v523
    %1690 = vmatpush1.msra.mxu0 %v522
    %1691 = vmatprep.subr.mxu0 %v515
    %1692 = vmatpush1.msra.mxu0 %v514
    %1693 = vmatprep.subr.mxu0 %v507
    %1694 = vmatpush1.msra.mxu0 %v506
    %1695 = vmatprep.subr.mxu0 %v499
    %1696 = vmatpush1.msra.mxu0 %v498
    %1697 = vmatprep.subr.mxu0 %v491
    %1698 = vmatpush1.msra.mxu0 %v490
    %1699 = vmatprep.subr.mxu0 %v483
    %1700 = vmatpush1.msra.mxu0 %v482
    %1701 = vmatprep.subr.mxu0 %v475
    %1702 = vmatpush1.msra.mxu0 %v474
    %1703 = vmatprep.subr.mxu0 %v467
    %1704 = vmatpush1.msra.mxu0 %v466
    %1705 = vmatprep.subr.mxu0 %v459
    %1706 = vmatpush1.msra.mxu0 %v458
    %1707 = vmatprep.subr.mxu0 %v451
    %1708 = vmatpush1.msra.mxu0 %v450
    %1709 = vmatprep.subr.mxu0 %v443
    %1710 = vmatpush1.msra.mxu0 %v442
    %1711 = vmatprep.subr.mxu0 %v435
    %1712 = vmatpush1.msra.mxu0 %v434
    %1713 = vmatprep.subr.mxu0 %v427
    %1714 = vmatpush1.msra.mxu0 %v426
    %1715 = vmatprep.subr.mxu0 0.0
    %1716 = vmatpush2.msra.mxu0 0.0
    %1717 = vmatprep.subr.mxu0 0.0
    %1718 = vmatpush2.msra.mxu0 0.0
    %1719 = vmatprep.subr.mxu0 0.0
    %1720 = vmatpush2.msra.mxu0 0.0
    %1721 = vmatprep.subr.mxu0 0.0
    %1722 = vmatpush2.msra.mxu0 0.0
    %1723 = vmatprep.subr.mxu0 0.0
    %1724 = vmatpush2.msra.mxu0 0.0
    %1725 = vmatprep.subr.mxu0 0.0
    %1726 = vmatpush2.msra.mxu0 0.0
    %1727 = vmatprep.subr.mxu0 0.0
    %1728 = vmatpush2.msra.mxu0 0.0
    %1729 = vmatprep.subr.mxu0 0.0
    %1730 = vmatpush2.msra.mxu0 0.0
    %1731 = vmatprep.subr.mxu0 0.0
    %1732 = vmatpush2.msra.mxu0 0.0
    %1733 = vmatprep.subr.mxu0 0.0
    %1734 = vmatpush2.msra.mxu0 0.0
    %1735 = vmatprep.subr.mxu0 0.0
    %1736 = vmatpush2.msra.mxu0 0.0
    %1737 = vmatprep.subr.mxu0 0.0
    %1738 = vmatpush2.msra.mxu0 0.0
    %1739 = vmatprep.subr.mxu0 0.0
    %1740 = vmatpush2.msra.mxu0 0.0
    %1741 = vmatprep.subr.mxu0 0.0
    %1742 = vmatpush2.msra.mxu0 0.0
    %1743 = vmatprep.subr.mxu0 0.0
    %1744 = vmatpush2.msra.mxu0 0.0
    %1745 = vmatprep.subr.mxu0 0.0
    %1746 = vmatpush2.msra.mxu0 0.0
    %1747 = vmatprep.mubr.f32.mxu0 0.0
    %1748 = vmatmul.mubr.f32.gmra.mxu0 %v1611
    %v1749 = vpop.f32.mrf.mxu0
    %v1750 = vadd.f32 0.0, %v1749
    %v1751 = vpop.f32.mrf.mxu0
    %v1752 = vadd.f32 0.0, %v1751
    %1753 = vdwg.mxu0
    %1754 = vmatprep.subr.mxu0 %v549
    %1755 = vmatpush1.msra.mxu0 %v548
    %1756 = vmatprep.subr.mxu0 %v541
    %1757 = vmatpush1.msra.mxu0 %v540
    %1758 = vmatprep.subr.mxu0 %v533
    %1759 = vmatpush1.msra.mxu0 %v532
    %1760 = vmatprep.subr.mxu0 %v525
    %1761 = vmatpush1.msra.mxu0 %v524
    %1762 = vmatprep.subr.mxu0 %v517
    %1763 = vmatpush1.msra.mxu0 %v516
    %1764 = vmatprep.subr.mxu0 %v509
    %1765 = vmatpush1.msra.mxu0 %v508
    %1766 = vmatprep.subr.mxu0 %v501
    %1767 = vmatpush1.msra.mxu0 %v500
    %1768 = vmatprep.subr.mxu0 %v493
    %1769 = vmatpush1.msra.mxu0 %v492
    %1770 = vmatprep.subr.mxu0 %v485
    %1771 = vmatpush1.msra.mxu0 %v484
    %1772 = vmatprep.subr.mxu0 %v477
    %1773 = vmatpush1.msra.mxu0 %v476
    %1774 = vmatprep.subr.mxu0 %v469
    %1775 = vmatpush1.msra.mxu0 %v468
    %1776 = vmatprep.subr.mxu0 %v461
    %1777 = vmatpush1.msra.mxu0 %v460
    %1778 = vmatprep.subr.mxu0 %v453
    %1779 = vmatpush1.msra.mxu0 %v452
    %1780 = vmatprep.subr.mxu0 %v445
    %1781 = vmatpush1.msra.mxu0 %v444
    %1782 = vmatprep.subr.mxu0 %v437
    %1783 = vmatpush1.msra.mxu0 %v436
    %1784 = vmatprep.subr.mxu0 %v429
    %1785 = vmatpush1.msra.mxu0 %v428
    %1786 = vmatprep.subr.mxu0 0.0
    %1787 = vmatpush2.msra.mxu0 0.0
    %1788 = vmatprep.subr.mxu0 0.0
    %1789 = vmatpush2.msra.mxu0 0.0
    %1790 = vmatprep.subr.mxu0 0.0
    %1791 = vmatpush2.msra.mxu0 0.0
    %1792 = vmatprep.subr.mxu0 0.0
    %1793 = vmatpush2.msra.mxu0 0.0
    %1794 = vmatprep.subr.mxu0 0.0
    %1795 = vmatpush2.msra.mxu0 0.0
    %1796 = vmatprep.subr.mxu0 0.0
    %1797 = vmatpush2.msra.mxu0 0.0
    %1798 = vmatprep.subr.mxu0 0.0
    %1799 = vmatpush2.msra.mxu0 0.0
    %1800 = vmatprep.subr.mxu0 0.0
    %1801 = vmatpush2.msra.mxu0 0.0
    %1802 = vmatprep.subr.mxu0 0.0
    %1803 = vmatpush2.msra.mxu0 0.0
    %1804 = vmatprep.subr.mxu0 0.0
    %1805 = vmatpush2.msra.mxu0 0.0
    %1806 = vmatprep.subr.mxu0 0.0
    %1807 = vmatpush2.msra.mxu0 0.0
    %1808 = vmatprep.subr.mxu0 0.0
    %1809 = vmatpush2.msra.mxu0 0.0
    %1810 = vmatprep.subr.mxu0 0.0
    %1811 = vmatpush2.msra.mxu0 0.0
    %1812 = vmatprep.subr.mxu0 0.0
    %1813 = vmatpush2.msra.mxu0 0.0
    %1814 = vmatprep.subr.mxu0 0.0
    %1815 = vmatpush2.msra.mxu0 0.0
    %1816 = vmatprep.subr.mxu0 0.0
    %1817 = vmatpush2.msra.mxu0 0.0
    %1818 = vmatprep.mubr.f32.mxu0 0.0
    %1819 = vmatmul.mubr.f32.gmra.mxu0 %v1611
    %v1820 = vpop.f32.mrf.mxu0
    %v1821 = vadd.f32 0.0, %v1820
    %v1822 = vpop.f32.mrf.mxu0
    %v1823 = vadd.f32 0.0, %v1822
    %1824 = vdwg.mxu0
    %1825 = vmatprep.subr.mxu0 %v551
    %1826 = vmatpush1.msra.mxu0 %v550
    %1827 = vmatprep.subr.mxu0 %v543
    %1828 = vmatpush1.msra.mxu0 %v542
    %1829 = vmatprep.subr.mxu0 %v535
    %1830 = vmatpush1.msra.mxu0 %v534
    %1831 = vmatprep.subr.mxu0 %v527
    %1832 = vmatpush1.msra.mxu0 %v526
    %1833 = vmatprep.subr.mxu0 %v519
    %1834 = vmatpush1.msra.mxu0 %v518
    %1835 = vmatprep.subr.mxu0 %v511
    %1836 = vmatpush1.msra.mxu0 %v510
    %1837 = vmatprep.subr.mxu0 %v503
    %1838 = vmatpush1.msra.mxu0 %v502
    %1839 = vmatprep.subr.mxu0 %v495
    %1840 = vmatpush1.msra.mxu0 %v494
    %1841 = vmatprep.subr.mxu0 %v487
    %1842 = vmatpush1.msra.mxu0 %v486
    %1843 = vmatprep.subr.mxu0 %v479
    %1844 = vmatpush1.msra.mxu0 %v478
    %1845 = vmatprep.subr.mxu0 %v471
    %1846 = vmatpush1.msra.mxu0 %v470
    %1847 = vmatprep.subr.mxu0 %v463
    %1848 = vmatpush1.msra.mxu0 %v462
    %1849 = vmatprep.subr.mxu0 %v455
    %1850 = vmatpush1.msra.mxu0 %v454
    %1851 = vmatprep.subr.mxu0 %v447
    %1852 = vmatpush1.msra.mxu0 %v446
    %1853 = vmatprep.subr.mxu0 %v439
    %1854 = vmatpush1.msra.mxu0 %v438
    %1855 = vmatprep.subr.mxu0 %v431
    %1856 = vmatpush1.msra.mxu0 %v430
    %1857 = vmatprep.subr.mxu0 0.0
    %1858 = vmatpush2.msra.mxu0 0.0
    %1859 = vmatprep.subr.mxu0 0.0
    %1860 = vmatpush2.msra.mxu0 0.0
    %1861 = vmatprep.subr.mxu0 0.0
    %1862 = vmatpush2.msra.mxu0 0.0
    %1863 = vmatprep.subr.mxu0 0.0
    %1864 = vmatpush2.msra.mxu0 0.0
    %1865 = vmatprep.subr.mxu0 0.0
    %1866 = vmatpush2.msra.mxu0 0.0
    %1867 = vmatprep.subr.mxu0 0.0
    %1868 = vmatpush2.msra.mxu0 0.0
    %1869 = vmatprep.subr.mxu0 0.0
    %1870 = vmatpush2.msra.mxu0 0.0
    %1871 = vmatprep.subr.mxu0 0.0
    %1872 = vmatpush2.msra.mxu0 0.0
    %1873 = vmatprep.subr.mxu0 0.0
    %1874 = vmatpush2.msra.mxu0 0.0
    %1875 = vmatprep.subr.mxu0 0.0
    %1876 = vmatpush2.msra.mxu0 0.0
    %1877 = vmatprep.subr.mxu0 0.0
    %1878 = vmatpush2.msra.mxu0 0.0
    %1879 = vmatprep.subr.mxu0 0.0
    %1880 = vmatpush2.msra.mxu0 0.0
    %1881 = vmatprep.subr.mxu0 0.0
    %1882 = vmatpush2.msra.mxu0 0.0
    %1883 = vmatprep.subr.mxu0 0.0
    %1884 = vmatpush2.msra.mxu0 0.0
    %1885 = vmatprep.subr.mxu0 0.0
    %1886 = vmatpush2.msra.mxu0 0.0
    %1887 = vmatprep.subr.mxu0 0.0
    %1888 = vmatpush2.msra.mxu0 0.0
    %1889 = vmatprep.mubr.f32.mxu0 0.0
    %1890 = vmatmul.mubr.f32.gmra.mxu0 %v1611
    %v1891 = vpop.f32.mrf.mxu0
    %v1892 = vadd.f32 0.0, %v1891
    %v1893 = vpop.f32.mrf.mxu0
    %v1894 = vadd.f32 0.0, %v1893
    %1895 = vdwg.mxu0
    %v1896 = vadd.f32 %v1821, %v1511
    %v1897 = vadd.f32 %v1823, %v1513
    %v1898 = vadd.f32 %v1892, %v1582
    %v1899 = vadd.f32 %v1894, %v1584
    %v1900 = vmul.f32 %v1896, 0.5
    %v1901 = vmul.f32 %v1897, 0.5
    %v1902 = vmul.f32 %v1898, 0.5
    %v1903 = vtanh.pop %v1900
    %v1904 = vtanh.pop %v1901
    %v1905 = vtanh.pop %v1902
    %v1906 = vmul.f32 %v1903, 0.5
    %v1907 = vmul.f32 %v1904, 0.5
    %v1908 = vmul.f32 %v1905, 0.5
    %v1909 = vadd.f32 %v1906, 0.5
    %v1910 = vadd.f32 %v1907, 0.5
    %v1911 = vadd.f32 %v1908, 0.5
    %v1912 = vtanh.pop %v1899
    %v1913 = vmul.f32 %v1910, %v1441
    %v1914 = vmul.f32 %v1909, %v1912
    %v1915 = vadd.f32 %v1913, %v1914
    %v1916 = vtanh.pop %v1915
    %v1917 = vmul.f32 %v1911, %v1916
    %1918 = vmatprep.subr.mxu0 %v613
    %1919 = vmatpush1.msra.mxu0 %v612
    %1920 = vmatprep.subr.mxu0 %v609
    %1921 = vmatpush1.msra.mxu0 %v608
    %1922 = vmatprep.subr.mxu0 %v605
    %1923 = vmatpush1.msra.mxu0 %v604
    %1924 = vmatprep.subr.mxu0 %v601
    %1925 = vmatpush1.msra.mxu0 %v600
    %1926 = vmatprep.subr.mxu0 %v597
    %1927 = vmatpush1.msra.mxu0 %v596
    %1928 = vmatprep.subr.mxu0 %v593
    %1929 = vmatpush1.msra.mxu0 %v592
    %1930 = vmatprep.subr.mxu0 %v589
    %1931 = vmatpush1.msra.mxu0 %v588
    %1932 = vmatprep.subr.mxu0 %v585
    %1933 = vmatpush1.msra.mxu0 %v584
    %1934 = vmatprep.subr.mxu0 %v581
    %1935 = vmatpush1.msra.mxu0 %v580
    %1936 = vmatprep.subr.mxu0 %v577
    %1937 = vmatpush1.msra.mxu0 %v576
    %1938 = vmatprep.subr.mxu0 %v573
    %1939 = vmatpush1.msra.mxu0 %v572
    %1940 = vmatprep.subr.mxu0 %v569
    %1941 = vmatpush1.msra.mxu0 %v568
    %1942 = vmatprep.subr.mxu0 %v565
    %1943 = vmatpush1.msra.mxu0 %v564
    %1944 = vmatprep.subr.mxu0 %v561
    %1945 = vmatpush1.msra.mxu0 %v560
    %1946 = vmatprep.subr.mxu0 %v557
    %1947 = vmatpush1.msra.mxu0 %v556
    %1948 = vmatprep.subr.mxu0 %v553
    %1949 = vmatpush1.msra.mxu0 %v552
    %1950 = vmatprep.subr.mxu0 0.0
    %1951 = vmatpush2.msra.mxu0 0.0
    %1952 = vmatprep.subr.mxu0 0.0
    %1953 = vmatpush2.msra.mxu0 0.0
    %1954 = vmatprep.subr.mxu0 0.0
    %1955 = vmatpush2.msra.mxu0 0.0
    %1956 = vmatprep.subr.mxu0 0.0
    %1957 = vmatpush2.msra.mxu0 0.0
    %1958 = vmatprep.subr.mxu0 0.0
    %1959 = vmatpush2.msra.mxu0 0.0
    %1960 = vmatprep.subr.mxu0 0.0
    %1961 = vmatpush2.msra.mxu0 0.0
    %1962 = vmatprep.subr.mxu0 0.0
    %1963 = vmatpush2.msra.mxu0 0.0
    %1964 = vmatprep.subr.mxu0 0.0
    %1965 = vmatpush2.msra.mxu0 0.0
    %1966 = vmatprep.subr.mxu0 0.0
    %1967 = vmatpush2.msra.mxu0 0.0
    %1968 = vmatprep.subr.mxu0 0.0
    %1969 = vmatpush2.msra.mxu0 0.0
    %1970 = vmatprep.subr.mxu0 0.0
    %1971 = vmatpush2.msra.mxu0 0.0
    %1972 = vmatprep.subr.mxu0 0.0
    %1973 = vmatpush2.msra.mxu0 0.0
    %1974 = vmatprep.subr.mxu0 0.0
    %1975 = vmatpush2.msra.mxu0 0.0
    %1976 = vmatprep.subr.mxu0 0.0
    %1977 = vmatpush2.msra.mxu0 0.0
    %1978 = vmatprep.subr.mxu0 0.0
    %1979 = vmatpush2.msra.mxu0 0.0
    %1980 = vmatprep.subr.mxu0 0.0
    %1981 = vmatpush2.msra.mxu0 0.0
    %1982 = vmatprep.mubr.f32.mxu0 0.0
    %1983 = vmatmul.mubr.f32.gmra.mxu0 %v1917
    %v1984 = vpop.f32.mrf.mxu0
    %v1985 = vadd.f32 %v621, %v1984
    %v1986 = vpop.f32.mrf.mxu0
    %v1987 = vadd.f32 %v625, %v1986
    %1988 = vdwg.mxu0
    %1989 = vmatprep.subr.mxu0 %v615
    %1990 = vmatpush1.msra.mxu0 %v614
    %1991 = vmatprep.subr.mxu0 %v611
    %1992 = vmatpush1.msra.mxu0 %v610
    %1993 = vmatprep.subr.mxu0 %v607
    %1994 = vmatpush1.msra.mxu0 %v606
    %1995 = vmatprep.subr.mxu0 %v603
    %1996 = vmatpush1.msra.mxu0 %v602
    %1997 = vmatprep.subr.mxu0 %v599
    %1998 = vmatpush1.msra.mxu0 %v598
    %1999 = vmatprep.subr.mxu0 %v595
    %2000 = vmatpush1.msra.mxu0 %v594
    %2001 = vmatprep.subr.mxu0 %v591
    %2002 = vmatpush1.msra.mxu0 %v590
    %2003 = vmatprep.subr.mxu0 %v587
    %2004 = vmatpush1.msra.mxu0 %v586
    %2005 = vmatprep.subr.mxu0 %v583
    %2006 = vmatpush1.msra.mxu0 %v582
    %2007 = vmatprep.subr.mxu0 %v579
    %2008 = vmatpush1.msra.mxu0 %v578
    %2009 = vmatprep.subr.mxu0 %v575
    %2010 = vmatpush1.msra.mxu0 %v574
    %2011 = vmatprep.subr.mxu0 %v571
    %2012 = vmatpush1.msra.mxu0 %v570
    %2013 = vmatprep.subr.mxu0 %v567
    %2014 = vmatpush1.msra.mxu0 %v566
    %2015 = vmatprep.subr.mxu0 %v563
    %2016 = vmatpush1.msra.mxu0 %v562
    %2017 = vmatprep.subr.mxu0 %v559
    %2018 = vmatpush1.msra.mxu0 %v558
    %2019 = vmatprep.subr.mxu0 %v555
    %2020 = vmatpush1.msra.mxu0 %v554
    %2021 = vmatprep.subr.mxu0 0.0
    %2022 = vmatpush2.msra.mxu0 0.0
    %2023 = vmatprep.subr.mxu0 0.0
    %2024 = vmatpush2.msra.mxu0 0.0
    %2025 = vmatprep.subr.mxu0 0.0
    %2026 = vmatpush2.msra.mxu0 0.0
    %2027 = vmatprep.subr.mxu0 0.0
    %2028 = vmatpush2.msra.mxu0 0.0
    %2029 = vmatprep.subr.mxu0 0.0
    %2030 = vmatpush2.msra.mxu0 0.0
    %2031 = vmatprep.subr.mxu0 0.0
    %2032 = vmatpush2.msra.mxu0 0.0
    %2033 = vmatprep.subr.mxu0 0.0
    %2034 = vmatpush2.msra.mxu0 0.0
    %2035 = vmatprep.subr.mxu0 0.0
    %2036 = vmatpush2.msra.mxu0 0.0
    %2037 = vmatprep.subr.mxu0 0.0
    %2038 = vmatpush2.msra.mxu0 0.0
    %2039 = vmatprep.subr.mxu0 0.0
    %2040 = vmatpush2.msra.mxu0 0.0
    %2041 = vmatprep.subr.mxu0 0.0
    %2042 = vmatpush2.msra.mxu0 0.0
    %2043 = vmatprep.subr.mxu0 0.0
    %2044 = vmatpush2.msra.mxu0 0.0
    %2045 = vmatprep.subr.mxu0 0.0
    %2046 = vmatpush2.msra.mxu0 0.0
    %2047 = vmatprep.subr.mxu0 0.0
    %2048 = vmatpush2.msra.mxu0 0.0
    %2049 = vmatprep.subr.mxu0 0.0
    %2050 = vmatpush2.msra.mxu0 0.0
    %2051 = vmatprep.subr.mxu0 0.0
    %2052 = vmatpush2.msra.mxu0 0.0
    %2053 = vmatprep.mubr.f32.mxu0 0.0
    %2054 = vmatmul.mubr.f32.gmra.mxu0 %v1917
    %v2055 = vpop.f32.mrf.mxu0
    %v2056 = vadd.f32 %v629, %v2055
    %v2057 = vpop.f32.mrf.mxu0
    %v2058 = vadd.f32 %v633, %v2057
    %2059 = vdwg.mxu0
    %v2060 = vld [vmem:[#allocation2 + $0x60] sm:$0xff]
    %v2061 = vld [vmem:[#allocation2 + $0x68] sm:$0xff]
    %v2062 = vld [vmem:[#allocation2 + $0x70] sm:$0xff]
    %v2063 = vld [vmem:[#allocation2 + $0x78] sm:$0xff]
    %v2064 = vadd.f32 %v2060, %v1679
    %v2065 = vadd.f32 %v2061, %v1681
    %v2066 = vadd.f32 %v2062, %v1750
    %v2067 = vadd.f32 %v2063, %v1752
    %v2068 = vmul.f32 %v2064, 0.5
    %v2069 = vmul.f32 %v2065, 0.5
    %v2070 = vmul.f32 %v2066, 0.5
    %v2071 = vtanh.pop %v2068
    %v2072 = vtanh.pop %v2069
    %v2073 = vtanh.pop %v2070
    %v2074 = vmul.f32 %v2071, 0.5
    %v2075 = vmul.f32 %v2072, 0.5
    %v2076 = vmul.f32 %v2073, 0.5
    %v2077 = vadd.f32 %v2074, 0.5
    %v2078 = vadd.f32 %v2075, 0.5
    %v2079 = vadd.f32 %v2076, 0.5
    %v2080 = vtanh.pop %v2067
    %v2081 = vmul.f32 %v2078, %v1609
    %v2082 = vmul.f32 %v2077, %v2080
    %v2083 = vadd.f32 %v2081, %v2082
    %v2084 = vtanh.pop %v2083
    %v2085 = vmul.f32 %v2079, %v2084
    %2086 = vmatprep.subr.mxu0 %v545
    %2087 = vmatpush1.msra.mxu0 %v544
    %2088 = vmatprep.subr.mxu0 %v537
    %2089 = vmatpush1.msra.mxu0 %v536
    %2090 = vmatprep.subr.mxu0 %v529
    %2091 = vmatpush1.msra.mxu0 %v528
    %2092 = vmatprep.subr.mxu0 %v521
    %2093 = vmatpush1.msra.mxu0 %v520
    %2094 = vmatprep.subr.mxu0 %v513
    %2095 = vmatpush1.msra.mxu0 %v512
    %2096 = vmatprep.subr.mxu0 %v505
    %2097 = vmatpush1.msra.mxu0 %v504
    %2098 = vmatprep.subr.mxu0 %v497
    %2099 = vmatpush1.msra.mxu0 %v496
    %2100 = vmatprep.subr.mxu0 %v489
    %2101 = vmatpush1.msra.mxu0 %v488
    %2102 = vmatprep.subr.mxu0 %v481
    %2103 = vmatpush1.msra.mxu0 %v480
    %2104 = vmatprep.subr.mxu0 %v473
    %2105 = vmatpush1.msra.mxu0 %v472
    %2106 = vmatprep.subr.mxu0 %v465
    %2107 = vmatpush1.msra.mxu0 %v464
    %2108 = vmatprep.subr.mxu0 %v457
    %2109 = vmatpush1.msra.mxu0 %v456
    %2110 = vmatprep.subr.mxu0 %v449
    %2111 = vmatpush1.msra.mxu0 %v448
    %2112 = vmatprep.subr.mxu0 %v441
    %2113 = vmatpush1.msra.mxu0 %v440
    %2114 = vmatprep.subr.mxu0 %v433
    %2115 = vmatpush1.msra.mxu0 %v432
    %2116 = vmatprep.subr.mxu0 %v425
    %2117 = vmatpush1.msra.mxu0 %v424
    %2118 = vmatprep.subr.mxu0 0.0
    %2119 = vmatpush2.msra.mxu0 0.0
    %2120 = vmatprep.subr.mxu0 0.0
    %2121 = vmatpush2.msra.mxu0 0.0
    %2122 = vmatprep.subr.mxu0 0.0
    %2123 = vmatpush2.msra.mxu0 0.0
    %2124 = vmatprep.subr.mxu0 0.0
    %2125 = vmatpush2.msra.mxu0 0.0
    %2126 = vmatprep.subr.mxu0 0.0
    %2127 = vmatpush2.msra.mxu0 0.0
    %2128 = vmatprep.subr.mxu0 0.0
    %2129 = vmatpush2.msra.mxu0 0.0
    %2130 = vmatprep.subr.mxu0 0.0
    %2131 = vmatpush2.msra.mxu0 0.0
    %2132 = vmatprep.subr.mxu0 0.0
    %2133 = vmatpush2.msra.mxu0 0.0
    %2134 = vmatprep.subr.mxu0 0.0
    %2135 = vmatpush2.msra.mxu0 0.0
    %2136 = vmatprep.subr.mxu0 0.0
    %2137 = vmatpush2.msra.mxu0 0.0
    %2138 = vmatprep.subr.mxu0 0.0
    %2139 = vmatpush2.msra.mxu0 0.0
    %2140 = vmatprep.subr.mxu0 0.0
    %2141 = vmatpush2.msra.mxu0 0.0
    %2142 = vmatprep.subr.mxu0 0.0
    %2143 = vmatpush2.msra.mxu0 0.0
    %2144 = vmatprep.subr.mxu0 0.0
    %2145 = vmatpush2.msra.mxu0 0.0
    %2146 = vmatprep.subr.mxu0 0.0
    %2147 = vmatpush2.msra.mxu0 0.0
    %2148 = vmatprep.subr.mxu0 0.0
    %2149 = vmatpush2.msra.mxu0 0.0
    %2150 = vmatprep.mubr.f32.mxu0 0.0
    %2151 = vmatmul.mubr.f32.gmra.mxu0 %v2085
    %v2152 = vpop.f32.mrf.mxu0
    %v2153 = vadd.f32 0.0, %v2152
    %v2154 = vpop.f32.mrf.mxu0
    %v2155 = vadd.f32 0.0, %v2154
    %2156 = vdwg.mxu0
    %2157 = vmatprep.subr.mxu0 %v547
    %2158 = vmatpush1.msra.mxu0 %v546
    %2159 = vmatprep.subr.mxu0 %v539
    %2160 = vmatpush1.msra.mxu0 %v538
    %2161 = vmatprep.subr.mxu0 %v531
    %2162 = vmatpush1.msra.mxu0 %v530
    %2163 = vmatprep.subr.mxu0 %v523
    %2164 = vmatpush1.msra.mxu0 %v522
    %2165 = vmatprep.subr.mxu0 %v515
    %2166 = vmatpush1.msra.mxu0 %v514
    %2167 = vmatprep.subr.mxu0 %v507
    %2168 = vmatpush1.msra.mxu0 %v506
    %2169 = vmatprep.subr.mxu0 %v499
    %2170 = vmatpush1.msra.mxu0 %v498
    %2171 = vmatprep.subr.mxu0 %v491
    %2172 = vmatpush1.msra.mxu0 %v490
    %2173 = vmatprep.subr.mxu0 %v483
    %2174 = vmatpush1.msra.mxu0 %v482
    %2175 = vmatprep.subr.mxu0 %v475
    %2176 = vmatpush1.msra.mxu0 %v474
    %2177 = vmatprep.subr.mxu0 %v467
    %2178 = vmatpush1.msra.mxu0 %v466
    %2179 = vmatprep.subr.mxu0 %v459
    %2180 = vmatpush1.msra.mxu0 %v458
    %2181 = vmatprep.subr.mxu0 %v451
    %2182 = vmatpush1.msra.mxu0 %v450
    %2183 = vmatprep.subr.mxu0 %v443
    %2184 = vmatpush1.msra.mxu0 %v442
    %2185 = vmatprep.subr.mxu0 %v435
    %2186 = vmatpush1.msra.mxu0 %v434
    %2187 = vmatprep.subr.mxu0 %v427
    %2188 = vmatpush1.msra.mxu0 %v426
    %2189 = vmatprep.subr.mxu0 0.0
    %2190 = vmatpush2.msra.mxu0 0.0
    %2191 = vmatprep.subr.mxu0 0.0
    %2192 = vmatpush2.msra.mxu0 0.0
    %2193 = vmatprep.subr.mxu0 0.0
    %2194 = vmatpush2.msra.mxu0 0.0
    %2195 = vmatprep.subr.mxu0 0.0
    %2196 = vmatpush2.msra.mxu0 0.0
    %2197 = vmatprep.subr.mxu0 0.0
    %2198 = vmatpush2.msra.mxu0 0.0
    %2199 = vmatprep.subr.mxu0 0.0
    %2200 = vmatpush2.msra.mxu0 0.0
    %2201 = vmatprep.subr.mxu0 0.0
    %2202 = vmatpush2.msra.mxu0 0.0
    %2203 = vmatprep.subr.mxu0 0.0
    %2204 = vmatpush2.msra.mxu0 0.0
    %2205 = vmatprep.subr.mxu0 0.0
    %2206 = vmatpush2.msra.mxu0 0.0
    %2207 = vmatprep.subr.mxu0 0.0
    %2208 = vmatpush2.msra.mxu0 0.0
    %2209 = vmatprep.subr.mxu0 0.0
    %2210 = vmatpush2.msra.mxu0 0.0
    %2211 = vmatprep.subr.mxu0 0.0
    %2212 = vmatpush2.msra.mxu0 0.0
    %2213 = vmatprep.subr.mxu0 0.0
    %2214 = vmatpush2.msra.mxu0 0.0
    %2215 = vmatprep.subr.mxu0 0.0
    %2216 = vmatpush2.msra.mxu0 0.0
    %2217 = vmatprep.subr.mxu0 0.0
    %2218 = vmatpush2.msra.mxu0 0.0
    %2219 = vmatprep.subr.mxu0 0.0
    %2220 = vmatpush2.msra.mxu0 0.0
    %2221 = vmatprep.mubr.f32.mxu0 0.0
    %2222 = vmatmul.mubr.f32.gmra.mxu0 %v2085
    %v2223 = vpop.f32.mrf.mxu0
    %v2224 = vadd.f32 0.0, %v2223
    %v2225 = vpop.f32.mrf.mxu0
    %v2226 = vadd.f32 0.0, %v2225
    %2227 = vdwg.mxu0
    %2228 = vmatprep.subr.mxu0 %v549
    %2229 = vmatpush1.msra.mxu0 %v548
    %2230 = vmatprep.subr.mxu0 %v541
    %2231 = vmatpush1.msra.mxu0 %v540
    %2232 = vmatprep.subr.mxu0 %v533
    %2233 = vmatpush1.msra.mxu0 %v532
    %2234 = vmatprep.subr.mxu0 %v525
    %2235 = vmatpush1.msra.mxu0 %v524
    %2236 = vmatprep.subr.mxu0 %v517
    %2237 = vmatpush1.msra.mxu0 %v516
    %2238 = vmatprep.subr.mxu0 %v509
    %2239 = vmatpush1.msra.mxu0 %v508
    %2240 = vmatprep.subr.mxu0 %v501
    %2241 = vmatpush1.msra.mxu0 %v500
    %2242 = vmatprep.subr.mxu0 %v493
    %2243 = vmatpush1.msra.mxu0 %v492
    %2244 = vmatprep.subr.mxu0 %v485
    %2245 = vmatpush1.msra.mxu0 %v484
    %2246 = vmatprep.subr.mxu0 %v477
    %2247 = vmatpush1.msra.mxu0 %v476
    %2248 = vmatprep.subr.mxu0 %v469
    %2249 = vmatpush1.msra.mxu0 %v468
    %2250 = vmatprep.subr.mxu0 %v461
    %2251 = vmatpush1.msra.mxu0 %v460
    %2252 = vmatprep.subr.mxu0 %v453
    %2253 = vmatpush1.msra.mxu0 %v452
    %2254 = vmatprep.subr.mxu0 %v445
    %2255 = vmatpush1.msra.mxu0 %v444
    %2256 = vmatprep.subr.mxu0 %v437
    %2257 = vmatpush1.msra.mxu0 %v436
    %2258 = vmatprep.subr.mxu0 %v429
    %2259 = vmatpush1.msra.mxu0 %v428
    %2260 = vmatprep.subr.mxu0 0.0
    %2261 = vmatpush2.msra.mxu0 0.0
    %2262 = vmatprep.subr.mxu0 0.0
    %2263 = vmatpush2.msra.mxu0 0.0
    %2264 = vmatprep.subr.mxu0 0.0
    %2265 = vmatpush2.msra.mxu0 0.0
    %2266 = vmatprep.subr.mxu0 0.0
    %2267 = vmatpush2.msra.mxu0 0.0
    %2268 = vmatprep.subr.mxu0 0.0
    %2269 = vmatpush2.msra.mxu0 0.0
    %2270 = vmatprep.subr.mxu0 0.0
    %2271 = vmatpush2.msra.mxu0 0.0
    %2272 = vmatprep.subr.mxu0 0.0
    %2273 = vmatpush2.msra.mxu0 0.0
    %2274 = vmatprep.subr.mxu0 0.0
    %2275 = vmatpush2.msra.mxu0 0.0
    %2276 = vmatprep.subr.mxu0 0.0
    %2277 = vmatpush2.msra.mxu0 0.0
    %2278 = vmatprep.subr.mxu0 0.0
    %2279 = vmatpush2.msra.mxu0 0.0
    %2280 = vmatprep.subr.mxu0 0.0
    %2281 = vmatpush2.msra.mxu0 0.0
    %2282 = vmatprep.subr.mxu0 0.0
    %2283 = vmatpush2.msra.mxu0 0.0
    %2284 = vmatprep.subr.mxu0 0.0
    %2285 = vmatpush2.msra.mxu0 0.0
    %2286 = vmatprep.subr.mxu0 0.0
    %2287 = vmatpush2.msra.mxu0 0.0
    %2288 = vmatprep.subr.mxu0 0.0
    %2289 = vmatpush2.msra.mxu0 0.0
    %2290 = vmatprep.subr.mxu0 0.0
    %2291 = vmatpush2.msra.mxu0 0.0
    %2292 = vmatprep.mubr.f32.mxu0 0.0
    %2293 = vmatmul.mubr.f32.gmra.mxu0 %v2085
    %v2294 = vpop.f32.mrf.mxu0
    %v2295 = vadd.f32 0.0, %v2294
    %v2296 = vpop.f32.mrf.mxu0
    %v2297 = vadd.f32 0.0, %v2296
    %2298 = vdwg.mxu0
    %2299 = vmatprep.subr.mxu0 %v551
    %2300 = vmatpush1.msra.mxu0 %v550
    %2301 = vmatprep.subr.mxu0 %v543
    %2302 = vmatpush1.msra.mxu0 %v542
    %2303 = vmatprep.subr.mxu0 %v535
    %2304 = vmatpush1.msra.mxu0 %v534
    %2305 = vmatprep.subr.mxu0 %v527
    %2306 = vmatpush1.msra.mxu0 %v526
    %2307 = vmatprep.subr.mxu0 %v519
    %2308 = vmatpush1.msra.mxu0 %v518
    %2309 = vmatprep.subr.mxu0 %v511
    %2310 = vmatpush1.msra.mxu0 %v510
    %2311 = vmatprep.subr.mxu0 %v503
    %2312 = vmatpush1.msra.mxu0 %v502
    %2313 = vmatprep.subr.mxu0 %v495
    %2314 = vmatpush1.msra.mxu0 %v494
    %2315 = vmatprep.subr.mxu0 %v487
    %2316 = vmatpush1.msra.mxu0 %v486
    %2317 = vmatprep.subr.mxu0 %v479
    %2318 = vmatpush1.msra.mxu0 %v478
    %2319 = vmatprep.subr.mxu0 %v471
    %2320 = vmatpush1.msra.mxu0 %v470
    %2321 = vmatprep.subr.mxu0 %v463
    %2322 = vmatpush1.msra.mxu0 %v462
    %2323 = vmatprep.subr.mxu0 %v455
    %2324 = vmatpush1.msra.mxu0 %v454
    %2325 = vmatprep.subr.mxu0 %v447
    %2326 = vmatpush1.msra.mxu0 %v446
    %2327 = vmatprep.subr.mxu0 %v439
    %2328 = vmatpush1.msra.mxu0 %v438
    %2329 = vmatprep.subr.mxu0 %v431
    %2330 = vmatpush1.msra.mxu0 %v430
    %2331 = vmatprep.subr.mxu0 0.0
    %2332 = vmatpush2.msra.mxu0 0.0
    %2333 = vmatprep.subr.mxu0 0.0
    %2334 = vmatpush2.msra.mxu0 0.0
    %2335 = vmatprep.subr.mxu0 0.0
    %2336 = vmatpush2.msra.mxu0 0.0
    %2337 = vmatprep.subr.mxu0 0.0
    %2338 = vmatpush2.msra.mxu0 0.0
    %2339 = vmatprep.subr.mxu0 0.0
    %2340 = vmatpush2.msra.mxu0 0.0
    %2341 = vmatprep.subr.mxu0 0.0
    %2342 = vmatpush2.msra.mxu0 0.0
    %2343 = vmatprep.subr.mxu0 0.0
    %2344 = vmatpush2.msra.mxu0 0.0
    %2345 = vmatprep.subr.mxu0 0.0
    %2346 = vmatpush2.msra.mxu0 0.0
    %2347 = vmatprep.subr.mxu0 0.0
    %2348 = vmatpush2.msra.mxu0 0.0
    %2349 = vmatprep.subr.mxu0 0.0
    %2350 = vmatpush2.msra.mxu0 0.0
    %2351 = vmatprep.subr.mxu0 0.0
    %2352 = vmatpush2.msra.mxu0 0.0
    %2353 = vmatprep.subr.mxu0 0.0
    %2354 = vmatpush2.msra.mxu0 0.0
    %2355 = vmatprep.subr.mxu0 0.0
    %2356 = vmatpush2.msra.mxu0 0.0
    %2357 = vmatprep.subr.mxu0 0.0
    %2358 = vmatpush2.msra.mxu0 0.0
    %2359 = vmatprep.subr.mxu0 0.0
    %2360 = vmatpush2.msra.mxu0 0.0
    %2361 = vmatprep.subr.mxu0 0.0
    %2362 = vmatpush2.msra.mxu0 0.0
    %2363 = vmatprep.mubr.f32.mxu0 0.0
    %2364 = vmatmul.mubr.f32.gmra.mxu0 %v2085
    %v2365 = vpop.f32.mrf.mxu0
    %v2366 = vadd.f32 0.0, %v2365
    %v2367 = vpop.f32.mrf.mxu0
    %v2368 = vadd.f32 0.0, %v2367
    %2369 = vdwg.mxu0
    %v2370 = vadd.f32 %v2295, %v1985
    %v2371 = vadd.f32 %v2297, %v1987
    %v2372 = vadd.f32 %v2366, %v2056
    %v2373 = vadd.f32 %v2368, %v2058
    %v2374 = vmul.f32 %v2370, 0.5
    %v2375 = vmul.f32 %v2371, 0.5
    %v2376 = vmul.f32 %v2372, 0.5
    %v2377 = vtanh.pop %v2374
    %v2378 = vtanh.pop %v2375
    %v2379 = vtanh.pop %v2376
    %v2380 = vmul.f32 %v2377, 0.5
    %v2381 = vmul.f32 %v2378, 0.5
    %v2382 = vmul.f32 %v2379, 0.5
    %v2383 = vadd.f32 %v2380, 0.5
    %v2384 = vadd.f32 %v2381, 0.5
    %v2385 = vadd.f32 %v2382, 0.5
    %v2386 = vtanh.pop %v2373
    %v2387 = vmul.f32 %v2384, %v1915
    %v2388 = vmul.f32 %v2383, %v2386
    %v2389 = vadd.f32 %v2387, %v2388
    %v2390 = vtanh.pop %v2389
    %v2391 = vmul.f32 %v2385, %v2390
    %2392 = vmatprep.subr.mxu0 %v613
    %2393 = vmatpush1.msra.mxu0 %v612
    %2394 = vmatprep.subr.mxu0 %v609
    %2395 = vmatpush1.msra.mxu0 %v608
    %2396 = vmatprep.subr.mxu0 %v605
    %2397 = vmatpush1.msra.mxu0 %v604
    %2398 = vmatprep.subr.mxu0 %v601
    %2399 = vmatpush1.msra.mxu0 %v600
    %2400 = vmatprep.subr.mxu0 %v597
    %2401 = vmatpush1.msra.mxu0 %v596
    %2402 = vmatprep.subr.mxu0 %v593
    %2403 = vmatpush1.msra.mxu0 %v592
    %2404 = vmatprep.subr.mxu0 %v589
    %2405 = vmatpush1.msra.mxu0 %v588
    %2406 = vmatprep.subr.mxu0 %v585
    %2407 = vmatpush1.msra.mxu0 %v584
    %2408 = vmatprep.subr.mxu0 %v581
    %2409 = vmatpush1.msra.mxu0 %v580
    %2410 = vmatprep.subr.mxu0 %v577
    %2411 = vmatpush1.msra.mxu0 %v576
    %2412 = vmatprep.subr.mxu0 %v573
    %2413 = vmatpush1.msra.mxu0 %v572
    %2414 = vmatprep.subr.mxu0 %v569
    %2415 = vmatpush1.msra.mxu0 %v568
    %2416 = vmatprep.subr.mxu0 %v565
    %2417 = vmatpush1.msra.mxu0 %v564
    %2418 = vmatprep.subr.mxu0 %v561
    %2419 = vmatpush1.msra.mxu0 %v560
    %2420 = vmatprep.subr.mxu0 %v557
    %2421 = vmatpush1.msra.mxu0 %v556
    %2422 = vmatprep.subr.mxu0 %v553
    %2423 = vmatpush1.msra.mxu0 %v552
    %2424 = vmatprep.subr.mxu0 0.0
    %2425 = vmatpush2.msra.mxu0 0.0
    %2426 = vmatprep.subr.mxu0 0.0
    %2427 = vmatpush2.msra.mxu0 0.0
    %2428 = vmatprep.subr.mxu0 0.0
    %2429 = vmatpush2.msra.mxu0 0.0
    %2430 = vmatprep.subr.mxu0 0.0
    %2431 = vmatpush2.msra.mxu0 0.0
    %2432 = vmatprep.subr.mxu0 0.0
    %2433 = vmatpush2.msra.mxu0 0.0
    %2434 = vmatprep.subr.mxu0 0.0
    %2435 = vmatpush2.msra.mxu0 0.0
    %2436 = vmatprep.subr.mxu0 0.0
    %2437 = vmatpush2.msra.mxu0 0.0
    %2438 = vmatprep.subr.mxu0 0.0
    %2439 = vmatpush2.msra.mxu0 0.0
    %2440 = vmatprep.subr.mxu0 0.0
    %2441 = vmatpush2.msra.mxu0 0.0
    %2442 = vmatprep.subr.mxu0 0.0
    %2443 = vmatpush2.msra.mxu0 0.0
    %2444 = vmatprep.subr.mxu0 0.0
    %2445 = vmatpush2.msra.mxu0 0.0
    %2446 = vmatprep.subr.mxu0 0.0
    %2447 = vmatpush2.msra.mxu0 0.0
    %2448 = vmatprep.subr.mxu0 0.0
    %2449 = vmatpush2.msra.mxu0 0.0
    %2450 = vmatprep.subr.mxu0 0.0
    %2451 = vmatpush2.msra.mxu0 0.0
    %2452 = vmatprep.subr.mxu0 0.0
    %2453 = vmatpush2.msra.mxu0 0.0
    %2454 = vmatprep.subr.mxu0 0.0
    %2455 = vmatpush2.msra.mxu0 0.0
    %2456 = vmatprep.mubr.f32.mxu0 0.0
    %2457 = vmatmul.mubr.f32.gmra.mxu0 %v2391
    %v2458 = vpop.f32.mrf.mxu0
    %v2459 = vadd.f32 %v621, %v2458
    %v2460 = vpop.f32.mrf.mxu0
    %v2461 = vadd.f32 %v625, %v2460
    %2462 = vdwg.mxu0
    %2463 = vmatprep.subr.mxu0 %v615
    %2464 = vmatpush1.msra.mxu0 %v614
    %2465 = vmatprep.subr.mxu0 %v611
    %2466 = vmatpush1.msra.mxu0 %v610
    %2467 = vmatprep.subr.mxu0 %v607
    %2468 = vmatpush1.msra.mxu0 %v606
    %2469 = vmatprep.subr.mxu0 %v603
    %2470 = vmatpush1.msra.mxu0 %v602
    %2471 = vmatprep.subr.mxu0 %v599
    %2472 = vmatpush1.msra.mxu0 %v598
    %2473 = vmatprep.subr.mxu0 %v595
    %2474 = vmatpush1.msra.mxu0 %v594
    %2475 = vmatprep.subr.mxu0 %v591
    %2476 = vmatpush1.msra.mxu0 %v590
    %2477 = vmatprep.subr.mxu0 %v587
    %2478 = vmatpush1.msra.mxu0 %v586
    %2479 = vmatprep.subr.mxu0 %v583
    %2480 = vmatpush1.msra.mxu0 %v582
    %2481 = vmatprep.subr.mxu0 %v579
    %2482 = vmatpush1.msra.mxu0 %v578
    %2483 = vmatprep.subr.mxu0 %v575
    %2484 = vmatpush1.msra.mxu0 %v574
    %2485 = vmatprep.subr.mxu0 %v571
    %2486 = vmatpush1.msra.mxu0 %v570
    %2487 = vmatprep.subr.mxu0 %v567
    %2488 = vmatpush1.msra.mxu0 %v566
    %2489 = vmatprep.subr.mxu0 %v563
    %2490 = vmatpush1.msra.mxu0 %v562
    %2491 = vmatprep.subr.mxu0 %v559
    %2492 = vmatpush1.msra.mxu0 %v558
    %2493 = vmatprep.subr.mxu0 %v555
    %2494 = vmatpush1.msra.mxu0 %v554
    %2495 = vmatprep.subr.mxu0 0.0
    %2496 = vmatpush2.msra.mxu0 0.0
    %2497 = vmatprep.subr.mxu0 0.0
    %2498 = vmatpush2.msra.mxu0 0.0
    %2499 = vmatprep.subr.mxu0 0.0
    %2500 = vmatpush2.msra.mxu0 0.0
    %2501 = vmatprep.subr.mxu0 0.0
    %2502 = vmatpush2.msra.mxu0 0.0
    %2503 = vmatprep.subr.mxu0 0.0
    %2504 = vmatpush2.msra.mxu0 0.0
    %2505 = vmatprep.subr.mxu0 0.0
    %2506 = vmatpush2.msra.mxu0 0.0
    %2507 = vmatprep.subr.mxu0 0.0
    %2508 = vmatpush2.msra.mxu0 0.0
    %2509 = vmatprep.subr.mxu0 0.0
    %2510 = vmatpush2.msra.mxu0 0.0
    %2511 = vmatprep.subr.mxu0 0.0
    %2512 = vmatpush2.msra.mxu0 0.0
    %2513 = vmatprep.subr.mxu0 0.0
    %2514 = vmatpush2.msra.mxu0 0.0
    %2515 = vmatprep.subr.mxu0 0.0
    %2516 = vmatpush2.msra.mxu0 0.0
    %2517 = vmatprep.subr.mxu0 0.0
    %2518 = vmatpush2.msra.mxu0 0.0
    %2519 = vmatprep.subr.mxu0 0.0
    %2520 = vmatpush2.msra.mxu0 0.0
    %2521 = vmatprep.subr.mxu0 0.0
    %2522 = vmatpush2.msra.mxu0 0.0
    %2523 = vmatprep.subr.mxu0 0.0
    %2524 = vmatpush2.msra.mxu0 0.0
    %2525 = vmatprep.subr.mxu0 0.0
    %2526 = vmatpush2.msra.mxu0 0.0
    %2527 = vmatprep.mubr.f32.mxu0 0.0
    %2528 = vmatmul.mubr.f32.gmra.mxu0 %v2391
    %v2529 = vpop.f32.mrf.mxu0
    %v2530 = vadd.f32 %v629, %v2529
    %v2531 = vpop.f32.mrf.mxu0
    %v2532 = vadd.f32 %v633, %v2531
    %2533 = vdwg.mxu0
    %v2534 = vld [vmem:[#allocation2 + $0x80] sm:$0xff]
    %v2535 = vld [vmem:[#allocation2 + $0x88] sm:$0xff]
    %v2536 = vld [vmem:[#allocation2 + $0x90] sm:$0xff]
    %v2537 = vld [vmem:[#allocation2 + $0x98] sm:$0xff]
    %v2538 = vadd.f32 %v2534, %v2153
    %v2539 = vadd.f32 %v2535, %v2155
    %v2540 = vadd.f32 %v2536, %v2224
    %v2541 = vadd.f32 %v2537, %v2226
    %v2542 = vmul.f32 %v2538, 0.5
    %v2543 = vmul.f32 %v2539, 0.5
    %v2544 = vmul.f32 %v2540, 0.5
    %v2545 = vtanh.pop %v2542
    %v2546 = vtanh.pop %v2543
    %v2547 = vtanh.pop %v2544
    %v2548 = vmul.f32 %v2545, 0.5
    %v2549 = vmul.f32 %v2546, 0.5
    %v2550 = vmul.f32 %v2547, 0.5
    %v2551 = vadd.f32 %v2548, 0.5
    %v2552 = vadd.f32 %v2549, 0.5
    %v2553 = vadd.f32 %v2550, 0.5
    %v2554 = vtanh.pop %v2541
    %v2555 = vmul.f32 %v2552, %v2083
    %v2556 = vmul.f32 %v2551, %v2554
    %v2557 = vadd.f32 %v2555, %v2556
    %v2558 = vtanh.pop %v2557
    %v2559 = vmul.f32 %v2553, %v2558
    %2560 = vmatprep.subr.mxu0 %v545
    %2561 = vmatpush1.msra.mxu0 %v544
    %2562 = vmatprep.subr.mxu0 %v537
    %2563 = vmatpush1.msra.mxu0 %v536
    %2564 = vmatprep.subr.mxu0 %v529
    %2565 = vmatpush1.msra.mxu0 %v528
    %2566 = vmatprep.subr.mxu0 %v521
    %2567 = vmatpush1.msra.mxu0 %v520
    %2568 = vmatprep.subr.mxu0 %v513
    %2569 = vmatpush1.msra.mxu0 %v512
    %2570 = vmatprep.subr.mxu0 %v505
    %2571 = vmatpush1.msra.mxu0 %v504
    %2572 = vmatprep.subr.mxu0 %v497
    %2573 = vmatpush1.msra.mxu0 %v496
    %2574 = vmatprep.subr.mxu0 %v489
    %2575 = vmatpush1.msra.mxu0 %v488
    %2576 = vmatprep.subr.mxu0 %v481
    %2577 = vmatpush1.msra.mxu0 %v480
    %2578 = vmatprep.subr.mxu0 %v473
    %2579 = vmatpush1.msra.mxu0 %v472
    %2580 = vmatprep.subr.mxu0 %v465
    %2581 = vmatpush1.msra.mxu0 %v464
    %2582 = vmatprep.subr.mxu0 %v457
    %2583 = vmatpush1.msra.mxu0 %v456
    %2584 = vmatprep.subr.mxu0 %v449
    %2585 = vmatpush1.msra.mxu0 %v448
    %2586 = vmatprep.subr.mxu0 %v441
    %2587 = vmatpush1.msra.mxu0 %v440
    %2588 = vmatprep.subr.mxu0 %v433
    %2589 = vmatpush1.msra.mxu0 %v432
    %2590 = vmatprep.subr.mxu0 %v425
    %2591 = vmatpush1.msra.mxu0 %v424
    %2592 = vmatprep.subr.mxu0 0.0
    %2593 = vmatpush2.msra.mxu0 0.0
    %2594 = vmatprep.subr.mxu0 0.0
    %2595 = vmatpush2.msra.mxu0 0.0
    %2596 = vmatprep.subr.mxu0 0.0
    %2597 = vmatpush2.msra.mxu0 0.0
    %2598 = vmatprep.subr.mxu0 0.0
    %2599 = vmatpush2.msra.mxu0 0.0
    %2600 = vmatprep.subr.mxu0 0.0
    %2601 = vmatpush2.msra.mxu0 0.0
    %2602 = vmatprep.subr.mxu0 0.0
    %2603 = vmatpush2.msra.mxu0 0.0
    %2604 = vmatprep.subr.mxu0 0.0
    %2605 = vmatpush2.msra.mxu0 0.0
    %2606 = vmatprep.subr.mxu0 0.0
    %2607 = vmatpush2.msra.mxu0 0.0
    %2608 = vmatprep.subr.mxu0 0.0
    %2609 = vmatpush2.msra.mxu0 0.0
    %2610 = vmatprep.subr.mxu0 0.0
    %2611 = vmatpush2.msra.mxu0 0.0
    %2612 = vmatprep.subr.mxu0 0.0
    %2613 = vmatpush2.msra.mxu0 0.0
    %2614 = vmatprep.subr.mxu0 0.0
    %2615 = vmatpush2.msra.mxu0 0.0
    %2616 = vmatprep.subr.mxu0 0.0
    %2617 = vmatpush2.msra.mxu0 0.0
    %2618 = vmatprep.subr.mxu0 0.0
    %2619 = vmatpush2.msra.mxu0 0.0
    %2620 = vmatprep.subr.mxu0 0.0
    %2621 = vmatpush2.msra.mxu0 0.0
    %2622 = vmatprep.subr.mxu0 0.0
    %2623 = vmatpush2.msra.mxu0 0.0
    %2624 = vmatprep.mubr.f32.mxu0 0.0
    %2625 = vmatmul.mubr.f32.gmra.mxu0 %v2559
    %v2626 = vpop.f32.mrf.mxu0
    %v2627 = vadd.f32 0.0, %v2626
    %v2628 = vpop.f32.mrf.mxu0
    %v2629 = vadd.f32 0.0, %v2628
    %2630 = vdwg.mxu0
    %2631 = vmatprep.subr.mxu0 %v547
    %2632 = vmatpush1.msra.mxu0 %v546
    %2633 = vmatprep.subr.mxu0 %v539
    %2634 = vmatpush1.msra.mxu0 %v538
    %2635 = vmatprep.subr.mxu0 %v531
    %2636 = vmatpush1.msra.mxu0 %v530
    %2637 = vmatprep.subr.mxu0 %v523
    %2638 = vmatpush1.msra.mxu0 %v522
    %2639 = vmatprep.subr.mxu0 %v515
    %2640 = vmatpush1.msra.mxu0 %v514
    %2641 = vmatprep.subr.mxu0 %v507
    %2642 = vmatpush1.msra.mxu0 %v506
    %2643 = vmatprep.subr.mxu0 %v499
    %2644 = vmatpush1.msra.mxu0 %v498
    %2645 = vmatprep.subr.mxu0 %v491
    %2646 = vmatpush1.msra.mxu0 %v490
    %2647 = vmatprep.subr.mxu0 %v483
    %2648 = vmatpush1.msra.mxu0 %v482
    %2649 = vmatprep.subr.mxu0 %v475
    %2650 = vmatpush1.msra.mxu0 %v474
    %2651 = vmatprep.subr.mxu0 %v467
    %2652 = vmatpush1.msra.mxu0 %v466
    %2653 = vmatprep.subr.mxu0 %v459
    %2654 = vmatpush1.msra.mxu0 %v458
    %2655 = vmatprep.subr.mxu0 %v451
    %2656 = vmatpush1.msra.mxu0 %v450
    %2657 = vmatprep.subr.mxu0 %v443
    %2658 = vmatpush1.msra.mxu0 %v442
    %2659 = vmatprep.subr.mxu0 %v435
    %2660 = vmatpush1.msra.mxu0 %v434
    %2661 = vmatprep.subr.mxu0 %v427
    %2662 = vmatpush1.msra.mxu0 %v426
    %2663 = vmatprep.subr.mxu0 0.0
    %2664 = vmatpush2.msra.mxu0 0.0
    %2665 = vmatprep.subr.mxu0 0.0
    %2666 = vmatpush2.msra.mxu0 0.0
    %2667 = vmatprep.subr.mxu0 0.0
    %2668 = vmatpush2.msra.mxu0 0.0
    %2669 = vmatprep.subr.mxu0 0.0
    %2670 = vmatpush2.msra.mxu0 0.0
    %2671 = vmatprep.subr.mxu0 0.0
    %2672 = vmatpush2.msra.mxu0 0.0
    %2673 = vmatprep.subr.mxu0 0.0
    %2674 = vmatpush2.msra.mxu0 0.0
    %2675 = vmatprep.subr.mxu0 0.0
    %2676 = vmatpush2.msra.mxu0 0.0
    %2677 = vmatprep.subr.mxu0 0.0
    %2678 = vmatpush2.msra.mxu0 0.0
    %2679 = vmatprep.subr.mxu0 0.0
    %2680 = vmatpush2.msra.mxu0 0.0
    %2681 = vmatprep.subr.mxu0 0.0
    %2682 = vmatpush2.msra.mxu0 0.0
    %2683 = vmatprep.subr.mxu0 0.0
    %2684 = vmatpush2.msra.mxu0 0.0
    %2685 = vmatprep.subr.mxu0 0.0
    %2686 = vmatpush2.msra.mxu0 0.0
    %2687 = vmatprep.subr.mxu0 0.0
    %2688 = vmatpush2.msra.mxu0 0.0
    %2689 = vmatprep.subr.mxu0 0.0
    %2690 = vmatpush2.msra.mxu0 0.0
    %2691 = vmatprep.subr.mxu0 0.0
    %2692 = vmatpush2.msra.mxu0 0.0
    %2693 = vmatprep.subr.mxu0 0.0
    %2694 = vmatpush2.msra.mxu0 0.0
    %2695 = vmatprep.mubr.f32.mxu0 0.0
    %2696 = vmatmul.mubr.f32.gmra.mxu0 %v2559
    %v2697 = vpop.f32.mrf.mxu0
    %v2698 = vadd.f32 0.0, %v2697
    %v2699 = vpop.f32.mrf.mxu0
    %v2700 = vadd.f32 0.0, %v2699
    %2701 = vdwg.mxu0
    %2702 = vmatprep.subr.mxu0 %v549
    %2703 = vmatpush1.msra.mxu0 %v548
    %2704 = vmatprep.subr.mxu0 %v541
    %2705 = vmatpush1.msra.mxu0 %v540
    %2706 = vmatprep.subr.mxu0 %v533
    %2707 = vmatpush1.msra.mxu0 %v532
    %2708 = vmatprep.subr.mxu0 %v525
    %2709 = vmatpush1.msra.mxu0 %v524
    %2710 = vmatprep.subr.mxu0 %v517
    %2711 = vmatpush1.msra.mxu0 %v516
    %2712 = vmatprep.subr.mxu0 %v509
    %2713 = vmatpush1.msra.mxu0 %v508
    %2714 = vmatprep.subr.mxu0 %v501
    %2715 = vmatpush1.msra.mxu0 %v500
    %2716 = vmatprep.subr.mxu0 %v493
    %2717 = vmatpush1.msra.mxu0 %v492
    %2718 = vmatprep.subr.mxu0 %v485
    %2719 = vmatpush1.msra.mxu0 %v484
    %2720 = vmatprep.subr.mxu0 %v477
    %2721 = vmatpush1.msra.mxu0 %v476
    %2722 = vmatprep.subr.mxu0 %v469
    %2723 = vmatpush1.msra.mxu0 %v468
    %2724 = vmatprep.subr.mxu0 %v461
    %2725 = vmatpush1.msra.mxu0 %v460
    %2726 = vmatprep.subr.mxu0 %v453
    %2727 = vmatpush1.msra.mxu0 %v452
    %2728 = vmatprep.subr.mxu0 %v445
    %2729 = vmatpush1.msra.mxu0 %v444
    %2730 = vmatprep.subr.mxu0 %v437
    %2731 = vmatpush1.msra.mxu0 %v436
    %2732 = vmatprep.subr.mxu0 %v429
    %2733 = vmatpush1.msra.mxu0 %v428
    %2734 = vmatprep.subr.mxu0 0.0
    %2735 = vmatpush2.msra.mxu0 0.0
    %2736 = vmatprep.subr.mxu0 0.0
    %2737 = vmatpush2.msra.mxu0 0.0
    %2738 = vmatprep.subr.mxu0 0.0
    %2739 = vmatpush2.msra.mxu0 0.0
    %2740 = vmatprep.subr.mxu0 0.0
    %2741 = vmatpush2.msra.mxu0 0.0
    %2742 = vmatprep.subr.mxu0 0.0
    %2743 = vmatpush2.msra.mxu0 0.0
    %2744 = vmatprep.subr.mxu0 0.0
    %2745 = vmatpush2.msra.mxu0 0.0
    %2746 = vmatprep.subr.mxu0 0.0
    %2747 = vmatpush2.msra.mxu0 0.0
    %2748 = vmatprep.subr.mxu0 0.0
    %2749 = vmatpush2.msra.mxu0 0.0
    %2750 = vmatprep.subr.mxu0 0.0
    %2751 = vmatpush2.msra.mxu0 0.0
    %2752 = vmatprep.subr.mxu0 0.0
    %2753 = vmatpush2.msra.mxu0 0.0
    %2754 = vmatprep.subr.mxu0 0.0
    %2755 = vmatpush2.msra.mxu0 0.0
    %2756 = vmatprep.subr.mxu0 0.0
    %2757 = vmatpush2.msra.mxu0 0.0
    %2758 = vmatprep.subr.mxu0 0.0
    %2759 = vmatpush2.msra.mxu0 0.0
    %2760 = vmatprep.subr.mxu0 0.0
    %2761 = vmatpush2.msra.mxu0 0.0
    %2762 = vmatprep.subr.mxu0 0.0
    %2763 = vmatpush2.msra.mxu0 0.0
    %2764 = vmatprep.subr.mxu0 0.0
    %2765 = vmatpush2.msra.mxu0 0.0
    %2766 = vmatprep.mubr.f32.mxu0 0.0
    %2767 = vmatmul.mubr.f32.gmra.mxu0 %v2559
    %v2768 = vpop.f32.mrf.mxu0
    %v2769 = vadd.f32 0.0, %v2768
    %v2770 = vpop.f32.mrf.mxu0
    %v2771 = vadd.f32 0.0, %v2770
    %2772 = vdwg.mxu0
    %2773 = vmatprep.subr.mxu0 %v551
    %2774 = vmatpush1.msra.mxu0 %v550
    %2775 = vmatprep.subr.mxu0 %v543
    %2776 = vmatpush1.msra.mxu0 %v542
    %2777 = vmatprep.subr.mxu0 %v535
    %2778 = vmatpush1.msra.mxu0 %v534
    %2779 = vmatprep.subr.mxu0 %v527
    %2780 = vmatpush1.msra.mxu0 %v526
    %2781 = vmatprep.subr.mxu0 %v519
    %2782 = vmatpush1.msra.mxu0 %v518
    %2783 = vmatprep.subr.mxu0 %v511
    %2784 = vmatpush1.msra.mxu0 %v510
    %2785 = vmatprep.subr.mxu0 %v503
    %2786 = vmatpush1.msra.mxu0 %v502
    %2787 = vmatprep.subr.mxu0 %v495
    %2788 = vmatpush1.msra.mxu0 %v494
    %2789 = vmatprep.subr.mxu0 %v487
    %2790 = vmatpush1.msra.mxu0 %v486
    %2791 = vmatprep.subr.mxu0 %v479
    %2792 = vmatpush1.msra.mxu0 %v478
    %2793 = vmatprep.subr.mxu0 %v471
    %2794 = vmatpush1.msra.mxu0 %v470
    %2795 = vmatprep.subr.mxu0 %v463
    %2796 = vmatpush1.msra.mxu0 %v462
    %2797 = vmatprep.subr.mxu0 %v455
    %2798 = vmatpush1.msra.mxu0 %v454
    %2799 = vmatprep.subr.mxu0 %v447
    %2800 = vmatpush1.msra.mxu0 %v446
    %2801 = vmatprep.subr.mxu0 %v439
    %2802 = vmatpush1.msra.mxu0 %v438
    %2803 = vmatprep.subr.mxu0 %v431
    %2804 = vmatpush1.msra.mxu0 %v430
    %2805 = vmatprep.subr.mxu0 0.0
    %2806 = vmatpush2.msra.mxu0 0.0
    %2807 = vmatprep.subr.mxu0 0.0
    %2808 = vmatpush2.msra.mxu0 0.0
    %2809 = vmatprep.subr.mxu0 0.0
    %2810 = vmatpush2.msra.mxu0 0.0
    %2811 = vmatprep.subr.mxu0 0.0
    %2812 = vmatpush2.msra.mxu0 0.0
    %2813 = vmatprep.subr.mxu0 0.0
    %2814 = vmatpush2.msra.mxu0 0.0
    %2815 = vmatprep.subr.mxu0 0.0
    %2816 = vmatpush2.msra.mxu0 0.0
    %2817 = vmatprep.subr.mxu0 0.0
    %2818 = vmatpush2.msra.mxu0 0.0
    %2819 = vmatprep.subr.mxu0 0.0
    %2820 = vmatpush2.msra.mxu0 0.0
    %2821 = vmatprep.subr.mxu0 0.0
    %2822 = vmatpush2.msra.mxu0 0.0
    %2823 = vmatprep.subr.mxu0 0.0
    %2824 = vmatpush2.msra.mxu0 0.0
    %2825 = vmatprep.subr.mxu0 0.0
    %2826 = vmatpush2.msra.mxu0 0.0
    %2827 = vmatprep.subr.mxu0 0.0
    %2828 = vmatpush2.msra.mxu0 0.0
    %2829 = vmatprep.subr.mxu0 0.0
    %2830 = vmatpush2.msra.mxu0 0.0
    %2831 = vmatprep.subr.mxu0 0.0
    %2832 = vmatpush2.msra.mxu0 0.0
    %2833 = vmatprep.subr.mxu0 0.0
    %2834 = vmatpush2.msra.mxu0 0.0
    %2835 = vmatprep.subr.mxu0 0.0
    %2836 = vmatpush2.msra.mxu0 0.0
    %2837 = vmatprep.mubr.f32.mxu0 0.0
    %2838 = vmatmul.mubr.f32.gmra.mxu0 %v2559
    %v2839 = vpop.f32.mrf.mxu0
    %v2840 = vadd.f32 0.0, %v2839
    %v2841 = vpop.f32.mrf.mxu0
    %v2842 = vadd.f32 0.0, %v2841
    %2843 = vdwg.mxu0
    %v2844 = vadd.f32 %v2769, %v2459
    %v2845 = vadd.f32 %v2771, %v2461
    %v2846 = vadd.f32 %v2840, %v2530
    %v2847 = vadd.f32 %v2842, %v2532
    %v2848 = vmul.f32 %v2844, 0.5
    %v2849 = vmul.f32 %v2845, 0.5
    %v2850 = vmul.f32 %v2846, 0.5
    %v2851 = vtanh.pop %v2848
    %v2852 = vtanh.pop %v2849
    %v2853 = vtanh.pop %v2850
    %v2854 = vmul.f32 %v2851, 0.5
    %v2855 = vmul.f32 %v2852, 0.5
    %v2856 = vmul.f32 %v2853, 0.5
    %v2857 = vadd.f32 %v2854, 0.5
    %v2858 = vadd.f32 %v2855, 0.5
    %v2859 = vadd.f32 %v2856, 0.5
    %v2860 = vtanh.pop %v2847
    %v2861 = vmul.f32 %v2858, %v2389
    %v2862 = vmul.f32 %v2857, %v2860
    %v2863 = vadd.f32 %v2861, %v2862
    %v2864 = vtanh.pop %v2863
    %v2865 = vmul.f32 %v2859, %v2864
    %2866 = vmatprep.subr.mxu0 %v613
    %2867 = vmatpush1.msra.mxu0 %v612
    %2868 = vmatprep.subr.mxu0 %v609
    %2869 = vmatpush1.msra.mxu0 %v608
    %2870 = vmatprep.subr.mxu0 %v605
    %2871 = vmatpush1.msra.mxu0 %v604
    %2872 = vmatprep.subr.mxu0 %v601
    %2873 = vmatpush1.msra.mxu0 %v600
    %2874 = vmatprep.subr.mxu0 %v597
    %2875 = vmatpush1.msra.mxu0 %v596
    %2876 = vmatprep.subr.mxu0 %v593
    %2877 = vmatpush1.msra.mxu0 %v592
    %2878 = vmatprep.subr.mxu0 %v589
    %2879 = vmatpush1.msra.mxu0 %v588
    %2880 = vmatprep.subr.mxu0 %v585
    %2881 = vmatpush1.msra.mxu0 %v584
    %2882 = vmatprep.subr.mxu0 %v581
    %2883 = vmatpush1.msra.mxu0 %v580
    %2884 = vmatprep.subr.mxu0 %v577
    %2885 = vmatpush1.msra.mxu0 %v576
    %2886 = vmatprep.subr.mxu0 %v573
    %2887 = vmatpush1.msra.mxu0 %v572
    %2888 = vmatprep.subr.mxu0 %v569
    %2889 = vmatpush1.msra.mxu0 %v568
    %2890 = vmatprep.subr.mxu0 %v565
    %2891 = vmatpush1.msra.mxu0 %v564
    %2892 = vmatprep.subr.mxu0 %v561
    %2893 = vmatpush1.msra.mxu0 %v560
    %2894 = vmatprep.subr.mxu0 %v557
    %2895 = vmatpush1.msra.mxu0 %v556
    %2896 = vmatprep.subr.mxu0 %v553
    %2897 = vmatpush1.msra.mxu0 %v552
    %2898 = vmatprep.subr.mxu0 0.0
    %2899 = vmatpush2.msra.mxu0 0.0
    %2900 = vmatprep.subr.mxu0 0.0
    %2901 = vmatpush2.msra.mxu0 0.0
    %2902 = vmatprep.subr.mxu0 0.0
    %2903 = vmatpush2.msra.mxu0 0.0
    %2904 = vmatprep.subr.mxu0 0.0
    %2905 = vmatpush2.msra.mxu0 0.0
    %2906 = vmatprep.subr.mxu0 0.0
    %2907 = vmatpush2.msra.mxu0 0.0
    %2908 = vmatprep.subr.mxu0 0.0
    %2909 = vmatpush2.msra.mxu0 0.0
    %2910 = vmatprep.subr.mxu0 0.0
    %2911 = vmatpush2.msra.mxu0 0.0
    %2912 = vmatprep.subr.mxu0 0.0
    %2913 = vmatpush2.msra.mxu0 0.0
    %2914 = vmatprep.subr.mxu0 0.0
    %2915 = vmatpush2.msra.mxu0 0.0
    %2916 = vmatprep.subr.mxu0 0.0
    %2917 = vmatpush2.msra.mxu0 0.0
    %2918 = vmatprep.subr.mxu0 0.0
    %2919 = vmatpush2.msra.mxu0 0.0
    %2920 = vmatprep.subr.mxu0 0.0
    %2921 = vmatpush2.msra.mxu0 0.0
    %2922 = vmatprep.subr.mxu0 0.0
    %2923 = vmatpush2.msra.mxu0 0.0
    %2924 = vmatprep.subr.mxu0 0.0
    %2925 = vmatpush2.msra.mxu0 0.0
    %2926 = vmatprep.subr.mxu0 0.0
    %2927 = vmatpush2.msra.mxu0 0.0
    %2928 = vmatprep.subr.mxu0 0.0
    %2929 = vmatpush2.msra.mxu0 0.0
    %2930 = vmatprep.mubr.f32.mxu0 0.0
    %2931 = vmatmul.mubr.f32.gmra.mxu0 %v2865
    %v2932 = vpop.f32.mrf.mxu0
    %v2933 = vadd.f32 %v621, %v2932
    %v2934 = vpop.f32.mrf.mxu0
    %v2935 = vadd.f32 %v625, %v2934
    %2936 = vdwg.mxu0
    %2937 = vmatprep.subr.mxu0 %v615
    %2938 = vmatpush1.msra.mxu0 %v614
    %2939 = vmatprep.subr.mxu0 %v611
    %2940 = vmatpush1.msra.mxu0 %v610
    %2941 = vmatprep.subr.mxu0 %v607
    %2942 = vmatpush1.msra.mxu0 %v606
    %2943 = vmatprep.subr.mxu0 %v603
    %2944 = vmatpush1.msra.mxu0 %v602
    %2945 = vmatprep.subr.mxu0 %v599
    %2946 = vmatpush1.msra.mxu0 %v598
    %2947 = vmatprep.subr.mxu0 %v595
    %2948 = vmatpush1.msra.mxu0 %v594
    %2949 = vmatprep.subr.mxu0 %v591
    %2950 = vmatpush1.msra.mxu0 %v590
    %2951 = vmatprep.subr.mxu0 %v587
    %2952 = vmatpush1.msra.mxu0 %v586
    %2953 = vmatprep.subr.mxu0 %v583
    %2954 = vmatpush1.msra.mxu0 %v582
    %2955 = vmatprep.subr.mxu0 %v579
    %2956 = vmatpush1.msra.mxu0 %v578
    %2957 = vmatprep.subr.mxu0 %v575
    %2958 = vmatpush1.msra.mxu0 %v574
    %2959 = vmatprep.subr.mxu0 %v571
    %2960 = vmatpush1.msra.mxu0 %v570
    %2961 = vmatprep.subr.mxu0 %v567
    %2962 = vmatpush1.msra.mxu0 %v566
    %2963 = vmatprep.subr.mxu0 %v563
    %2964 = vmatpush1.msra.mxu0 %v562
    %2965 = vmatprep.subr.mxu0 %v559
    %2966 = vmatpush1.msra.mxu0 %v558
    %2967 = vmatprep.subr.mxu0 %v555
    %2968 = vmatpush1.msra.mxu0 %v554
    %2969 = vmatprep.subr.mxu0 0.0
    %2970 = vmatpush2.msra.mxu0 0.0
    %2971 = vmatprep.subr.mxu0 0.0
    %2972 = vmatpush2.msra.mxu0 0.0
    %2973 = vmatprep.subr.mxu0 0.0
    %2974 = vmatpush2.msra.mxu0 0.0
    %2975 = vmatprep.subr.mxu0 0.0
    %2976 = vmatpush2.msra.mxu0 0.0
    %2977 = vmatprep.subr.mxu0 0.0
    %2978 = vmatpush2.msra.mxu0 0.0
    %2979 = vmatprep.subr.mxu0 0.0
    %2980 = vmatpush2.msra.mxu0 0.0
    %2981 = vmatprep.subr.mxu0 0.0
    %2982 = vmatpush2.msra.mxu0 0.0
    %2983 = vmatprep.subr.mxu0 0.0
    %2984 = vmatpush2.msra.mxu0 0.0
    %2985 = vmatprep.subr.mxu0 0.0
    %2986 = vmatpush2.msra.mxu0 0.0
    %2987 = vmatprep.subr.mxu0 0.0
    %2988 = vmatpush2.msra.mxu0 0.0
    %2989 = vmatprep.subr.mxu0 0.0
    %2990 = vmatpush2.msra.mxu0 0.0
    %2991 = vmatprep.subr.mxu0 0.0
    %2992 = vmatpush2.msra.mxu0 0.0
    %2993 = vmatprep.subr.mxu0 0.0
    %2994 = vmatpush2.msra.mxu0 0.0
    %2995 = vmatprep.subr.mxu0 0.0
    %2996 = vmatpush2.msra.mxu0 0.0
    %2997 = vmatprep.subr.mxu0 0.0
    %2998 = vmatpush2.msra.mxu0 0.0
    %2999 = vmatprep.subr.mxu0 0.0
    %3000 = vmatpush2.msra.mxu0 0.0
    %3001 = vmatprep.mubr.f32.mxu0 0.0
    %3002 = vmatmul.mubr.f32.gmra.mxu0 %v2865
    %v3003 = vpop.f32.mrf.mxu0
    %v3004 = vadd.f32 %v629, %v3003
    %v3005 = vpop.f32.mrf.mxu0
    %v3006 = vadd.f32 %v633, %v3005
    %3007 = vdwg.mxu0
    %v3008 = vld [vmem:[#allocation2 + $0xa0] sm:$0xff]
    %v3009 = vld [vmem:[#allocation2 + $0xa8] sm:$0xff]
    %v3010 = vld [vmem:[#allocation2 + $0xb0] sm:$0xff]
    %v3011 = vld [vmem:[#allocation2 + $0xb8] sm:$0xff]
    %v3012 = vadd.f32 %v3008, %v2627
    %v3013 = vadd.f32 %v3009, %v2629
    %v3014 = vadd.f32 %v3010, %v2698
    %v3015 = vadd.f32 %v3011, %v2700
    %v3016 = vmul.f32 %v3012, 0.5
    %v3017 = vmul.f32 %v3013, 0.5
    %v3018 = vmul.f32 %v3014, 0.5
    %v3019 = vtanh.pop %v3016
    %v3020 = vtanh.pop %v3017
    %v3021 = vtanh.pop %v3018
    %v3022 = vmul.f32 %v3019, 0.5
    %v3023 = vmul.f32 %v3020, 0.5
    %v3024 = vmul.f32 %v3021, 0.5
    %v3025 = vadd.f32 %v3022, 0.5
    %v3026 = vadd.f32 %v3023, 0.5
    %v3027 = vadd.f32 %v3024, 0.5
    %v3028 = vtanh.pop %v3015
    %v3029 = vmul.f32 %v3026, %v2557
    %v3030 = vmul.f32 %v3025, %v3028
    %v3031 = vadd.f32 %v3029, %v3030
    %v3032 = vtanh.pop %v3031
    %v3033 = vmul.f32 %v3027, %v3032
    %3034 = vmatprep.subr.mxu0 %v545
    %3035 = vmatpush1.msra.mxu0 %v544
    %3036 = vmatprep.subr.mxu0 %v537
    %3037 = vmatpush1.msra.mxu0 %v536
    %3038 = vmatprep.subr.mxu0 %v529
    %3039 = vmatpush1.msra.mxu0 %v528
    %3040 = vmatprep.subr.mxu0 %v521
    %3041 = vmatpush1.msra.mxu0 %v520
    %3042 = vmatprep.subr.mxu0 %v513
    %3043 = vmatpush1.msra.mxu0 %v512
    %3044 = vmatprep.subr.mxu0 %v505
    %3045 = vmatpush1.msra.mxu0 %v504
    %3046 = vmatprep.subr.mxu0 %v497
    %3047 = vmatpush1.msra.mxu0 %v496
    %3048 = vmatprep.subr.mxu0 %v489
    %3049 = vmatpush1.msra.mxu0 %v488
    %3050 = vmatprep.subr.mxu0 %v481
    %3051 = vmatpush1.msra.mxu0 %v480
    %3052 = vmatprep.subr.mxu0 %v473
    %3053 = vmatpush1.msra.mxu0 %v472
    %3054 = vmatprep.subr.mxu0 %v465
    %3055 = vmatpush1.msra.mxu0 %v464
    %3056 = vmatprep.subr.mxu0 %v457
    %3057 = vmatpush1.msra.mxu0 %v456
    %3058 = vmatprep.subr.mxu0 %v449
    %3059 = vmatpush1.msra.mxu0 %v448
    %3060 = vmatprep.subr.mxu0 %v441
    %3061 = vmatpush1.msra.mxu0 %v440
    %3062 = vmatprep.subr.mxu0 %v433
    %3063 = vmatpush1.msra.mxu0 %v432
    %3064 = vmatprep.subr.mxu0 %v425
    %3065 = vmatpush1.msra.mxu0 %v424
    %3066 = vmatprep.subr.mxu0 0.0
    %3067 = vmatpush2.msra.mxu0 0.0
    %3068 = vmatprep.subr.mxu0 0.0
    %3069 = vmatpush2.msra.mxu0 0.0
    %3070 = vmatprep.subr.mxu0 0.0
    %3071 = vmatpush2.msra.mxu0 0.0
    %3072 = vmatprep.subr.mxu0 0.0
    %3073 = vmatpush2.msra.mxu0 0.0
    %3074 = vmatprep.subr.mxu0 0.0
    %3075 = vmatpush2.msra.mxu0 0.0
    %3076 = vmatprep.subr.mxu0 0.0
    %3077 = vmatpush2.msra.mxu0 0.0
    %3078 = vmatprep.subr.mxu0 0.0
    %3079 = vmatpush2.msra.mxu0 0.0
    %3080 = vmatprep.subr.mxu0 0.0
    %3081 = vmatpush2.msra.mxu0 0.0
    %3082 = vmatprep.subr.mxu0 0.0
    %3083 = vmatpush2.msra.mxu0 0.0
    %3084 = vmatprep.subr.mxu0 0.0
    %3085 = vmatpush2.msra.mxu0 0.0
    %3086 = vmatprep.subr.mxu0 0.0
    %3087 = vmatpush2.msra.mxu0 0.0
    %3088 = vmatprep.subr.mxu0 0.0
    %3089 = vmatpush2.msra.mxu0 0.0
    %3090 = vmatprep.subr.mxu0 0.0
    %3091 = vmatpush2.msra.mxu0 0.0
    %3092 = vmatprep.subr.mxu0 0.0
    %3093 = vmatpush2.msra.mxu0 0.0
    %3094 = vmatprep.subr.mxu0 0.0
    %3095 = vmatpush2.msra.mxu0 0.0
    %3096 = vmatprep.subr.mxu0 0.0
    %3097 = vmatpush2.msra.mxu0 0.0
    %3098 = vmatprep.mubr.f32.mxu0 0.0
    %3099 = vmatmul.mubr.f32.gmra.mxu0 %v3033
    %v3100 = vpop.f32.mrf.mxu0
    %v3101 = vadd.f32 0.0, %v3100
    %v3102 = vpop.f32.mrf.mxu0
    %v3103 = vadd.f32 0.0, %v3102
    %3104 = vdwg.mxu0
    %3105 = vmatprep.subr.mxu0 %v547
    %3106 = vmatpush1.msra.mxu0 %v546
    %3107 = vmatprep.subr.mxu0 %v539
    %3108 = vmatpush1.msra.mxu0 %v538
    %3109 = vmatprep.subr.mxu0 %v531
    %3110 = vmatpush1.msra.mxu0 %v530
    %3111 = vmatprep.subr.mxu0 %v523
    %3112 = vmatpush1.msra.mxu0 %v522
    %3113 = vmatprep.subr.mxu0 %v515
    %3114 = vmatpush1.msra.mxu0 %v514
    %3115 = vmatprep.subr.mxu0 %v507
    %3116 = vmatpush1.msra.mxu0 %v506
    %3117 = vmatprep.subr.mxu0 %v499
    %3118 = vmatpush1.msra.mxu0 %v498
    %3119 = vmatprep.subr.mxu0 %v491
    %3120 = vmatpush1.msra.mxu0 %v490
    %3121 = vmatprep.subr.mxu0 %v483
    %3122 = vmatpush1.msra.mxu0 %v482
    %3123 = vmatprep.subr.mxu0 %v475
    %3124 = vmatpush1.msra.mxu0 %v474
    %3125 = vmatprep.subr.mxu0 %v467
    %3126 = vmatpush1.msra.mxu0 %v466
    %3127 = vmatprep.subr.mxu0 %v459
    %3128 = vmatpush1.msra.mxu0 %v458
    %3129 = vmatprep.subr.mxu0 %v451
    %3130 = vmatpush1.msra.mxu0 %v450
    %3131 = vmatprep.subr.mxu0 %v443
    %3132 = vmatpush1.msra.mxu0 %v442
    %3133 = vmatprep.subr.mxu0 %v435
    %3134 = vmatpush1.msra.mxu0 %v434
    %3135 = vmatprep.subr.mxu0 %v427
    %3136 = vmatpush1.msra.mxu0 %v426
    %3137 = vmatprep.subr.mxu0 0.0
    %3138 = vmatpush2.msra.mxu0 0.0
    %3139 = vmatprep.subr.mxu0 0.0
    %3140 = vmatpush2.msra.mxu0 0.0
    %3141 = vmatprep.subr.mxu0 0.0
    %3142 = vmatpush2.msra.mxu0 0.0
    %3143 = vmatprep.subr.mxu0 0.0
    %3144 = vmatpush2.msra.mxu0 0.0
    %3145 = vmatprep.subr.mxu0 0.0
    %3146 = vmatpush2.msra.mxu0 0.0
    %3147 = vmatprep.subr.mxu0 0.0
    %3148 = vmatpush2.msra.mxu0 0.0
    %3149 = vmatprep.subr.mxu0 0.0
    %3150 = vmatpush2.msra.mxu0 0.0
    %3151 = vmatprep.subr.mxu0 0.0
    %3152 = vmatpush2.msra.mxu0 0.0
    %3153 = vmatprep.subr.mxu0 0.0
    %3154 = vmatpush2.msra.mxu0 0.0
    %3155 = vmatprep.subr.mxu0 0.0
    %3156 = vmatpush2.msra.mxu0 0.0
    %3157 = vmatprep.subr.mxu0 0.0
    %3158 = vmatpush2.msra.mxu0 0.0
    %3159 = vmatprep.subr.mxu0 0.0
    %3160 = vmatpush2.msra.mxu0 0.0
    %3161 = vmatprep.subr.mxu0 0.0
    %3162 = vmatpush2.msra.mxu0 0.0
    %3163 = vmatprep.subr.mxu0 0.0
    %3164 = vmatpush2.msra.mxu0 0.0
    %3165 = vmatprep.subr.mxu0 0.0
    %3166 = vmatpush2.msra.mxu0 0.0
    %3167 = vmatprep.subr.mxu0 0.0
    %3168 = vmatpush2.msra.mxu0 0.0
    %3169 = vmatprep.mubr.f32.mxu0 0.0
    %3170 = vmatmul.mubr.f32.gmra.mxu0 %v3033
    %v3171 = vpop.f32.mrf.mxu0
    %v3172 = vadd.f32 0.0, %v3171
    %v3173 = vpop.f32.mrf.mxu0
    %v3174 = vadd.f32 0.0, %v3173
    %3175 = vdwg.mxu0
    %3176 = vmatprep.subr.mxu0 %v549
    %3177 = vmatpush1.msra.mxu0 %v548
    %3178 = vmatprep.subr.mxu0 %v541
    %3179 = vmatpush1.msra.mxu0 %v540
    %3180 = vmatprep.subr.mxu0 %v533
    %3181 = vmatpush1.msra.mxu0 %v532
    %3182 = vmatprep.subr.mxu0 %v525
    %3183 = vmatpush1.msra.mxu0 %v524
    %3184 = vmatprep.subr.mxu0 %v517
    %3185 = vmatpush1.msra.mxu0 %v516
    %3186 = vmatprep.subr.mxu0 %v509
    %3187 = vmatpush1.msra.mxu0 %v508
    %3188 = vmatprep.subr.mxu0 %v501
    %3189 = vmatpush1.msra.mxu0 %v500
    %3190 = vmatprep.subr.mxu0 %v493
    %3191 = vmatpush1.msra.mxu0 %v492
    %3192 = vmatprep.subr.mxu0 %v485
    %3193 = vmatpush1.msra.mxu0 %v484
    %3194 = vmatprep.subr.mxu0 %v477
    %3195 = vmatpush1.msra.mxu0 %v476
    %3196 = vmatprep.subr.mxu0 %v469
    %3197 = vmatpush1.msra.mxu0 %v468
    %3198 = vmatprep.subr.mxu0 %v461
    %3199 = vmatpush1.msra.mxu0 %v460
    %3200 = vmatprep.subr.mxu0 %v453
    %3201 = vmatpush1.msra.mxu0 %v452
    %3202 = vmatprep.subr.mxu0 %v445
    %3203 = vmatpush1.msra.mxu0 %v444
    %3204 = vmatprep.subr.mxu0 %v437
    %3205 = vmatpush1.msra.mxu0 %v436
    %3206 = vmatprep.subr.mxu0 %v429
    %3207 = vmatpush1.msra.mxu0 %v428
    %3208 = vmatprep.subr.mxu0 0.0
    %3209 = vmatpush2.msra.mxu0 0.0
    %3210 = vmatprep.subr.mxu0 0.0
    %3211 = vmatpush2.msra.mxu0 0.0
    %3212 = vmatprep.subr.mxu0 0.0
    %3213 = vmatpush2.msra.mxu0 0.0
    %3214 = vmatprep.subr.mxu0 0.0
    %3215 = vmatpush2.msra.mxu0 0.0
    %3216 = vmatprep.subr.mxu0 0.0
    %3217 = vmatpush2.msra.mxu0 0.0
    %3218 = vmatprep.subr.mxu0 0.0
    %3219 = vmatpush2.msra.mxu0 0.0
    %3220 = vmatprep.subr.mxu0 0.0
    %3221 = vmatpush2.msra.mxu0 0.0
    %3222 = vmatprep.subr.mxu0 0.0
    %3223 = vmatpush2.msra.mxu0 0.0
    %3224 = vmatprep.subr.mxu0 0.0
    %3225 = vmatpush2.msra.mxu0 0.0
    %3226 = vmatprep.subr.mxu0 0.0
    %3227 = vmatpush2.msra.mxu0 0.0
    %3228 = vmatprep.subr.mxu0 0.0
    %3229 = vmatpush2.msra.mxu0 0.0
    %3230 = vmatprep.subr.mxu0 0.0
    %3231 = vmatpush2.msra.mxu0 0.0
    %3232 = vmatprep.subr.mxu0 0.0
    %3233 = vmatpush2.msra.mxu0 0.0
    %3234 = vmatprep.subr.mxu0 0.0
    %3235 = vmatpush2.msra.mxu0 0.0
    %3236 = vmatprep.subr.mxu0 0.0
    %3237 = vmatpush2.msra.mxu0 0.0
    %3238 = vmatprep.subr.mxu0 0.0
    %3239 = vmatpush2.msra.mxu0 0.0
    %3240 = vmatprep.mubr.f32.mxu0 0.0
    %3241 = vmatmul.mubr.f32.gmra.mxu0 %v3033
    %v3242 = vpop.f32.mrf.mxu0
    %v3243 = vadd.f32 0.0, %v3242
    %v3244 = vpop.f32.mrf.mxu0
    %v3245 = vadd.f32 0.0, %v3244
    %3246 = vdwg.mxu0
    %3247 = vmatprep.subr.mxu0 %v551
    %3248 = vmatpush1.msra.mxu0 %v550
    %3249 = vmatprep.subr.mxu0 %v543
    %3250 = vmatpush1.msra.mxu0 %v542
    %3251 = vmatprep.subr.mxu0 %v535
    %3252 = vmatpush1.msra.mxu0 %v534
    %3253 = vmatprep.subr.mxu0 %v527
    %3254 = vmatpush1.msra.mxu0 %v526
    %3255 = vmatprep.subr.mxu0 %v519
    %3256 = vmatpush1.msra.mxu0 %v518
    %3257 = vmatprep.subr.mxu0 %v511
    %3258 = vmatpush1.msra.mxu0 %v510
    %3259 = vmatprep.subr.mxu0 %v503
    %3260 = vmatpush1.msra.mxu0 %v502
    %3261 = vmatprep.subr.mxu0 %v495
    %3262 = vmatpush1.msra.mxu0 %v494
    %3263 = vmatprep.subr.mxu0 %v487
    %3264 = vmatpush1.msra.mxu0 %v486
    %3265 = vmatprep.subr.mxu0 %v479
    %3266 = vmatpush1.msra.mxu0 %v478
    %3267 = vmatprep.subr.mxu0 %v471
    %3268 = vmatpush1.msra.mxu0 %v470
    %3269 = vmatprep.subr.mxu0 %v463
    %3270 = vmatpush1.msra.mxu0 %v462
    %3271 = vmatprep.subr.mxu0 %v455
    %3272 = vmatpush1.msra.mxu0 %v454
    %3273 = vmatprep.subr.mxu0 %v447
    %3274 = vmatpush1.msra.mxu0 %v446
    %3275 = vmatprep.subr.mxu0 %v439
    %3276 = vmatpush1.msra.mxu0 %v438
    %3277 = vmatprep.subr.mxu0 %v431
    %3278 = vmatpush1.msra.mxu0 %v430
    %3279 = vmatprep.subr.mxu0 0.0
    %3280 = vmatpush2.msra.mxu0 0.0
    %3281 = vmatprep.subr.mxu0 0.0
    %3282 = vmatpush2.msra.mxu0 0.0
    %3283 = vmatprep.subr.mxu0 0.0
    %3284 = vmatpush2.msra.mxu0 0.0
    %3285 = vmatprep.subr.mxu0 0.0
    %3286 = vmatpush2.msra.mxu0 0.0
    %3287 = vmatprep.subr.mxu0 0.0
    %3288 = vmatpush2.msra.mxu0 0.0
    %3289 = vmatprep.subr.mxu0 0.0
    %3290 = vmatpush2.msra.mxu0 0.0
    %3291 = vmatprep.subr.mxu0 0.0
    %3292 = vmatpush2.msra.mxu0 0.0
    %3293 = vmatprep.subr.mxu0 0.0
    %3294 = vmatpush2.msra.mxu0 0.0
    %3295 = vmatprep.subr.mxu0 0.0
    %3296 = vmatpush2.msra.mxu0 0.0
    %3297 = vmatprep.subr.mxu0 0.0
    %3298 = vmatpush2.msra.mxu0 0.0
    %3299 = vmatprep.subr.mxu0 0.0
    %3300 = vmatpush2.msra.mxu0 0.0
    %3301 = vmatprep.subr.mxu0 0.0
    %3302 = vmatpush2.msra.mxu0 0.0
    %3303 = vmatprep.subr.mxu0 0.0
    %3304 = vmatpush2.msra.mxu0 0.0
    %3305 = vmatprep.subr.mxu0 0.0
    %3306 = vmatpush2.msra.mxu0 0.0
    %3307 = vmatprep.subr.mxu0 0.0
    %3308 = vmatpush2.msra.mxu0 0.0
    %3309 = vmatprep.subr.mxu0 0.0
    %3310 = vmatpush2.msra.mxu0 0.0
    %3311 = vmatprep.mubr.f32.mxu0 0.0
    %3312 = vmatmul.mubr.f32.gmra.mxu0 %v3033
    %v3313 = vpop.f32.mrf.mxu0
    %v3314 = vadd.f32 0.0, %v3313
    %v3315 = vpop.f32.mrf.mxu0
    %v3316 = vadd.f32 0.0, %v3315
    %3317 = vdwg.mxu0
    %v3318 = vadd.f32 %v3243, %v2933
    %v3319 = vadd.f32 %v3245, %v2935
    %v3320 = vadd.f32 %v3314, %v3004
    %v3321 = vadd.f32 %v3316, %v3006
    %v3322 = vmul.f32 %v3318, 0.5
    %v3323 = vmul.f32 %v3319, 0.5
    %v3324 = vmul.f32 %v3320, 0.5
    %v3325 = vtanh.pop %v3322
    %v3326 = vtanh.pop %v3323
    %v3327 = vtanh.pop %v3324
    %v3328 = vmul.f32 %v3325, 0.5
    %v3329 = vmul.f32 %v3326, 0.5
    %v3330 = vmul.f32 %v3327, 0.5
    %v3331 = vadd.f32 %v3328, 0.5
    %v3332 = vadd.f32 %v3329, 0.5
    %v3333 = vadd.f32 %v3330, 0.5
    %v3334 = vtanh.pop %v3321
    %v3335 = vmul.f32 %v3332, %v2863
    %v3336 = vmul.f32 %v3331, %v3334
    %v3337 = vadd.f32 %v3335, %v3336
    %v3338 = vtanh.pop %v3337
    %v3339 = vmul.f32 %v3333, %v3338
    %3340 = vmatprep.subr.mxu0 %v613
    %3341 = vmatpush1.msra.mxu0 %v612
    %3342 = vmatprep.subr.mxu0 %v609
    %3343 = vmatpush1.msra.mxu0 %v608
    %3344 = vmatprep.subr.mxu0 %v605
    %3345 = vmatpush1.msra.mxu0 %v604
    %3346 = vmatprep.subr.mxu0 %v601
    %3347 = vmatpush1.msra.mxu0 %v600
    %3348 = vmatprep.subr.mxu0 %v597
    %3349 = vmatpush1.msra.mxu0 %v596
    %3350 = vmatprep.subr.mxu0 %v593
    %3351 = vmatpush1.msra.mxu0 %v592
    %3352 = vmatprep.subr.mxu0 %v589
    %3353 = vmatpush1.msra.mxu0 %v588
    %3354 = vmatprep.subr.mxu0 %v585
    %3355 = vmatpush1.msra.mxu0 %v584
    %3356 = vmatprep.subr.mxu0 %v581
    %3357 = vmatpush1.msra.mxu0 %v580
    %3358 = vmatprep.subr.mxu0 %v577
    %3359 = vmatpush1.msra.mxu0 %v576
    %3360 = vmatprep.subr.mxu0 %v573
    %3361 = vmatpush1.msra.mxu0 %v572
    %3362 = vmatprep.subr.mxu0 %v569
    %3363 = vmatpush1.msra.mxu0 %v568
    %3364 = vmatprep.subr.mxu0 %v565
    %3365 = vmatpush1.msra.mxu0 %v564
    %3366 = vmatprep.subr.mxu0 %v561
    %3367 = vmatpush1.msra.mxu0 %v560
    %3368 = vmatprep.subr.mxu0 %v557
    %3369 = vmatpush1.msra.mxu0 %v556
    %3370 = vmatprep.subr.mxu0 %v553
    %3371 = vmatpush1.msra.mxu0 %v552
    %3372 = vmatprep.subr.mxu0 0.0
    %3373 = vmatpush2.msra.mxu0 0.0
    %3374 = vmatprep.subr.mxu0 0.0
    %3375 = vmatpush2.msra.mxu0 0.0
    %3376 = vmatprep.subr.mxu0 0.0
    %3377 = vmatpush2.msra.mxu0 0.0
    %3378 = vmatprep.subr.mxu0 0.0
    %3379 = vmatpush2.msra.mxu0 0.0
    %3380 = vmatprep.subr.mxu0 0.0
    %3381 = vmatpush2.msra.mxu0 0.0
    %3382 = vmatprep.subr.mxu0 0.0
    %3383 = vmatpush2.msra.mxu0 0.0
    %3384 = vmatprep.subr.mxu0 0.0
    %3385 = vmatpush2.msra.mxu0 0.0
    %3386 = vmatprep.subr.mxu0 0.0
    %3387 = vmatpush2.msra.mxu0 0.0
    %3388 = vmatprep.subr.mxu0 0.0
    %3389 = vmatpush2.msra.mxu0 0.0
    %3390 = vmatprep.subr.mxu0 0.0
    %3391 = vmatpush2.msra.mxu0 0.0
    %3392 = vmatprep.subr.mxu0 0.0
    %3393 = vmatpush2.msra.mxu0 0.0
    %3394 = vmatprep.subr.mxu0 0.0
    %3395 = vmatpush2.msra.mxu0 0.0
    %3396 = vmatprep.subr.mxu0 0.0
    %3397 = vmatpush2.msra.mxu0 0.0
    %3398 = vmatprep.subr.mxu0 0.0
    %3399 = vmatpush2.msra.mxu0 0.0
    %3400 = vmatprep.subr.mxu0 0.0
    %3401 = vmatpush2.msra.mxu0 0.0
    %3402 = vmatprep.subr.mxu0 0.0
    %3403 = vmatpush2.msra.mxu0 0.0
    %3404 = vmatprep.mubr.f32.mxu0 0.0
    %3405 = vmatmul.mubr.f32.gmra.mxu0 %v3339
    %v3406 = vpop.f32.mrf.mxu0
    %v3407 = vadd.f32 %v621, %v3406
    %v3408 = vpop.f32.mrf.mxu0
    %v3409 = vadd.f32 %v625, %v3408
    %3410 = vdwg.mxu0
    %3411 = vmatprep.subr.mxu0 %v615
    %3412 = vmatpush1.msra.mxu0 %v614
    %3413 = vmatprep.subr.mxu0 %v611
    %3414 = vmatpush1.msra.mxu0 %v610
    %3415 = vmatprep.subr.mxu0 %v607
    %3416 = vmatpush1.msra.mxu0 %v606
    %3417 = vmatprep.subr.mxu0 %v603
    %3418 = vmatpush1.msra.mxu0 %v602
    %3419 = vmatprep.subr.mxu0 %v599
    %3420 = vmatpush1.msra.mxu0 %v598
    %3421 = vmatprep.subr.mxu0 %v595
    %3422 = vmatpush1.msra.mxu0 %v594
    %3423 = vmatprep.subr.mxu0 %v591
    %3424 = vmatpush1.msra.mxu0 %v590
    %3425 = vmatprep.subr.mxu0 %v587
    %3426 = vmatpush1.msra.mxu0 %v586
    %3427 = vmatprep.subr.mxu0 %v583
    %3428 = vmatpush1.msra.mxu0 %v582
    %3429 = vmatprep.subr.mxu0 %v579
    %3430 = vmatpush1.msra.mxu0 %v578
    %3431 = vmatprep.subr.mxu0 %v575
    %3432 = vmatpush1.msra.mxu0 %v574
    %3433 = vmatprep.subr.mxu0 %v571
    %3434 = vmatpush1.msra.mxu0 %v570
    %3435 = vmatprep.subr.mxu0 %v567
    %3436 = vmatpush1.msra.mxu0 %v566
    %3437 = vmatprep.subr.mxu0 %v563
    %3438 = vmatpush1.msra.mxu0 %v562
    %3439 = vmatprep.subr.mxu0 %v559
    %3440 = vmatpush1.msra.mxu0 %v558
    %3441 = vmatprep.subr.mxu0 %v555
    %3442 = vmatpush1.msra.mxu0 %v554
    %3443 = vmatprep.subr.mxu0 0.0
    %3444 = vmatpush2.msra.mxu0 0.0
    %3445 = vmatprep.subr.mxu0 0.0
    %3446 = vmatpush2.msra.mxu0 0.0
    %3447 = vmatprep.subr.mxu0 0.0
    %3448 = vmatpush2.msra.mxu0 0.0
    %3449 = vmatprep.subr.mxu0 0.0
    %3450 = vmatpush2.msra.mxu0 0.0
    %3451 = vmatprep.subr.mxu0 0.0
    %3452 = vmatpush2.msra.mxu0 0.0
    %3453 = vmatprep.subr.mxu0 0.0
    %3454 = vmatpush2.msra.mxu0 0.0
    %3455 = vmatprep.subr.mxu0 0.0
    %3456 = vmatpush2.msra.mxu0 0.0
    %3457 = vmatprep.subr.mxu0 0.0
    %3458 = vmatpush2.msra.mxu0 0.0
    %3459 = vmatprep.subr.mxu0 0.0
    %3460 = vmatpush2.msra.mxu0 0.0
    %3461 = vmatprep.subr.mxu0 0.0
    %3462 = vmatpush2.msra.mxu0 0.0
    %3463 = vmatprep.subr.mxu0 0.0
    %3464 = vmatpush2.msra.mxu0 0.0
    %3465 = vmatprep.subr.mxu0 0.0
    %3466 = vmatpush2.msra.mxu0 0.0
    %3467 = vmatprep.subr.mxu0 0.0
    %3468 = vmatpush2.msra.mxu0 0.0
    %3469 = vmatprep.subr.mxu0 0.0
    %3470 = vmatpush2.msra.mxu0 0.0
    %3471 = vmatprep.subr.mxu0 0.0
    %3472 = vmatpush2.msra.mxu0 0.0
    %3473 = vmatprep.subr.mxu0 0.0
    %3474 = vmatpush2.msra.mxu0 0.0
    %3475 = vmatprep.mubr.f32.mxu0 0.0
    %3476 = vmatmul.mubr.f32.gmra.mxu0 %v3339
    %v3477 = vpop.f32.mrf.mxu0
    %v3478 = vadd.f32 %v629, %v3477
    %v3479 = vpop.f32.mrf.mxu0
    %v3480 = vadd.f32 %v633, %v3479
    %3481 = vdwg.mxu0
    %v3482 = vld [vmem:[#allocation2 + $0xc0] sm:$0xff]
    %v3483 = vld [vmem:[#allocation2 + $0xc8] sm:$0xff]
    %v3484 = vld [vmem:[#allocation2 + $0xd0] sm:$0xff]
    %v3485 = vld [vmem:[#allocation2 + $0xd8] sm:$0xff]
    %v3486 = vadd.f32 %v3482, %v3101
    %v3487 = vadd.f32 %v3483, %v3103
    %v3488 = vadd.f32 %v3484, %v3172
    %v3489 = vadd.f32 %v3485, %v3174
    %v3490 = vmul.f32 %v3486, 0.5
    %v3491 = vmul.f32 %v3487, 0.5
    %v3492 = vmul.f32 %v3488, 0.5
    %v3493 = vtanh.pop %v3490
    %v3494 = vtanh.pop %v3491
    %v3495 = vtanh.pop %v3492
    %v3496 = vmul.f32 %v3493, 0.5
    %v3497 = vmul.f32 %v3494, 0.5
    %v3498 = vmul.f32 %v3495, 0.5
    %v3499 = vadd.f32 %v3496, 0.5
    %v3500 = vadd.f32 %v3497, 0.5
    %v3501 = vadd.f32 %v3498, 0.5
    %v3502 = vtanh.pop %v3489
    %v3503 = vmul.f32 %v3500, %v3031
    %v3504 = vmul.f32 %v3499, %v3502
    %v3505 = vadd.f32 %v3503, %v3504
    %v3506 = vtanh.pop %v3505
    %v3507 = vmul.f32 %v3501, %v3506
    %3508 = vmatprep.subr.mxu0 %v545
    %3509 = vmatpush1.msra.mxu0 %v544
    %3510 = vmatprep.subr.mxu0 %v537
    %3511 = vmatpush1.msra.mxu0 %v536
    %3512 = vmatprep.subr.mxu0 %v529
    %3513 = vmatpush1.msra.mxu0 %v528
    %3514 = vmatprep.subr.mxu0 %v521
    %3515 = vmatpush1.msra.mxu0 %v520
    %3516 = vmatprep.subr.mxu0 %v513
    %3517 = vmatpush1.msra.mxu0 %v512
    %3518 = vmatprep.subr.mxu0 %v505
    %3519 = vmatpush1.msra.mxu0 %v504
    %3520 = vmatprep.subr.mxu0 %v497
    %3521 = vmatpush1.msra.mxu0 %v496
    %3522 = vmatprep.subr.mxu0 %v489
    %3523 = vmatpush1.msra.mxu0 %v488
    %3524 = vmatprep.subr.mxu0 %v481
    %3525 = vmatpush1.msra.mxu0 %v480
    %3526 = vmatprep.subr.mxu0 %v473
    %3527 = vmatpush1.msra.mxu0 %v472
    %3528 = vmatprep.subr.mxu0 %v465
    %3529 = vmatpush1.msra.mxu0 %v464
    %3530 = vmatprep.subr.mxu0 %v457
    %3531 = vmatpush1.msra.mxu0 %v456
    %3532 = vmatprep.subr.mxu0 %v449
    %3533 = vmatpush1.msra.mxu0 %v448
    %3534 = vmatprep.subr.mxu0 %v441
    %3535 = vmatpush1.msra.mxu0 %v440
    %3536 = vmatprep.subr.mxu0 %v433
    %3537 = vmatpush1.msra.mxu0 %v432
    %3538 = vmatprep.subr.mxu0 %v425
    %3539 = vmatpush1.msra.mxu0 %v424
    %3540 = vmatprep.subr.mxu0 0.0
    %3541 = vmatpush2.msra.mxu0 0.0
    %3542 = vmatprep.subr.mxu0 0.0
    %3543 = vmatpush2.msra.mxu0 0.0
    %3544 = vmatprep.subr.mxu0 0.0
    %3545 = vmatpush2.msra.mxu0 0.0
    %3546 = vmatprep.subr.mxu0 0.0
    %3547 = vmatpush2.msra.mxu0 0.0
    %3548 = vmatprep.subr.mxu0 0.0
    %3549 = vmatpush2.msra.mxu0 0.0
    %3550 = vmatprep.subr.mxu0 0.0
    %3551 = vmatpush2.msra.mxu0 0.0
    %3552 = vmatprep.subr.mxu0 0.0
    %3553 = vmatpush2.msra.mxu0 0.0
    %3554 = vmatprep.subr.mxu0 0.0
    %3555 = vmatpush2.msra.mxu0 0.0
    %3556 = vmatprep.subr.mxu0 0.0
    %3557 = vmatpush2.msra.mxu0 0.0
    %3558 = vmatprep.subr.mxu0 0.0
    %3559 = vmatpush2.msra.mxu0 0.0
    %3560 = vmatprep.subr.mxu0 0.0
    %3561 = vmatpush2.msra.mxu0 0.0
    %3562 = vmatprep.subr.mxu0 0.0
    %3563 = vmatpush2.msra.mxu0 0.0
    %3564 = vmatprep.subr.mxu0 0.0
    %3565 = vmatpush2.msra.mxu0 0.0
    %3566 = vmatprep.subr.mxu0 0.0
    %3567 = vmatpush2.msra.mxu0 0.0
    %3568 = vmatprep.subr.mxu0 0.0
    %3569 = vmatpush2.msra.mxu0 0.0
    %3570 = vmatprep.subr.mxu0 0.0
    %3571 = vmatpush2.msra.mxu0 0.0
    %3572 = vmatprep.mubr.f32.mxu0 0.0
    %3573 = vmatmul.mubr.f32.gmra.mxu0 %v3507
    %v3574 = vpop.f32.mrf.mxu0
    %v3575 = vadd.f32 0.0, %v3574
    %v3576 = vpop.f32.mrf.mxu0
    %v3577 = vadd.f32 0.0, %v3576
    %3578 = vdwg.mxu0
    %3579 = vmatprep.subr.mxu0 %v547
    %3580 = vmatpush1.msra.mxu0 %v546
    %3581 = vmatprep.subr.mxu0 %v539
    %3582 = vmatpush1.msra.mxu0 %v538
    %3583 = vmatprep.subr.mxu0 %v531
    %3584 = vmatpush1.msra.mxu0 %v530
    %3585 = vmatprep.subr.mxu0 %v523
    %3586 = vmatpush1.msra.mxu0 %v522
    %3587 = vmatprep.subr.mxu0 %v515
    %3588 = vmatpush1.msra.mxu0 %v514
    %3589 = vmatprep.subr.mxu0 %v507
    %3590 = vmatpush1.msra.mxu0 %v506
    %3591 = vmatprep.subr.mxu0 %v499
    %3592 = vmatpush1.msra.mxu0 %v498
    %3593 = vmatprep.subr.mxu0 %v491
    %3594 = vmatpush1.msra.mxu0 %v490
    %3595 = vmatprep.subr.mxu0 %v483
    %3596 = vmatpush1.msra.mxu0 %v482
    %3597 = vmatprep.subr.mxu0 %v475
    %3598 = vmatpush1.msra.mxu0 %v474
    %3599 = vmatprep.subr.mxu0 %v467
    %3600 = vmatpush1.msra.mxu0 %v466
    %3601 = vmatprep.subr.mxu0 %v459
    %3602 = vmatpush1.msra.mxu0 %v458
    %3603 = vmatprep.subr.mxu0 %v451
    %3604 = vmatpush1.msra.mxu0 %v450
    %3605 = vmatprep.subr.mxu0 %v443
    %3606 = vmatpush1.msra.mxu0 %v442
    %3607 = vmatprep.subr.mxu0 %v435
    %3608 = vmatpush1.msra.mxu0 %v434
    %3609 = vmatprep.subr.mxu0 %v427
    %3610 = vmatpush1.msra.mxu0 %v426
    %3611 = vmatprep.subr.mxu0 0.0
    %3612 = vmatpush2.msra.mxu0 0.0
    %3613 = vmatprep.subr.mxu0 0.0
    %3614 = vmatpush2.msra.mxu0 0.0
    %3615 = vmatprep.subr.mxu0 0.0
    %3616 = vmatpush2.msra.mxu0 0.0
    %3617 = vmatprep.subr.mxu0 0.0
    %3618 = vmatpush2.msra.mxu0 0.0
    %3619 = vmatprep.subr.mxu0 0.0
    %3620 = vmatpush2.msra.mxu0 0.0
    %3621 = vmatprep.subr.mxu0 0.0
    %3622 = vmatpush2.msra.mxu0 0.0
    %3623 = vmatprep.subr.mxu0 0.0
    %3624 = vmatpush2.msra.mxu0 0.0
    %3625 = vmatprep.subr.mxu0 0.0
    %3626 = vmatpush2.msra.mxu0 0.0
    %3627 = vmatprep.subr.mxu0 0.0
    %3628 = vmatpush2.msra.mxu0 0.0
    %3629 = vmatprep.subr.mxu0 0.0
    %3630 = vmatpush2.msra.mxu0 0.0
    %3631 = vmatprep.subr.mxu0 0.0
    %3632 = vmatpush2.msra.mxu0 0.0
    %3633 = vmatprep.subr.mxu0 0.0
    %3634 = vmatpush2.msra.mxu0 0.0
    %3635 = vmatprep.subr.mxu0 0.0
    %3636 = vmatpush2.msra.mxu0 0.0
    %3637 = vmatprep.subr.mxu0 0.0
    %3638 = vmatpush2.msra.mxu0 0.0
    %3639 = vmatprep.subr.mxu0 0.0
    %3640 = vmatpush2.msra.mxu0 0.0
    %3641 = vmatprep.subr.mxu0 0.0
    %3642 = vmatpush2.msra.mxu0 0.0
    %3643 = vmatprep.mubr.f32.mxu0 0.0
    %3644 = vmatmul.mubr.f32.gmra.mxu0 %v3507
    %v3645 = vpop.f32.mrf.mxu0
    %v3646 = vadd.f32 0.0, %v3645
    %v3647 = vpop.f32.mrf.mxu0
    %v3648 = vadd.f32 0.0, %v3647
    %3649 = vdwg.mxu0
    %3650 = vmatprep.subr.mxu0 %v549
    %3651 = vmatpush1.msra.mxu0 %v548
    %3652 = vmatprep.subr.mxu0 %v541
    %3653 = vmatpush1.msra.mxu0 %v540
    %3654 = vmatprep.subr.mxu0 %v533
    %3655 = vmatpush1.msra.mxu0 %v532
    %3656 = vmatprep.subr.mxu0 %v525
    %3657 = vmatpush1.msra.mxu0 %v524
    %3658 = vmatprep.subr.mxu0 %v517
    %3659 = vmatpush1.msra.mxu0 %v516
    %3660 = vmatprep.subr.mxu0 %v509
    %3661 = vmatpush1.msra.mxu0 %v508
    %3662 = vmatprep.subr.mxu0 %v501
    %3663 = vmatpush1.msra.mxu0 %v500
    %3664 = vmatprep.subr.mxu0 %v493
    %3665 = vmatpush1.msra.mxu0 %v492
    %3666 = vmatprep.subr.mxu0 %v485
    %3667 = vmatpush1.msra.mxu0 %v484
    %3668 = vmatprep.subr.mxu0 %v477
    %3669 = vmatpush1.msra.mxu0 %v476
    %3670 = vmatprep.subr.mxu0 %v469
    %3671 = vmatpush1.msra.mxu0 %v468
    %3672 = vmatprep.subr.mxu0 %v461
    %3673 = vmatpush1.msra.mxu0 %v460
    %3674 = vmatprep.subr.mxu0 %v453
    %3675 = vmatpush1.msra.mxu0 %v452
    %3676 = vmatprep.subr.mxu0 %v445
    %3677 = vmatpush1.msra.mxu0 %v444
    %3678 = vmatprep.subr.mxu0 %v437
    %3679 = vmatpush1.msra.mxu0 %v436
    %3680 = vmatprep.subr.mxu0 %v429
    %3681 = vmatpush1.msra.mxu0 %v428
    %3682 = vmatprep.subr.mxu0 0.0
    %3683 = vmatpush2.msra.mxu0 0.0
    %3684 = vmatprep.subr.mxu0 0.0
    %3685 = vmatpush2.msra.mxu0 0.0
    %3686 = vmatprep.subr.mxu0 0.0
    %3687 = vmatpush2.msra.mxu0 0.0
    %3688 = vmatprep.subr.mxu0 0.0
    %3689 = vmatpush2.msra.mxu0 0.0
    %3690 = vmatprep.subr.mxu0 0.0
    %3691 = vmatpush2.msra.mxu0 0.0
    %3692 = vmatprep.subr.mxu0 0.0
    %3693 = vmatpush2.msra.mxu0 0.0
    %3694 = vmatprep.subr.mxu0 0.0
    %3695 = vmatpush2.msra.mxu0 0.0
    %3696 = vmatprep.subr.mxu0 0.0
    %3697 = vmatpush2.msra.mxu0 0.0
    %3698 = vmatprep.subr.mxu0 0.0
    %3699 = vmatpush2.msra.mxu0 0.0
    %3700 = vmatprep.subr.mxu0 0.0
    %3701 = vmatpush2.msra.mxu0 0.0
    %3702 = vmatprep.subr.mxu0 0.0
    %3703 = vmatpush2.msra.mxu0 0.0
    %3704 = vmatprep.subr.mxu0 0.0
    %3705 = vmatpush2.msra.mxu0 0.0
    %3706 = vmatprep.subr.mxu0 0.0
    %3707 = vmatpush2.msra.mxu0 0.0
    %3708 = vmatprep.subr.mxu0 0.0
    %3709 = vmatpush2.msra.mxu0 0.0
    %3710 = vmatprep.subr.mxu0 0.0
    %3711 = vmatpush2.msra.mxu0 0.0
    %3712 = vmatprep.subr.mxu0 0.0
    %3713 = vmatpush2.msra.mxu0 0.0
    %3714 = vmatprep.mubr.f32.mxu0 0.0
    %3715 = vmatmul.mubr.f32.gmra.mxu0 %v3507
    %v3716 = vpop.f32.mrf.mxu0
    %v3717 = vadd.f32 0.0, %v3716
    %v3718 = vpop.f32.mrf.mxu0
    %v3719 = vadd.f32 0.0, %v3718
    %3720 = vdwg.mxu0
    %3721 = vmatprep.subr.mxu0 %v551
    %3722 = vmatpush1.msra.mxu0 %v550
    %3723 = vmatprep.subr.mxu0 %v543
    %3724 = vmatpush1.msra.mxu0 %v542
    %3725 = vmatprep.subr.mxu0 %v535
    %3726 = vmatpush1.msra.mxu0 %v534
    %3727 = vmatprep.subr.mxu0 %v527
    %3728 = vmatpush1.msra.mxu0 %v526
    %3729 = vmatprep.subr.mxu0 %v519
    %3730 = vmatpush1.msra.mxu0 %v518
    %3731 = vmatprep.subr.mxu0 %v511
    %3732 = vmatpush1.msra.mxu0 %v510
    %3733 = vmatprep.subr.mxu0 %v503
    %3734 = vmatpush1.msra.mxu0 %v502
    %3735 = vmatprep.subr.mxu0 %v495
    %3736 = vmatpush1.msra.mxu0 %v494
    %3737 = vmatprep.subr.mxu0 %v487
    %3738 = vmatpush1.msra.mxu0 %v486
    %3739 = vmatprep.subr.mxu0 %v479
    %3740 = vmatpush1.msra.mxu0 %v478
    %3741 = vmatprep.subr.mxu0 %v471
    %3742 = vmatpush1.msra.mxu0 %v470
    %3743 = vmatprep.subr.mxu0 %v463
    %3744 = vmatpush1.msra.mxu0 %v462
    %3745 = vmatprep.subr.mxu0 %v455
    %3746 = vmatpush1.msra.mxu0 %v454
    %3747 = vmatprep.subr.mxu0 %v447
    %3748 = vmatpush1.msra.mxu0 %v446
    %3749 = vmatprep.subr.mxu0 %v439
    %3750 = vmatpush1.msra.mxu0 %v438
    %3751 = vmatprep.subr.mxu0 %v431
    %3752 = vmatpush1.msra.mxu0 %v430
    %3753 = vmatprep.subr.mxu0 0.0
    %3754 = vmatpush2.msra.mxu0 0.0
    %3755 = vmatprep.subr.mxu0 0.0
    %3756 = vmatpush2.msra.mxu0 0.0
    %3757 = vmatprep.subr.mxu0 0.0
    %3758 = vmatpush2.msra.mxu0 0.0
    %3759 = vmatprep.subr.mxu0 0.0
    %3760 = vmatpush2.msra.mxu0 0.0
    %3761 = vmatprep.subr.mxu0 0.0
    %3762 = vmatpush2.msra.mxu0 0.0
    %3763 = vmatprep.subr.mxu0 0.0
    %3764 = vmatpush2.msra.mxu0 0.0
    %3765 = vmatprep.subr.mxu0 0.0
    %3766 = vmatpush2.msra.mxu0 0.0
    %3767 = vmatprep.subr.mxu0 0.0
    %3768 = vmatpush2.msra.mxu0 0.0
    %3769 = vmatprep.subr.mxu0 0.0
    %3770 = vmatpush2.msra.mxu0 0.0
    %3771 = vmatprep.subr.mxu0 0.0
    %3772 = vmatpush2.msra.mxu0 0.0
    %3773 = vmatprep.subr.mxu0 0.0
    %3774 = vmatpush2.msra.mxu0 0.0
    %3775 = vmatprep.subr.mxu0 0.0
    %3776 = vmatpush2.msra.mxu0 0.0
    %3777 = vmatprep.subr.mxu0 0.0
    %3778 = vmatpush2.msra.mxu0 0.0
    %3779 = vmatprep.subr.mxu0 0.0
    %3780 = vmatpush2.msra.mxu0 0.0
    %3781 = vmatprep.subr.mxu0 0.0
    %3782 = vmatpush2.msra.mxu0 0.0
    %3783 = vmatprep.subr.mxu0 0.0
    %3784 = vmatpush2.msra.mxu0 0.0
    %3785 = vmatprep.mubr.f32.mxu0 0.0
    %3786 = vmatmul.mubr.f32.gmra.mxu0 %v3507
    %v3787 = vpop.f32.mrf.mxu0
    %v3788 = vadd.f32 0.0, %v3787
    %v3789 = vpop.f32.mrf.mxu0
    %v3790 = vadd.f32 0.0, %v3789
    %3791 = vdwg.mxu0
    %v3792 = vadd.f32 %v3717, %v3407
    %v3793 = vadd.f32 %v3719, %v3409
    %v3794 = vadd.f32 %v3788, %v3478
    %v3795 = vadd.f32 %v3790, %v3480
    %v3796 = vmul.f32 %v3792, 0.5
    %v3797 = vmul.f32 %v3793, 0.5
    %v3798 = vmul.f32 %v3794, 0.5
    %v3799 = vtanh.pop %v3796
    %v3800 = vtanh.pop %v3797
    %v3801 = vtanh.pop %v3798
    %v3802 = vmul.f32 %v3799, 0.5
    %v3803 = vmul.f32 %v3800, 0.5
    %v3804 = vmul.f32 %v3801, 0.5
    %v3805 = vadd.f32 %v3802, 0.5
    %v3806 = vadd.f32 %v3803, 0.5
    %v3807 = vadd.f32 %v3804, 0.5
    %v3808 = vtanh.pop %v3795
    %v3809 = vmul.f32 %v3806, %v3337
    %v3810 = vmul.f32 %v3805, %v3808
    %v3811 = vadd.f32 %v3809, %v3810
    %v3812 = vtanh.pop %v3811
    %v3813 = vmul.f32 %v3807, %v3812
    %3814 = vmatprep.subr.mxu0 %v613
    %3815 = vmatpush1.msra.mxu0 %v612
    %3816 = vmatprep.subr.mxu0 %v609
    %3817 = vmatpush1.msra.mxu0 %v608
    %3818 = vmatprep.subr.mxu0 %v605
    %3819 = vmatpush1.msra.mxu0 %v604
    %3820 = vmatprep.subr.mxu0 %v601
    %3821 = vmatpush1.msra.mxu0 %v600
    %3822 = vmatprep.subr.mxu0 %v597
    %3823 = vmatpush1.msra.mxu0 %v596
    %3824 = vmatprep.subr.mxu0 %v593
    %3825 = vmatpush1.msra.mxu0 %v592
    %3826 = vmatprep.subr.mxu0 %v589
    %3827 = vmatpush1.msra.mxu0 %v588
    %3828 = vmatprep.subr.mxu0 %v585
    %3829 = vmatpush1.msra.mxu0 %v584
    %3830 = vmatprep.subr.mxu0 %v581
    %3831 = vmatpush1.msra.mxu0 %v580
    %3832 = vmatprep.subr.mxu0 %v577
    %3833 = vmatpush1.msra.mxu0 %v576
    %3834 = vmatprep.subr.mxu0 %v573
    %3835 = vmatpush1.msra.mxu0 %v572
    %3836 = vmatprep.subr.mxu0 %v569
    %3837 = vmatpush1.msra.mxu0 %v568
    %3838 = vmatprep.subr.mxu0 %v565
    %3839 = vmatpush1.msra.mxu0 %v564
    %3840 = vmatprep.subr.mxu0 %v561
    %3841 = vmatpush1.msra.mxu0 %v560
    %3842 = vmatprep.subr.mxu0 %v557
    %3843 = vmatpush1.msra.mxu0 %v556
    %3844 = vmatprep.subr.mxu0 %v553
    %3845 = vmatpush1.msra.mxu0 %v552
    %3846 = vmatprep.subr.mxu0 0.0
    %3847 = vmatpush2.msra.mxu0 0.0
    %3848 = vmatprep.subr.mxu0 0.0
    %3849 = vmatpush2.msra.mxu0 0.0
    %3850 = vmatprep.subr.mxu0 0.0
    %3851 = vmatpush2.msra.mxu0 0.0
    %3852 = vmatprep.subr.mxu0 0.0
    %3853 = vmatpush2.msra.mxu0 0.0
    %3854 = vmatprep.subr.mxu0 0.0
    %3855 = vmatpush2.msra.mxu0 0.0
    %3856 = vmatprep.subr.mxu0 0.0
    %3857 = vmatpush2.msra.mxu0 0.0
    %3858 = vmatprep.subr.mxu0 0.0
    %3859 = vmatpush2.msra.mxu0 0.0
    %3860 = vmatprep.subr.mxu0 0.0
    %3861 = vmatpush2.msra.mxu0 0.0
    %3862 = vmatprep.subr.mxu0 0.0
    %3863 = vmatpush2.msra.mxu0 0.0
    %3864 = vmatprep.subr.mxu0 0.0
    %3865 = vmatpush2.msra.mxu0 0.0
    %3866 = vmatprep.subr.mxu0 0.0
    %3867 = vmatpush2.msra.mxu0 0.0
    %3868 = vmatprep.subr.mxu0 0.0
    %3869 = vmatpush2.msra.mxu0 0.0
    %3870 = vmatprep.subr.mxu0 0.0
    %3871 = vmatpush2.msra.mxu0 0.0
    %3872 = vmatprep.subr.mxu0 0.0
    %3873 = vmatpush2.msra.mxu0 0.0
    %3874 = vmatprep.subr.mxu0 0.0
    %3875 = vmatpush2.msra.mxu0 0.0
    %3876 = vmatprep.subr.mxu0 0.0
    %3877 = vmatpush2.msra.mxu0 0.0
    %3878 = vmatprep.mubr.f32.mxu0 0.0
    %3879 = vmatmul.mubr.f32.gmra.mxu0 %v3813
    %v3880 = vpop.f32.mrf.mxu0
    %v3881 = vadd.f32 %v621, %v3880
    %v3882 = vpop.f32.mrf.mxu0
    %v3883 = vadd.f32 %v625, %v3882
    %3884 = vdwg.mxu0
    %3885 = vmatprep.subr.mxu0 %v615
    %3886 = vmatpush1.msra.mxu0 %v614
    %3887 = vmatprep.subr.mxu0 %v611
    %3888 = vmatpush1.msra.mxu0 %v610
    %3889 = vmatprep.subr.mxu0 %v607
    %3890 = vmatpush1.msra.mxu0 %v606
    %3891 = vmatprep.subr.mxu0 %v603
    %3892 = vmatpush1.msra.mxu0 %v602
    %3893 = vmatprep.subr.mxu0 %v599
    %3894 = vmatpush1.msra.mxu0 %v598
    %3895 = vmatprep.subr.mxu0 %v595
    %3896 = vmatpush1.msra.mxu0 %v594
    %3897 = vmatprep.subr.mxu0 %v591
    %3898 = vmatpush1.msra.mxu0 %v590
    %3899 = vmatprep.subr.mxu0 %v587
    %3900 = vmatpush1.msra.mxu0 %v586
    %3901 = vmatprep.subr.mxu0 %v583
    %3902 = vmatpush1.msra.mxu0 %v582
    %3903 = vmatprep.subr.mxu0 %v579
    %3904 = vmatpush1.msra.mxu0 %v578
    %3905 = vmatprep.subr.mxu0 %v575
    %3906 = vmatpush1.msra.mxu0 %v574
    %3907 = vmatprep.subr.mxu0 %v571
    %3908 = vmatpush1.msra.mxu0 %v570
    %3909 = vmatprep.subr.mxu0 %v567
    %3910 = vmatpush1.msra.mxu0 %v566
    %3911 = vmatprep.subr.mxu0 %v563
    %3912 = vmatpush1.msra.mxu0 %v562
    %3913 = vmatprep.subr.mxu0 %v559
    %3914 = vmatpush1.msra.mxu0 %v558
    %3915 = vmatprep.subr.mxu0 %v555
    %3916 = vmatpush1.msra.mxu0 %v554
    %3917 = vmatprep.subr.mxu0 0.0
    %3918 = vmatpush2.msra.mxu0 0.0
    %3919 = vmatprep.subr.mxu0 0.0
    %3920 = vmatpush2.msra.mxu0 0.0
    %3921 = vmatprep.subr.mxu0 0.0
    %3922 = vmatpush2.msra.mxu0 0.0
    %3923 = vmatprep.subr.mxu0 0.0
    %3924 = vmatpush2.msra.mxu0 0.0
    %3925 = vmatprep.subr.mxu0 0.0
    %3926 = vmatpush2.msra.mxu0 0.0
    %3927 = vmatprep.subr.mxu0 0.0
    %3928 = vmatpush2.msra.mxu0 0.0
    %3929 = vmatprep.subr.mxu0 0.0
    %3930 = vmatpush2.msra.mxu0 0.0
    %3931 = vmatprep.subr.mxu0 0.0
    %3932 = vmatpush2.msra.mxu0 0.0
    %3933 = vmatprep.subr.mxu0 0.0
    %3934 = vmatpush2.msra.mxu0 0.0
    %3935 = vmatprep.subr.mxu0 0.0
    %3936 = vmatpush2.msra.mxu0 0.0
    %3937 = vmatprep.subr.mxu0 0.0
    %3938 = vmatpush2.msra.mxu0 0.0
    %3939 = vmatprep.subr.mxu0 0.0
    %3940 = vmatpush2.msra.mxu0 0.0
    %3941 = vmatprep.subr.mxu0 0.0
    %3942 = vmatpush2.msra.mxu0 0.0
    %3943 = vmatprep.subr.mxu0 0.0
    %3944 = vmatpush2.msra.mxu0 0.0
    %3945 = vmatprep.subr.mxu0 0.0
    %3946 = vmatpush2.msra.mxu0 0.0
    %3947 = vmatprep.subr.mxu0 0.0
    %3948 = vmatpush2.msra.mxu0 0.0
    %3949 = vmatprep.mubr.f32.mxu0 0.0
    %3950 = vmatmul.mubr.f32.gmra.mxu0 %v3813
    %v3951 = vpop.f32.mrf.mxu0
    %v3952 = vadd.f32 %v629, %v3951
    %v3953 = vpop.f32.mrf.mxu0
    %v3954 = vadd.f32 %v633, %v3953
    %3955 = vdwg.mxu0
    %v3956 = vld [vmem:[#allocation2 + $0xe0] sm:$0xff]
    %v3957 = vld [vmem:[#allocation2 + $0xe8] sm:$0xff]
    %v3958 = vld [vmem:[#allocation2 + $0xf0] sm:$0xff]
    %v3959 = vld [vmem:[#allocation2 + $0xf8] sm:$0xff]
    %v3960 = vadd.f32 %v3956, %v3575
    %v3961 = vadd.f32 %v3957, %v3577
    %v3962 = vadd.f32 %v3958, %v3646
    %v3963 = vadd.f32 %v3959, %v3648
    %v3964 = vmul.f32 %v3960, 0.5
    %v3965 = vmul.f32 %v3961, 0.5
    %v3966 = vmul.f32 %v3962, 0.5
    %v3967 = vtanh.pop %v3964
    %v3968 = vtanh.pop %v3965
    %v3969 = vtanh.pop %v3966
    %v3970 = vmul.f32 %v3967, 0.5
    %v3971 = vmul.f32 %v3968, 0.5
    %v3972 = vmul.f32 %v3969, 0.5
    %v3973 = vadd.f32 %v3970, 0.5
    %v3974 = vadd.f32 %v3971, 0.5
    %v3975 = vadd.f32 %v3972, 0.5
    %v3976 = vtanh.pop %v3963
    %v3977 = vmul.f32 %v3974, %v3505
    %v3978 = vmul.f32 %v3973, %v3976
    %v3979 = vadd.f32 %v3977, %v3978
    %v3980 = vtanh.pop %v3979
    %v3981 = vmul.f32 %v3975, %v3980
    %3982 = vmatprep.subr.mxu0 %v549
    %3983 = vmatpush1.msra.mxu0 %v548
    %3984 = vmatprep.subr.mxu0 %v541
    %3985 = vmatpush1.msra.mxu0 %v540
    %3986 = vmatprep.subr.mxu0 %v533
    %3987 = vmatpush1.msra.mxu0 %v532
    %3988 = vmatprep.subr.mxu0 %v525
    %3989 = vmatpush1.msra.mxu0 %v524
    %3990 = vmatprep.subr.mxu0 %v517
    %3991 = vmatpush1.msra.mxu0 %v516
    %3992 = vmatprep.subr.mxu0 %v509
    %3993 = vmatpush1.msra.mxu0 %v508
    %3994 = vmatprep.subr.mxu0 %v501
    %3995 = vmatpush1.msra.mxu0 %v500
    %3996 = vmatprep.subr.mxu0 %v493
    %3997 = vmatpush1.msra.mxu0 %v492
    %3998 = vmatprep.subr.mxu0 %v485
    %3999 = vmatpush1.msra.mxu0 %v484
    %4000 = vmatprep.subr.mxu0 %v477
    %4001 = vmatpush1.msra.mxu0 %v476
    %4002 = vmatprep.subr.mxu0 %v469
    %4003 = vmatpush1.msra.mxu0 %v468
    %4004 = vmatprep.subr.mxu0 %v461
    %4005 = vmatpush1.msra.mxu0 %v460
    %4006 = vmatprep.subr.mxu0 %v453
    %4007 = vmatpush1.msra.mxu0 %v452
    %4008 = vmatprep.subr.mxu0 %v445
    %4009 = vmatpush1.msra.mxu0 %v444
    %4010 = vmatprep.subr.mxu0 %v437
    %4011 = vmatpush1.msra.mxu0 %v436
    %4012 = vmatprep.subr.mxu0 %v429
    %4013 = vmatpush1.msra.mxu0 %v428
    %4014 = vmatprep.subr.mxu0 0.0
    %4015 = vmatpush2.msra.mxu0 0.0
    %4016 = vmatprep.subr.mxu0 0.0
    %4017 = vmatpush2.msra.mxu0 0.0
    %4018 = vmatprep.subr.mxu0 0.0
    %4019 = vmatpush2.msra.mxu0 0.0
    %4020 = vmatprep.subr.mxu0 0.0
    %4021 = vmatpush2.msra.mxu0 0.0
    %4022 = vmatprep.subr.mxu0 0.0
    %4023 = vmatpush2.msra.mxu0 0.0
    %4024 = vmatprep.subr.mxu0 0.0
    %4025 = vmatpush2.msra.mxu0 0.0
    %4026 = vmatprep.subr.mxu0 0.0
    %4027 = vmatpush2.msra.mxu0 0.0
    %4028 = vmatprep.subr.mxu0 0.0
    %4029 = vmatpush2.msra.mxu0 0.0
    %4030 = vmatprep.subr.mxu0 0.0
    %4031 = vmatpush2.msra.mxu0 0.0
    %4032 = vmatprep.subr.mxu0 0.0
    %4033 = vmatpush2.msra.mxu0 0.0
    %4034 = vmatprep.subr.mxu0 0.0
    %4035 = vmatpush2.msra.mxu0 0.0
    %4036 = vmatprep.subr.mxu0 0.0
    %4037 = vmatpush2.msra.mxu0 0.0
    %4038 = vmatprep.subr.mxu0 0.0
    %4039 = vmatpush2.msra.mxu0 0.0
    %4040 = vmatprep.subr.mxu0 0.0
    %4041 = vmatpush2.msra.mxu0 0.0
    %4042 = vmatprep.subr.mxu0 0.0
    %4043 = vmatpush2.msra.mxu0 0.0
    %4044 = vmatprep.subr.mxu0 0.0
    %4045 = vmatpush2.msra.mxu0 0.0
    %4046 = vmatprep.mubr.f32.mxu0 0.0
    %4047 = vmatmul.mubr.f32.gmra.mxu0 %v3981
    %v4048 = vpop.f32.mrf.mxu0
    %v4049 = vadd.f32 0.0, %v4048
    %v4050 = vpop.f32.mrf.mxu0
    %v4051 = vadd.f32 0.0, %v4050
    %4052 = vdwg.mxu0
    %4053 = vmatprep.subr.mxu0 %v551
    %4054 = vmatpush1.msra.mxu0 %v550
    %4055 = vmatprep.subr.mxu0 %v543
    %4056 = vmatpush1.msra.mxu0 %v542
    %4057 = vmatprep.subr.mxu0 %v535
    %4058 = vmatpush1.msra.mxu0 %v534
    %4059 = vmatprep.subr.mxu0 %v527
    %4060 = vmatpush1.msra.mxu0 %v526
    %4061 = vmatprep.subr.mxu0 %v519
    %4062 = vmatpush1.msra.mxu0 %v518
    %4063 = vmatprep.subr.mxu0 %v511
    %4064 = vmatpush1.msra.mxu0 %v510
    %4065 = vmatprep.subr.mxu0 %v503
    %4066 = vmatpush1.msra.mxu0 %v502
    %4067 = vmatprep.subr.mxu0 %v495
    %4068 = vmatpush1.msra.mxu0 %v494
    %4069 = vmatprep.subr.mxu0 %v487
    %4070 = vmatpush1.msra.mxu0 %v486
    %4071 = vmatprep.subr.mxu0 %v479
    %4072 = vmatpush1.msra.mxu0 %v478
    %4073 = vmatprep.subr.mxu0 %v471
    %4074 = vmatpush1.msra.mxu0 %v470
    %4075 = vmatprep.subr.mxu0 %v463
    %4076 = vmatpush1.msra.mxu0 %v462
    %4077 = vmatprep.subr.mxu0 %v455
    %4078 = vmatpush1.msra.mxu0 %v454
    %4079 = vmatprep.subr.mxu0 %v447
    %4080 = vmatpush1.msra.mxu0 %v446
    %4081 = vmatprep.subr.mxu0 %v439
    %4082 = vmatpush1.msra.mxu0 %v438
    %4083 = vmatprep.subr.mxu0 %v431
    %4084 = vmatpush1.msra.mxu0 %v430
    %4085 = vmatprep.subr.mxu0 0.0
    %4086 = vmatpush2.msra.mxu0 0.0
    %4087 = vmatprep.subr.mxu0 0.0
    %4088 = vmatpush2.msra.mxu0 0.0
    %4089 = vmatprep.subr.mxu0 0.0
    %4090 = vmatpush2.msra.mxu0 0.0
    %4091 = vmatprep.subr.mxu0 0.0
    %4092 = vmatpush2.msra.mxu0 0.0
    %4093 = vmatprep.subr.mxu0 0.0
    %4094 = vmatpush2.msra.mxu0 0.0
    %4095 = vmatprep.subr.mxu0 0.0
    %4096 = vmatpush2.msra.mxu0 0.0
    %4097 = vmatprep.subr.mxu0 0.0
    %4098 = vmatpush2.msra.mxu0 0.0
    %4099 = vmatprep.subr.mxu0 0.0
    %4100 = vmatpush2.msra.mxu0 0.0
    %4101 = vmatprep.subr.mxu0 0.0
    %4102 = vmatpush2.msra.mxu0 0.0
    %4103 = vmatprep.subr.mxu0 0.0
    %4104 = vmatpush2.msra.mxu0 0.0
    %4105 = vmatprep.subr.mxu0 0.0
    %4106 = vmatpush2.msra.mxu0 0.0
    %4107 = vmatprep.subr.mxu0 0.0
    %4108 = vmatpush2.msra.mxu0 0.0
    %4109 = vmatprep.subr.mxu0 0.0
    %4110 = vmatpush2.msra.mxu0 0.0
    %4111 = vmatprep.subr.mxu0 0.0
    %4112 = vmatpush2.msra.mxu0 0.0
    %4113 = vmatprep.subr.mxu0 0.0
    %4114 = vmatpush2.msra.mxu0 0.0
    %4115 = vmatprep.subr.mxu0 0.0
    %4116 = vmatpush2.msra.mxu0 0.0
    %4117 = vmatprep.mubr.f32.mxu0 0.0
    %4118 = vmatmul.mubr.f32.gmra.mxu0 %v3981
    %v4119 = vpop.f32.mrf.mxu0
    %v4120 = vadd.f32 0.0, %v4119
    %v4121 = vpop.f32.mrf.mxu0
    %v4122 = vadd.f32 0.0, %v4121
    %4123 = vdwg.mxu0
    %v4124 = vadd.f32 %v4049, %v3881
    %v4125 = vadd.f32 %v4051, %v3883
    %v4126 = vadd.f32 %v4120, %v3952
    %v4127 = vadd.f32 %v4122, %v3954
    %v4128 = vmul.f32 %v4124, 0.5
    %v4129 = vmul.f32 %v4125, 0.5
    %v4130 = vmul.f32 %v4126, 0.5
    %v4131 = vtanh.pop %v4128
    %v4132 = vtanh.pop %v4129
    %v4133 = vtanh.pop %v4130
    %v4134 = vmul.f32 %v4131, 0.5
    %v4135 = vmul.f32 %v4132, 0.5
    %v4136 = vmul.f32 %v4133, 0.5
    %v4137 = vadd.f32 %v4134, 0.5
    %v4138 = vadd.f32 %v4135, 0.5
    %v4139 = vadd.f32 %v4136, 0.5
    %v4140 = vtanh.pop %v4127
    %v4141 = vmul.f32 %v4138, %v3811
    %v4142 = vmul.f32 %v4137, %v4140
    %v4143 = vadd.f32 %v4141, %v4142
    %v4144 = vtanh.pop %v4143
    %v4145 = vmul.f32 %v4139, %v4144
    %4146 = vst [vmem:[#allocation11] sm:$0xff] %v4145
    // Predicated region
    $region42: #{tpu_custom_call.1} parent=1 // pred_check
      _
    $region43: #{tpu_custom_call.1} parent=1 // pred_check_branch
      %4148 = sbr.rel (0) target = $region45
    $region44: #{tpu_custom_call.1} parent=1 // pred_region
      %s4150 = ssub.s32 128, 128
      %4151 = vsyncadd [#allocation5], %s4150
      %s4153 = sshll.u32 [#allocation11], 4
      %s4154 = int_to_ptr.vmem [resolvable:$true] %s4153
      %4156 = dma.vmem_to_hbm [thread:$0]  %s4154, 128, %s6, [#allocation5]
    $region45: #{tpu_custom_call.1} parent=1 // pred_fallthru
      _
    // Predicated region
    $region46: #{tpu_custom_call.1} parent=1 // pred_check
      _
    $region47: #{tpu_custom_call.1} parent=1 // pred_check_branch
      %4158 = sbr.rel (0) target = $region49
    $region48: #{tpu_custom_call.1} parent=1 // pred_region
      %4159 = dma.done [#allocation5], 128
    $region49: #{tpu_custom_call.1} parent=1 // pred_fallthru
      _
    %4160 = vsyncpa [#allocation4], 1
    %4161 = vsyncpa [#allocation7], 1
    %4162 = vsyncpa [#allocation10], 1
    %4163 = vsyncpa [#allocation5], 1

</llo_original>
